<compile_context>
chip_gen: v7x
topology: tpu7x:2x2x1
jax: 0.10.0
libtpu: 0.0.40
codegen_flags: <defaults>
</compile_context>

<pallas_src>
import math

import jax
import jax.numpy as jnp
from jax.experimental import pallas as pl
from jax.experimental.pallas import tpu as pltpu

# ----------------------------- hyper-parameters ------------------------------
B = 2            # batch
S = 8            # sequence length
D = 32           # n_units (d_model)
H = 4            # attention heads
DK = D // H      # per-head dim
DFF = 64         # feed-forward hidden
DFF_PAD = 128    # lane-dense padded FFN hidden
VOCAB = 64       # vocab_size
VOCAB_PAD = 128  # lane-dense padded vocab for the output head store
NBLOCKS = 2      # transformer blocks
LN_EPS = 1e-5
ATTN_SCALE = 1.0 / math.sqrt(DK)
M = B * S        # flattened token count
LANES = 128      # slab width

# --------------------------- packed-slab row layout ---------------------------
# Global region (rows), everything f32, lane-dense 128-wide slab:
R_EMB = 0                       # [0,64)   : embedding table * sqrt(D), lanes [0,D)
R_PE = R_EMB + VOCAB            # [64,80)  : positional encoding per token, lanes [0,D)
R_OUTW = 80                     # [80,112) : output head W (D, VOCAB) in lanes [0,VOCAB)
R_OUTB = 112                    # [112]    : output head bias, lanes [0,VOCAB)
R_FIN = 113                     # [113]    : final LN gamma lanes[0:D], beta lanes[D:2D]
R_BLK0 = 120                    # first block base (8-aligned)
# Per-block relative offsets:
BO_WQKV = 0                     # 32 rows : packed QKV weights (q pre-scaled), lanes [0,3D)
BO_WO = 32                      # 32 rows : W_o, lanes [0,D)
BO_W1 = 64                      # 32 rows : W_1, lanes [0,DFF)  (pad lanes zero)
BO_W2 = 96                      # 128 rows: W_2, lanes [0,D)    (pad rows zero)
BO_VECS = 224                   # 4 rows  : [bqkv | b1 | (bo,b2) | (ln1_g,ln1_b,ln2_g,ln2_b)]
BLK_STRIDE = 232                # 8-aligned per-block stride
R_TOTAL = R_BLK0 + NBLOCKS * BLK_STRIDE   # 584 rows -> ~292 KB f32


# --------------------------- in-kernel helper math ----------------------------
def _layernorm(x, g, b):
    mu = jnp.mean(x, axis=-1, keepdims=True)
    var = jnp.mean((x - mu) ** 2, axis=-1, keepdims=True)
    return g * (x - mu) * jax.lax.rsqrt(var + LN_EPS) + b


# ------------------------------ fused Pallas kernel ---------------------------
def _fused_forward_kernel(ids_ref, bias_ref, p_ref, o_ref):
    # ---- embedding: one-hot @ (table * sqrt(D)) + positional encoding --------
    ids = ids_ref[...]                                              # (M, 1) int32
    vocab_iota = jax.lax.broadcasted_iota(jnp.int32, (M, VOCAB), 1)
    onehot = (ids == vocab_iota).astype(jnp.float32)                # (M, VOCAB)
    emb = p_ref[R_EMB:R_EMB + VOCAB, 0:D]                           # (VOCAB, D), pre-scaled
    pe = p_ref[R_PE:R_PE + M, 0:D]                                  # (M, D)
    x = jnp.dot(onehot, emb, preferred_element_type=jnp.float32) + pe

    # additive causal bias (0 keep / -1e9 masked), hoisted out of all loops
    bias = bias_ref[...]                                            # (B, S, S)

    for blk in range(NBLOCKS):
        base = R_BLK0 + blk * BLK_STRIDE
        wqkv = p_ref[base + BO_WQKV:base + BO_WQKV + D, :]          # (D, 128) q pre-scaled
        w1 = p_ref[base + BO_W1:base + BO_W1 + D, :]                # (D, 128) pad cols zero
        w2 = p_ref[base + BO_W2:base + BO_W2 + DFF_PAD, 0:D]        # (128, D) pad rows zero
        vecs = p_ref[base + BO_VECS:base + BO_VECS + 4, :]          # (4, 128)
        bqkv = vecs[0:1, :]                                         # (1, 128) pad zero
        b1 = vecs[1:2, :]                                           # (1, 128) pad zero
        bo = vecs[2:3, 0:D]
        b2 = vecs[2:3, D:2 * D]
        ln1_g, ln1_b = vecs[3:4, 0:D], vecs[3:4, D:2 * D]
        ln2_g, ln2_b = vecs[3:4, 2 * D:3 * D], vecs[3:4, 3 * D:4 * D]

        # ---- multi-head self-attention sublayer (pre-LN, residual) ----
        h = _layernorm(x, ln1_g, ln1_b)                             # (M, D)
        qkv = jnp.dot(h, wqkv, preferred_element_type=jnp.float32) + bqkv   # (M, 128)
        q = qkv[:, 0 * D:1 * D].reshape(B, S, D)
        k = qkv[:, 1 * D:2 * D].reshape(B, S, D)
        v = qkv[:, 2 * D:3 * D].reshape(B, S, D)

        attn_out = None
        for hh in range(H):                                         # static unroll
            sl = slice(hh * DK, (hh + 1) * DK)
            qh, kh, vh = q[:, :, sl], k[:, :, sl], v[:, :, sl]      # (B, S, DK)
            s = jnp.einsum('bqd,bkd->bqk', qh, kh,
                           preferred_element_type=jnp.float32)      # scale folded into wq
            s = s + bias                                            # additive causal mask
            s = s - jnp.max(s, axis=-1, keepdims=True)
            p = jnp.exp(s)
            p = p * pl.reciprocal(jnp.sum(p, axis=-1, keepdims=True), approx=True)
            ctx = jnp.einsum('bqk,bkd->bqd', p, vh,
                             preferred_element_type=jnp.float32)    # (B, S, DK)
            # accumulate directly through this head's slice of W_o (no concat)
            wo_h = p_ref[base + BO_WO + hh * DK:base + BO_WO + (hh + 1) * DK, 0:D]
            contrib = jnp.dot(ctx.reshape(M, DK), wo_h,
                              preferred_element_type=jnp.float32)   # (M, D)
            attn_out = contrib if attn_out is None else attn_out + contrib
        x = x + attn_out + bo

        # ---- position-wise FFN sublayer (pre-LN, residual) ----
        h2 = _layernorm(x, ln2_g, ln2_b)
        hid = jnp.maximum(
            jnp.dot(h2, w1, preferred_element_type=jnp.float32) + b1, 0.0)  # (M, 128)
        x = x + jnp.dot(hid, w2, preferred_element_type=jnp.float32) + b2

    # ---- final LN + output head + log_softmax (lane-dense padded to 128) ----
    fin = p_ref[R_FIN:R_FIN + 1, :]
    xf = _layernorm(x, fin[:, 0:D], fin[:, D:2 * D])
    out_w = p_ref[R_OUTW:R_OUTW + D, :]                             # (D, 128) pad zero
    out_b = p_ref[R_OUTB:R_OUTB + 1, :]                             # (1, 128) pad zero
    logits = jnp.dot(xf, out_w, preferred_element_type=jnp.float32) + out_b
    lane = jax.lax.broadcasted_iota(jnp.int32, (M, VOCAB_PAD), 1)
    logits = jnp.where(lane < VOCAB, logits, jnp.float32(-1e30))    # kill pad lanes
    mx = jnp.max(logits, axis=-1, keepdims=True)
    z = logits - mx
    lse = jnp.log(jnp.sum(jnp.exp(z), axis=-1, keepdims=True))
    o_ref[...] = (z - lse).astype(o_ref.dtype)


# ------------------------------- host-side wrapper -----------------------------
def fused_forward(packed_params, input_sequence, mask):
    ids = input_sequence.reshape(M, 1).astype(jnp.int32)
    # additive attention bias: 0 where attend, -1e9 where masked (masked_fill(mask==0))
    attn_bias = jnp.where(mask > 0, 0.0, -1e9).astype(jnp.float32)  # (B, S, S)

    vmem_spec = pl.BlockSpec(memory_space=pltpu.MemorySpace.VMEM)
    out = pl.pallas_call(
        _fused_forward_kernel,
        out_shape=jax.ShapeDtypeStruct((M, VOCAB_PAD), jnp.float32),
        in_specs=[vmem_spec, vmem_spec, vmem_spec],
        out_specs=vmem_spec,
        cost_estimate=pl.CostEstimate(
            flops=1_100_000,
            transcendentals=3_500,
            bytes_accessed=R_TOTAL * LANES * 4 + 4 * M * VOCAB_PAD + 4 * B * S * S),
    )(ids, attn_bias, packed_params)
    # drop the padded vocab lanes (exact: pad logits were -inf before softmax)
    return out[:, :VOCAB].reshape(B, S, VOCAB)


# ---------------------------------- parameters ---------------------------------
def _init_linear(key, fan_in, fan_out):
    k1, k2 = jax.random.split(key)
    bound = 1.0 / math.sqrt(fan_in)
    w = jax.random.uniform(k1, (fan_in, fan_out), jnp.float32, -bound, bound)
    b = jax.random.uniform(k2, (1, fan_out), jnp.float32, -bound, bound)
    return w, b


def positional_encoding(seq_len, d_model):
    pos = jnp.arange(seq_len, dtype=jnp.float32)[:, None]
    div = jnp.exp(jnp.arange(0, d_model, 2, dtype=jnp.float32)
                  * (-math.log(10000.0) / d_model))
    pe = jnp.zeros((seq_len, d_model), jnp.float32)
    pe = pe.at[:, 0::2].set(jnp.sin(pos * div))
    pe = pe.at[:, 1::2].set(jnp.cos(pos * div))
    return pe


def init_params(key):
    keys = jax.random.split(key, 4 + NBLOCKS)
    params = {}
    params["emb"] = jax.random.normal(keys[0], (VOCAB, D), jnp.float32)
    params["out_w"], params["out_b"] = _init_linear(keys[1], D, VOCAB)
    params["final_ln_g"] = jnp.ones((1, D), jnp.float32)
    params["final_ln_b"] = jnp.zeros((1, D), jnp.float32)
    # positional encoding hoisted out of the forward pass (baked per-token slab)
    params["pe"] = jnp.tile(positional_encoding(S, D), (B, 1))      # (B*S, D)

    blocks = []
    for i in range(NBLOCKS):
        bk = jax.random.split(keys[4 + i], 6)
        p = {}
        wq, bq = _init_linear(bk[0], D, D)
        wk, bk_ = _init_linear(bk[1], D, D)
        wv, bv = _init_linear(bk[2], D, D)
        p["wqkv"] = jnp.concatenate([wq, wk, wv], axis=1)           # (D, 3D) packed
        p["bqkv"] = jnp.concatenate([bq, bk_, bv], axis=1)          # (1, 3D)
        p["wo"], p["bo"] = _init_linear(bk[3], D, D)
        p["w1"], p["b1"] = _init_linear(bk[4], D, DFF)
        p["w2"], p["b2"] = _init_linear(bk[5], DFF, D)
        p["ln1_g"] = jnp.ones((1, D), jnp.float32)
        p["ln1_b"] = jnp.zeros((1, D), jnp.float32)
        p["ln2_g"] = jnp.ones((1, D), jnp.float32)
        p["ln2_b"] = jnp.zeros((1, D), jnp.float32)
        blocks.append(p)
    params["blocks"] = blocks
    return params


def pack_params(params):
    """One-time host-side packing of all parameters into a single lane-dense
    (R_TOTAL, 128) f32 slab.  Exact parameter transforms are folded in here:
    sqrt(D) into the embedding table, 1/sqrt(DK) into the Q projection."""
    P = jnp.zeros((R_TOTAL, LANES), jnp.float32)
    P = P.at[R_EMB:R_EMB + VOCAB, 0:D].set(params["emb"] * jnp.float32(math.sqrt(D)))
    P = P.at[R_PE:R_PE + M, 0:D].set(params["pe"])
    P = P.at[R_OUTW:R_OUTW + D, 0:VOCAB].set(params["out_w"])
    P = P.at[R_OUTB, 0:VOCAB].set(params["out_b"][0])
    P = P.at[R_FIN, 0:D].set(params["final_ln_g"][0])
    P = P.at[R_FIN, D:2 * D].set(params["final_ln_b"][0])

    for i, p in enumerate(params["blocks"]):
        base = R_BLK0 + i * BLK_STRIDE
        # fold the 1/sqrt(dk) attention scale into W_q AND b_q (exact)
        wqkv = p["wqkv"].at[:, 0:D].multiply(ATTN_SCALE)
        bqkv = p["bqkv"].at[:, 0:D].multiply(ATTN_SCALE)
        P = P.at[base + BO_WQKV:base + BO_WQKV + D, 0:3 * D].set(wqkv)
        P = P.at[base + BO_WO:base + BO_WO + D, 0:D].set(p["wo"])
        P = P.at[base + BO_W1:base + BO_W1 + D, 0:DFF].set(p["w1"])
        P = P.at[base + BO_W2:base + BO_W2 + DFF, 0:D].set(p["w2"])
        P = P.at[base + BO_VECS + 0, 0:3 * D].set(bqkv[0])
        P = P.at[base + BO_VECS + 1, 0:DFF].set(p["b1"][0])
        P = P.at[base + BO_VECS + 2, 0:D].set(p["bo"][0])
        P = P.at[base + BO_VECS + 2, D:2 * D].set(p["b2"][0])
        P = P.at[base + BO_VECS + 3, 0:D].set(p["ln1_g"][0])
        P = P.at[base + BO_VECS + 3, D:2 * D].set(p["ln1_b"][0])
        P = P.at[base + BO_VECS + 3, 2 * D:3 * D].set(p["ln2_g"][0])
        P = P.at[base + BO_VECS + 3, 3 * D:4 * D].set(p["ln2_b"][0])
    return P


# ------------------------------------- main -------------------------------------
if __name__ == "__main__":
    root = jax.random.PRNGKey(0)
    k_params, k_ids = jax.random.split(root)

    params = init_params(k_params)
    packed = pack_params(params)                                    # one-time pack

    input_sequence = jax.random.randint(k_ids, (B, S), 0, VOCAB, dtype=jnp.int32)
    # causal (subsequent) mask: 1 = attend, 0 = masked; broadcast over batch
    mask = jnp.broadcast_to(jnp.tril(jnp.ones((S, S), jnp.float32))[None], (B, S, S))

    out = fused_forward(packed, input_sequence, mask)
    out = jax.block_until_ready(out)

    assert out.shape == (B, S, VOCAB)
    # rows of log_softmax must exponentiate-sum to ~1
    assert jnp.allclose(jnp.sum(jnp.exp(out), axis=-1), 1.0, atol=1e-4)
    print("KERNEL_OK")
</pallas_src>

<mosaic_0001>
module attributes {stable_mosaic.version = 11 : i64} {
  func.func @_fused_forward_kernel(%arg0: memref<16x1xi32, #tpu.memory_space<vmem>>, %arg1: memref<2x8x8xf32, #tpu.memory_space<vmem>>, %arg2: memref<584x128xf32, #tpu.memory_space<vmem>>, %arg3: memref<16x128xf32, #tpu.memory_space<vmem>>) attributes {dimension_semantics = [], scalar_prefetch = 0 : i64, scratch_operands = 0 : i64, tpu.core_type = #tpu.core_type<tc>} {
    %c0 = arith.constant 0 : index
    %c0_0 = arith.constant 0 : index
    %0 = vector.load %arg0[%c0, %c0_0] : memref<16x1xi32, #tpu.memory_space<vmem>>, vector<16x1xi32>
    %1 = tpu.iota {dimensions = array<i32: 1>} : vector<16x64xi32>
    %2 = vector.broadcast %0 : vector<16x1xi32> to vector<16x64xi32>
    %3 = arith.cmpi eq, %2, %1 : vector<16x64xi32>
    %4 = arith.extui %3 : vector<16x64xi1> to vector<16x64xi32>
    %5 = arith.sitofp %4 : vector<16x64xi32> to vector<16x64xf32>
    %c0_1 = arith.constant 0 : index
    %c0_2 = arith.constant 0 : index
    %6 = vector.load %arg2[%c0_1, %c0_2] : memref<584x128xf32, #tpu.memory_space<vmem>>, vector<64x32xf32>
    %c64 = arith.constant 64 : index
    %c0_3 = arith.constant 0 : index
    %7 = vector.load %arg2[%c64, %c0_3] : memref<584x128xf32, #tpu.memory_space<vmem>>, vector<16x32xf32>
    %cst = arith.constant dense<0.000000e+00> : vector<16x32xf32>
    %8 = tpu.matmul %5, %6, %cst {dimension_numbers = #tpu.dot_dimension_numbers<[1], [0], [0], [1], [0, 0, 1, 1], [], []>} : vector<16x64xf32>, vector<64x32xf32>, vector<16x32xf32> -> vector<16x32xf32>
    %9 = arith.addf %8, %7 : vector<16x32xf32>
    %c0_4 = arith.constant 0 : index
    %c0_5 = arith.constant 0 : index
    %c0_6 = arith.constant 0 : index
    %10 = vector.load %arg1[%c0_4, %c0_5, %c0_6] : memref<2x8x8xf32, #tpu.memory_space<vmem>>, vector<2x8x8xf32>
    %c120 = arith.constant 120 : index
    %c0_7 = arith.constant 0 : index
    %11 = vector.load %arg2[%c120, %c0_7] : memref<584x128xf32, #tpu.memory_space<vmem>>, vector<32x128xf32>
    %c184 = arith.constant 184 : index
    %c0_8 = arith.constant 0 : index
    %12 = vector.load %arg2[%c184, %c0_8] : memref<584x128xf32, #tpu.memory_space<vmem>>, vector<32x128xf32>
    %c216 = arith.constant 216 : index
    %c0_9 = arith.constant 0 : index
    %13 = vector.load %arg2[%c216, %c0_9] : memref<584x128xf32, #tpu.memory_space<vmem>>, vector<128x32xf32>
    %c344 = arith.constant 344 : index
    %c0_10 = arith.constant 0 : index
    %14 = vector.load %arg2[%c344, %c0_10] : memref<584x128xf32, #tpu.memory_space<vmem>>, vector<4x128xf32>
    %15 = vector.extract_strided_slice %14 {offsets = [0, 0], sizes = [1, 128], strides = [1, 1]} : vector<4x128xf32> to vector<1x128xf32>
    %16 = vector.extract_strided_slice %14 {offsets = [1, 0], sizes = [1, 128], strides = [1, 1]} : vector<4x128xf32> to vector<1x128xf32>
    %17 = vector.extract_strided_slice %14 {offsets = [2, 0], sizes = [1, 32], strides = [1, 1]} : vector<4x128xf32> to vector<1x32xf32>
    %18 = vector.extract_strided_slice %14 {offsets = [2, 32], sizes = [1, 32], strides = [1, 1]} : vector<4x128xf32> to vector<1x32xf32>
    %19 = vector.extract_strided_slice %14 {offsets = [3, 0], sizes = [1, 32], strides = [1, 1]} : vector<4x128xf32> to vector<1x32xf32>
    %20 = vector.extract_strided_slice %14 {offsets = [3, 32], sizes = [1, 32], strides = [1, 1]} : vector<4x128xf32> to vector<1x32xf32>
    %21 = vector.extract_strided_slice %14 {offsets = [3, 64], sizes = [1, 32], strides = [1, 1]} : vector<4x128xf32> to vector<1x32xf32>
    %22 = vector.extract_strided_slice %14 {offsets = [3, 96], sizes = [1, 32], strides = [1, 1]} : vector<4x128xf32> to vector<1x32xf32>
    %cst_11 = arith.constant dense<0.000000e+00> : vector<16xf32>
    %23 = vector.multi_reduction <add>, %9, %cst_11 [1] : vector<16x32xf32> to vector<16xf32>
    %24 = vector.shape_cast %23 : vector<16xf32> to vector<16x1xf32>
    %cst_12 = arith.constant 3.200000e+01 : f32
    %25 = vector.broadcast %cst_12 : f32 to vector<16x1xf32>
    %26 = arith.divf %24, %25 : vector<16x1xf32>
    %27 = vector.broadcast %26 : vector<16x1xf32> to vector<16x32xf32>
    %28 = arith.subf %9, %27 : vector<16x32xf32>
    %29 = arith.mulf %28, %28 : vector<16x32xf32>
    %cst_13 = arith.constant dense<0.000000e+00> : vector<16xf32>
    %30 = vector.multi_reduction <add>, %29, %cst_13 [1] : vector<16x32xf32> to vector<16xf32>
    %31 = vector.shape_cast %30 : vector<16xf32> to vector<16x1xf32>
    %cst_14 = arith.constant 3.200000e+01 : f32
    %32 = vector.broadcast %cst_14 : f32 to vector<16x1xf32>
    %33 = arith.divf %31, %32 : vector<16x1xf32>
    %34 = vector.broadcast %26 : vector<16x1xf32> to vector<16x32xf32>
    %35 = arith.subf %9, %34 : vector<16x32xf32>
    %36 = vector.broadcast %19 : vector<1x32xf32> to vector<16x32xf32>
    %37 = arith.mulf %36, %35 : vector<16x32xf32>
    %cst_15 = arith.constant 9.99999974E-6 : f32
    %38 = vector.broadcast %cst_15 : f32 to vector<16x1xf32>
    %39 = arith.addf %33, %38 : vector<16x1xf32>
    %40 = math.rsqrt %39 : vector<16x1xf32>
    %41 = vector.broadcast %40 : vector<16x1xf32> to vector<16x32xf32>
    %42 = arith.mulf %37, %41 : vector<16x32xf32>
    %43 = vector.broadcast %20 : vector<1x32xf32> to vector<16x32xf32>
    %44 = arith.addf %42, %43 : vector<16x32xf32>
    %cst_16 = arith.constant dense<0.000000e+00> : vector<16x128xf32>
    %45 = tpu.matmul %44, %11, %cst_16 {dimension_numbers = #tpu.dot_dimension_numbers<[1], [0], [0], [1], [0, 0, 1, 1], [], []>} : vector<16x32xf32>, vector<32x128xf32>, vector<16x128xf32> -> vector<16x128xf32>
    %46 = vector.broadcast %15 : vector<1x128xf32> to vector<16x128xf32>
    %47 = arith.addf %45, %46 : vector<16x128xf32>
    %48 = vector.extract_strided_slice %47 {offsets = [0, 0], sizes = [16, 32], strides = [1, 1]} : vector<16x128xf32> to vector<16x32xf32>
    %49 = vector.shape_cast %48 : vector<16x32xf32> to vector<2x8x32xf32>
    %50 = vector.extract_strided_slice %47 {offsets = [0, 32], sizes = [16, 32], strides = [1, 1]} : vector<16x128xf32> to vector<16x32xf32>
    %51 = vector.shape_cast %50 : vector<16x32xf32> to vector<2x8x32xf32>
    %52 = vector.extract_strided_slice %47 {offsets = [0, 64], sizes = [16, 32], strides = [1, 1]} : vector<16x128xf32> to vector<16x32xf32>
    %53 = vector.shape_cast %52 : vector<16x32xf32> to vector<2x8x32xf32>
    %54 = vector.extract_strided_slice %49 {offsets = [0, 0, 0], sizes = [2, 8, 8], strides = [1, 1, 1]} : vector<2x8x32xf32> to vector<2x8x8xf32>
    %55 = vector.extract_strided_slice %51 {offsets = [0, 0, 0], sizes = [2, 8, 8], strides = [1, 1, 1]} : vector<2x8x32xf32> to vector<2x8x8xf32>
    %56 = vector.extract_strided_slice %53 {offsets = [0, 0, 0], sizes = [2, 8, 8], strides = [1, 1, 1]} : vector<2x8x32xf32> to vector<2x8x8xf32>
    "tpu.trace_start"() <{level = 10 : i32, message = "bqd,bkd->bqk"}> : () -> ()
    %cst_17 = arith.constant dense<0.000000e+00> : vector<2x8x8xf32>
    %57 = tpu.matmul %54, %55, %cst_17 {dimension_numbers = #tpu.dot_dimension_numbers<[2], [2], [1], [1], [0, 0, 0, 1, 1, 1], [0], [0]>} : vector<2x8x8xf32>, vector<2x8x8xf32>, vector<2x8x8xf32> -> vector<2x8x8xf32>
    "tpu.trace_stop"() : () -> ()
    %58 = arith.addf %57, %10 : vector<2x8x8xf32>
    %cst_18 = arith.constant dense<0xFF800000> : vector<2x8xf32>
    %59 = vector.multi_reduction <maximumf>, %58, %cst_18 [2] : vector<2x8x8xf32> to vector<2x8xf32>
    %60 = vector.shape_cast %59 : vector<2x8xf32> to vector<2x8x1xf32>
    %61 = vector.broadcast %60 : vector<2x8x1xf32> to vector<2x8x8xf32>
    %62 = arith.subf %58, %61 : vector<2x8x8xf32>
    %63 = math.exp %62 : vector<2x8x8xf32>
    %cst_19 = arith.constant dense<0.000000e+00> : vector<2x8xf32>
    %64 = vector.multi_reduction <add>, %63, %cst_19 [2] : vector<2x8x8xf32> to vector<2x8xf32>
    %65 = vector.shape_cast %64 : vector<2x8xf32> to vector<2x8x1xf32>
    %66 = tpu.reciprocal %65 {approx = true} : vector<2x8x1xf32> -> vector<2x8x1xf32>
    %67 = vector.broadcast %66 : vector<2x8x1xf32> to vector<2x8x8xf32>
    %68 = arith.mulf %63, %67 : vector<2x8x8xf32>
    "tpu.trace_start"() <{level = 10 : i32, message = "bqk,bkd->bqd"}> : () -> ()
    %cst_20 = arith.constant dense<0.000000e+00> : vector<2x8x8xf32>
    %69 = tpu.matmul %68, %56, %cst_20 {dimension_numbers = #tpu.dot_dimension_numbers<[2], [1], [1], [2], [0, 0, 0, 1, 1, 2], [0], [0]>} : vector<2x8x8xf32>, vector<2x8x8xf32>, vector<2x8x8xf32> -> vector<2x8x8xf32>
    "tpu.trace_stop"() : () -> ()
    %c152 = arith.constant 152 : index
    %c0_21 = arith.constant 0 : index
    %70 = vector.load %arg2[%c152, %c0_21] : memref<584x128xf32, #tpu.memory_space<vmem>>, vector<8x32xf32>
    %71 = vector.shape_cast %69 : vector<2x8x8xf32> to vector<16x8xf32>
    %cst_22 = arith.constant dense<0.000000e+00> : vector<16x32xf32>
    %72 = tpu.matmul %71, %70, %cst_22 {dimension_numbers = #tpu.dot_dimension_numbers<[1], [0], [0], [1], [0, 0, 1, 1], [], []>} : vector<16x8xf32>, vector<8x32xf32>, vector<16x32xf32> -> vector<16x32xf32>
    %73 = vector.extract_strided_slice %49 {offsets = [0, 0, 8], sizes = [2, 8, 8], strides = [1, 1, 1]} : vector<2x8x32xf32> to vector<2x8x8xf32>
    %74 = vector.extract_strided_slice %51 {offsets = [0, 0, 8], sizes = [2, 8, 8], strides = [1, 1, 1]} : vector<2x8x32xf32> to vector<2x8x8xf32>
    %75 = vector.extract_strided_slice %53 {offsets = [0, 0, 8], sizes = [2, 8, 8], strides = [1, 1, 1]} : vector<2x8x32xf32> to vector<2x8x8xf32>
    "tpu.trace_start"() <{level = 10 : i32, message = "bqd,bkd->bqk"}> : () -> ()
    %cst_23 = arith.constant dense<0.000000e+00> : vector<2x8x8xf32>
    %76 = tpu.matmul %73, %74, %cst_23 {dimension_numbers = #tpu.dot_dimension_numbers<[2], [2], [1], [1], [0, 0, 0, 1, 1, 1], [0], [0]>} : vector<2x8x8xf32>, vector<2x8x8xf32>, vector<2x8x8xf32> -> vector<2x8x8xf32>
    "tpu.trace_stop"() : () -> ()
    %77 = arith.addf %76, %10 : vector<2x8x8xf32>
    %cst_24 = arith.constant dense<0xFF800000> : vector<2x8xf32>
    %78 = vector.multi_reduction <maximumf>, %77, %cst_24 [2] : vector<2x8x8xf32> to vector<2x8xf32>
    %79 = vector.shape_cast %78 : vector<2x8xf32> to vector<2x8x1xf32>
    %80 = vector.broadcast %79 : vector<2x8x1xf32> to vector<2x8x8xf32>
    %81 = arith.subf %77, %80 : vector<2x8x8xf32>
    %82 = math.exp %81 : vector<2x8x8xf32>
    %cst_25 = arith.constant dense<0.000000e+00> : vector<2x8xf32>
    %83 = vector.multi_reduction <add>, %82, %cst_25 [2] : vector<2x8x8xf32> to vector<2x8xf32>
    %84 = vector.shape_cast %83 : vector<2x8xf32> to vector<2x8x1xf32>
    %85 = tpu.reciprocal %84 {approx = true} : vector<2x8x1xf32> -> vector<2x8x1xf32>
    %86 = vector.broadcast %85 : vector<2x8x1xf32> to vector<2x8x8xf32>
    %87 = arith.mulf %82, %86 : vector<2x8x8xf32>
    "tpu.trace_start"() <{level = 10 : i32, message = "bqk,bkd->bqd"}> : () -> ()
    %cst_26 = arith.constant dense<0.000000e+00> : vector<2x8x8xf32>
    %88 = tpu.matmul %87, %75, %cst_26 {dimension_numbers = #tpu.dot_dimension_numbers<[2], [1], [1], [2], [0, 0, 0, 1, 1, 2], [0], [0]>} : vector<2x8x8xf32>, vector<2x8x8xf32>, vector<2x8x8xf32> -> vector<2x8x8xf32>
    "tpu.trace_stop"() : () -> ()
    %c160 = arith.constant 160 : index
    %c0_27 = arith.constant 0 : index
    %89 = vector.load %arg2[%c160, %c0_27] : memref<584x128xf32, #tpu.memory_space<vmem>>, vector<8x32xf32>
    %90 = vector.shape_cast %88 : vector<2x8x8xf32> to vector<16x8xf32>
    %cst_28 = arith.constant dense<0.000000e+00> : vector<16x32xf32>
    %91 = tpu.matmul %90, %89, %cst_28 {dimension_numbers = #tpu.dot_dimension_numbers<[1], [0], [0], [1], [0, 0, 1, 1], [], []>} : vector<16x8xf32>, vector<8x32xf32>, vector<16x32xf32> -> vector<16x32xf32>
    %92 = arith.addf %72, %91 : vector<16x32xf32>
    %93 = vector.extract_strided_slice %49 {offsets = [0, 0, 16], sizes = [2, 8, 8], strides = [1, 1, 1]} : vector<2x8x32xf32> to vector<2x8x8xf32>
    %94 = vector.extract_strided_slice %51 {offsets = [0, 0, 16], sizes = [2, 8, 8], strides = [1, 1, 1]} : vector<2x8x32xf32> to vector<2x8x8xf32>
    %95 = vector.extract_strided_slice %53 {offsets = [0, 0, 16], sizes = [2, 8, 8], strides = [1, 1, 1]} : vector<2x8x32xf32> to vector<2x8x8xf32>
    "tpu.trace_start"() <{level = 10 : i32, message = "bqd,bkd->bqk"}> : () -> ()
    %cst_29 = arith.constant dense<0.000000e+00> : vector<2x8x8xf32>
    %96 = tpu.matmul %93, %94, %cst_29 {dimension_numbers = #tpu.dot_dimension_numbers<[2], [2], [1], [1], [0, 0, 0, 1, 1, 1], [0], [0]>} : vector<2x8x8xf32>, vector<2x8x8xf32>, vector<2x8x8xf32> -> vector<2x8x8xf32>
    "tpu.trace_stop"() : () -> ()
    %97 = arith.addf %96, %10 : vector<2x8x8xf32>
    %cst_30 = arith.constant dense<0xFF800000> : vector<2x8xf32>
    %98 = vector.multi_reduction <maximumf>, %97, %cst_30 [2] : vector<2x8x8xf32> to vector<2x8xf32>
    %99 = vector.shape_cast %98 : vector<2x8xf32> to vector<2x8x1xf32>
    %100 = vector.broadcast %99 : vector<2x8x1xf32> to vector<2x8x8xf32>
    %101 = arith.subf %97, %100 : vector<2x8x8xf32>
    %102 = math.exp %101 : vector<2x8x8xf32>
    %cst_31 = arith.constant dense<0.000000e+00> : vector<2x8xf32>
    %103 = vector.multi_reduction <add>, %102, %cst_31 [2] : vector<2x8x8xf32> to vector<2x8xf32>
    %104 = vector.shape_cast %103 : vector<2x8xf32> to vector<2x8x1xf32>
    %105 = tpu.reciprocal %104 {approx = true} : vector<2x8x1xf32> -> vector<2x8x1xf32>
    %106 = vector.broadcast %105 : vector<2x8x1xf32> to vector<2x8x8xf32>
    %107 = arith.mulf %102, %106 : vector<2x8x8xf32>
    "tpu.trace_start"() <{level = 10 : i32, message = "bqk,bkd->bqd"}> : () -> ()
    %cst_32 = arith.constant dense<0.000000e+00> : vector<2x8x8xf32>
    %108 = tpu.matmul %107, %95, %cst_32 {dimension_numbers = #tpu.dot_dimension_numbers<[2], [1], [1], [2], [0, 0, 0, 1, 1, 2], [0], [0]>} : vector<2x8x8xf32>, vector<2x8x8xf32>, vector<2x8x8xf32> -> vector<2x8x8xf32>
    "tpu.trace_stop"() : () -> ()
    %c168 = arith.constant 168 : index
    %c0_33 = arith.constant 0 : index
    %109 = vector.load %arg2[%c168, %c0_33] : memref<584x128xf32, #tpu.memory_space<vmem>>, vector<8x32xf32>
    %110 = vector.shape_cast %108 : vector<2x8x8xf32> to vector<16x8xf32>
    %cst_34 = arith.constant dense<0.000000e+00> : vector<16x32xf32>
    %111 = tpu.matmul %110, %109, %cst_34 {dimension_numbers = #tpu.dot_dimension_numbers<[1], [0], [0], [1], [0, 0, 1, 1], [], []>} : vector<16x8xf32>, vector<8x32xf32>, vector<16x32xf32> -> vector<16x32xf32>
    %112 = arith.addf %92, %111 : vector<16x32xf32>
    %113 = vector.extract_strided_slice %49 {offsets = [0, 0, 24], sizes = [2, 8, 8], strides = [1, 1, 1]} : vector<2x8x32xf32> to vector<2x8x8xf32>
    %114 = vector.extract_strided_slice %51 {offsets = [0, 0, 24], sizes = [2, 8, 8], strides = [1, 1, 1]} : vector<2x8x32xf32> to vector<2x8x8xf32>
    %115 = vector.extract_strided_slice %53 {offsets = [0, 0, 24], sizes = [2, 8, 8], strides = [1, 1, 1]} : vector<2x8x32xf32> to vector<2x8x8xf32>
    "tpu.trace_start"() <{level = 10 : i32, message = "bqd,bkd->bqk"}> : () -> ()
    %cst_35 = arith.constant dense<0.000000e+00> : vector<2x8x8xf32>
    %116 = tpu.matmul %113, %114, %cst_35 {dimension_numbers = #tpu.dot_dimension_numbers<[2], [2], [1], [1], [0, 0, 0, 1, 1, 1], [0], [0]>} : vector<2x8x8xf32>, vector<2x8x8xf32>, vector<2x8x8xf32> -> vector<2x8x8xf32>
    "tpu.trace_stop"() : () -> ()
    %117 = arith.addf %116, %10 : vector<2x8x8xf32>
    %cst_36 = arith.constant dense<0xFF800000> : vector<2x8xf32>
    %118 = vector.multi_reduction <maximumf>, %117, %cst_36 [2] : vector<2x8x8xf32> to vector<2x8xf32>
    %119 = vector.shape_cast %118 : vector<2x8xf32> to vector<2x8x1xf32>
    %120 = vector.broadcast %119 : vector<2x8x1xf32> to vector<2x8x8xf32>
    %121 = arith.subf %117, %120 : vector<2x8x8xf32>
    %122 = math.exp %121 : vector<2x8x8xf32>
    %cst_37 = arith.constant dense<0.000000e+00> : vector<2x8xf32>
    %123 = vector.multi_reduction <add>, %122, %cst_37 [2] : vector<2x8x8xf32> to vector<2x8xf32>
    %124 = vector.shape_cast %123 : vector<2x8xf32> to vector<2x8x1xf32>
    %125 = tpu.reciprocal %124 {approx = true} : vector<2x8x1xf32> -> vector<2x8x1xf32>
    %126 = vector.broadcast %125 : vector<2x8x1xf32> to vector<2x8x8xf32>
    %127 = arith.mulf %122, %126 : vector<2x8x8xf32>
    "tpu.trace_start"() <{level = 10 : i32, message = "bqk,bkd->bqd"}> : () -> ()
    %cst_38 = arith.constant dense<0.000000e+00> : vector<2x8x8xf32>
    %128 = tpu.matmul %127, %115, %cst_38 {dimension_numbers = #tpu.dot_dimension_numbers<[2], [1], [1], [2], [0, 0, 0, 1, 1, 2], [0], [0]>} : vector<2x8x8xf32>, vector<2x8x8xf32>, vector<2x8x8xf32> -> vector<2x8x8xf32>
    "tpu.trace_stop"() : () -> ()
    %c176 = arith.constant 176 : index
    %c0_39 = arith.constant 0 : index
    %129 = vector.load %arg2[%c176, %c0_39] : memref<584x128xf32, #tpu.memory_space<vmem>>, vector<8x32xf32>
    %130 = vector.shape_cast %128 : vector<2x8x8xf32> to vector<16x8xf32>
    %cst_40 = arith.constant dense<0.000000e+00> : vector<16x32xf32>
    %131 = tpu.matmul %130, %129, %cst_40 {dimension_numbers = #tpu.dot_dimension_numbers<[1], [0], [0], [1], [0, 0, 1, 1], [], []>} : vector<16x8xf32>, vector<8x32xf32>, vector<16x32xf32> -> vector<16x32xf32>
    %132 = arith.addf %112, %131 : vector<16x32xf32>
    %133 = arith.addf %9, %132 : vector<16x32xf32>
    %134 = vector.broadcast %17 : vector<1x32xf32> to vector<16x32xf32>
    %135 = arith.addf %133, %134 : vector<16x32xf32>
    %cst_41 = arith.constant dense<0.000000e+00> : vector<16xf32>
    %136 = vector.multi_reduction <add>, %135, %cst_41 [1] : vector<16x32xf32> to vector<16xf32>
    %137 = vector.shape_cast %136 : vector<16xf32> to vector<16x1xf32>
    %cst_42 = arith.constant 3.200000e+01 : f32
    %138 = vector.broadcast %cst_42 : f32 to vector<16x1xf32>
    %139 = arith.divf %137, %138 : vector<16x1xf32>
    %140 = vector.broadcast %139 : vector<16x1xf32> to vector<16x32xf32>
    %141 = arith.subf %135, %140 : vector<16x32xf32>
    %142 = arith.mulf %141, %141 : vector<16x32xf32>
    %cst_43 = arith.constant dense<0.000000e+00> : vector<16xf32>
    %143 = vector.multi_reduction <add>, %142, %cst_43 [1] : vector<16x32xf32> to vector<16xf32>
    %144 = vector.shape_cast %143 : vector<16xf32> to vector<16x1xf32>
    %cst_44 = arith.constant 3.200000e+01 : f32
    %145 = vector.broadcast %cst_44 : f32 to vector<16x1xf32>
    %146 = arith.divf %144, %145 : vector<16x1xf32>
    %147 = vector.broadcast %139 : vector<16x1xf32> to vector<16x32xf32>
    %148 = arith.subf %135, %147 : vector<16x32xf32>
    %149 = vector.broadcast %21 : vector<1x32xf32> to vector<16x32xf32>
    %150 = arith.mulf %149, %148 : vector<16x32xf32>
    %cst_45 = arith.constant 9.99999974E-6 : f32
    %151 = vector.broadcast %cst_45 : f32 to vector<16x1xf32>
    %152 = arith.addf %146, %151 : vector<16x1xf32>
    %153 = math.rsqrt %152 : vector<16x1xf32>
    %154 = vector.broadcast %153 : vector<16x1xf32> to vector<16x32xf32>
    %155 = arith.mulf %150, %154 : vector<16x32xf32>
    %156 = vector.broadcast %22 : vector<1x32xf32> to vector<16x32xf32>
    %157 = arith.addf %155, %156 : vector<16x32xf32>
    %cst_46 = arith.constant dense<0.000000e+00> : vector<16x128xf32>
    %158 = tpu.matmul %157, %12, %cst_46 {dimension_numbers = #tpu.dot_dimension_numbers<[1], [0], [0], [1], [0, 0, 1, 1], [], []>} : vector<16x32xf32>, vector<32x128xf32>, vector<16x128xf32> -> vector<16x128xf32>
    %159 = vector.broadcast %16 : vector<1x128xf32> to vector<16x128xf32>
    %160 = arith.addf %158, %159 : vector<16x128xf32>
    %cst_47 = arith.constant 0.000000e+00 : f32
    %161 = vector.broadcast %cst_47 : f32 to vector<16x128xf32>
    %162 = arith.maximumf %160, %161 : vector<16x128xf32>
    %cst_48 = arith.constant dense<0.000000e+00> : vector<16x32xf32>
    %163 = tpu.matmul %162, %13, %cst_48 {dimension_numbers = #tpu.dot_dimension_numbers<[1], [0], [0], [1], [0, 0, 1, 1], [], []>} : vector<16x128xf32>, vector<128x32xf32>, vector<16x32xf32> -> vector<16x32xf32>
    %164 = arith.addf %135, %163 : vector<16x32xf32>
    %165 = vector.broadcast %18 : vector<1x32xf32> to vector<16x32xf32>
    %166 = arith.addf %164, %165 : vector<16x32xf32>
    %c352 = arith.constant 352 : index
    %c0_49 = arith.constant 0 : index
    %167 = vector.load %arg2[%c352, %c0_49] : memref<584x128xf32, #tpu.memory_space<vmem>>, vector<32x128xf32>
    %c416 = arith.constant 416 : index
    %c0_50 = arith.constant 0 : index
    %168 = vector.load %arg2[%c416, %c0_50] : memref<584x128xf32, #tpu.memory_space<vmem>>, vector<32x128xf32>
    %c448 = arith.constant 448 : index
    %c0_51 = arith.constant 0 : index
    %169 = vector.load %arg2[%c448, %c0_51] : memref<584x128xf32, #tpu.memory_space<vmem>>, vector<128x32xf32>
    %c576 = arith.constant 576 : index
    %c0_52 = arith.constant 0 : index
    %170 = vector.load %arg2[%c576, %c0_52] : memref<584x128xf32, #tpu.memory_space<vmem>>, vector<4x128xf32>
    %171 = vector.extract_strided_slice %170 {offsets = [0, 0], sizes = [1, 128], strides = [1, 1]} : vector<4x128xf32> to vector<1x128xf32>
    %172 = vector.extract_strided_slice %170 {offsets = [1, 0], sizes = [1, 128], strides = [1, 1]} : vector<4x128xf32> to vector<1x128xf32>
    %173 = vector.extract_strided_slice %170 {offsets = [2, 0], sizes = [1, 32], strides = [1, 1]} : vector<4x128xf32> to vector<1x32xf32>
    %174 = vector.extract_strided_slice %170 {offsets = [2, 32], sizes = [1, 32], strides = [1, 1]} : vector<4x128xf32> to vector<1x32xf32>
    %175 = vector.extract_strided_slice %170 {offsets = [3, 0], sizes = [1, 32], strides = [1, 1]} : vector<4x128xf32> to vector<1x32xf32>
    %176 = vector.extract_strided_slice %170 {offsets = [3, 32], sizes = [1, 32], strides = [1, 1]} : vector<4x128xf32> to vector<1x32xf32>
    %177 = vector.extract_strided_slice %170 {offsets = [3, 64], sizes = [1, 32], strides = [1, 1]} : vector<4x128xf32> to vector<1x32xf32>
    %178 = vector.extract_strided_slice %170 {offsets = [3, 96], sizes = [1, 32], strides = [1, 1]} : vector<4x128xf32> to vector<1x32xf32>
    %cst_53 = arith.constant dense<0.000000e+00> : vector<16xf32>
    %179 = vector.multi_reduction <add>, %166, %cst_53 [1] : vector<16x32xf32> to vector<16xf32>
    %180 = vector.shape_cast %179 : vector<16xf32> to vector<16x1xf32>
    %cst_54 = arith.constant 3.200000e+01 : f32
    %181 = vector.broadcast %cst_54 : f32 to vector<16x1xf32>
    %182 = arith.divf %180, %181 : vector<16x1xf32>
    %183 = vector.broadcast %182 : vector<16x1xf32> to vector<16x32xf32>
    %184 = arith.subf %166, %183 : vector<16x32xf32>
    %185 = arith.mulf %184, %184 : vector<16x32xf32>
    %cst_55 = arith.constant dense<0.000000e+00> : vector<16xf32>
    %186 = vector.multi_reduction <add>, %185, %cst_55 [1] : vector<16x32xf32> to vector<16xf32>
    %187 = vector.shape_cast %186 : vector<16xf32> to vector<16x1xf32>
    %cst_56 = arith.constant 3.200000e+01 : f32
    %188 = vector.broadcast %cst_56 : f32 to vector<16x1xf32>
    %189 = arith.divf %187, %188 : vector<16x1xf32>
    %190 = vector.broadcast %182 : vector<16x1xf32> to vector<16x32xf32>
    %191 = arith.subf %166, %190 : vector<16x32xf32>
    %192 = vector.broadcast %175 : vector<1x32xf32> to vector<16x32xf32>
    %193 = arith.mulf %192, %191 : vector<16x32xf32>
    %cst_57 = arith.constant 9.99999974E-6 : f32
    %194 = vector.broadcast %cst_57 : f32 to vector<16x1xf32>
    %195 = arith.addf %189, %194 : vector<16x1xf32>
    %196 = math.rsqrt %195 : vector<16x1xf32>
    %197 = vector.broadcast %196 : vector<16x1xf32> to vector<16x32xf32>
    %198 = arith.mulf %193, %197 : vector<16x32xf32>
    %199 = vector.broadcast %176 : vector<1x32xf32> to vector<16x32xf32>
    %200 = arith.addf %198, %199 : vector<16x32xf32>
    %cst_58 = arith.constant dense<0.000000e+00> : vector<16x128xf32>
    %201 = tpu.matmul %200, %167, %cst_58 {dimension_numbers = #tpu.dot_dimension_numbers<[1], [0], [0], [1], [0, 0, 1, 1], [], []>} : vector<16x32xf32>, vector<32x128xf32>, vector<16x128xf32> -> vector<16x128xf32>
    %202 = vector.broadcast %171 : vector<1x128xf32> to vector<16x128xf32>
    %203 = arith.addf %201, %202 : vector<16x128xf32>
    %204 = vector.extract_strided_slice %203 {offsets = [0, 0], sizes = [16, 32], strides = [1, 1]} : vector<16x128xf32> to vector<16x32xf32>
    %205 = vector.shape_cast %204 : vector<16x32xf32> to vector<2x8x32xf32>
    %206 = vector.extract_strided_slice %203 {offsets = [0, 32], sizes = [16, 32], strides = [1, 1]} : vector<16x128xf32> to vector<16x32xf32>
    %207 = vector.shape_cast %206 : vector<16x32xf32> to vector<2x8x32xf32>
    %208 = vector.extract_strided_slice %203 {offsets = [0, 64], sizes = [16, 32], strides = [1, 1]} : vector<16x128xf32> to vector<16x32xf32>
    %209 = vector.shape_cast %208 : vector<16x32xf32> to vector<2x8x32xf32>
    %210 = vector.extract_strided_slice %205 {offsets = [0, 0, 0], sizes = [2, 8, 8], strides = [1, 1, 1]} : vector<2x8x32xf32> to vector<2x8x8xf32>
    %211 = vector.extract_strided_slice %207 {offsets = [0, 0, 0], sizes = [2, 8, 8], strides = [1, 1, 1]} : vector<2x8x32xf32> to vector<2x8x8xf32>
    %212 = vector.extract_strided_slice %209 {offsets = [0, 0, 0], sizes = [2, 8, 8], strides = [1, 1, 1]} : vector<2x8x32xf32> to vector<2x8x8xf32>
    "tpu.trace_start"() <{level = 10 : i32, message = "bqd,bkd->bqk"}> : () -> ()
    %cst_59 = arith.constant dense<0.000000e+00> : vector<2x8x8xf32>
    %213 = tpu.matmul %210, %211, %cst_59 {dimension_numbers = #tpu.dot_dimension_numbers<[2], [2], [1], [1], [0, 0, 0, 1, 1, 1], [0], [0]>} : vector<2x8x8xf32>, vector<2x8x8xf32>, vector<2x8x8xf32> -> vector<2x8x8xf32>
    "tpu.trace_stop"() : () -> ()
    %214 = arith.addf %213, %10 : vector<2x8x8xf32>
    %cst_60 = arith.constant dense<0xFF800000> : vector<2x8xf32>
    %215 = vector.multi_reduction <maximumf>, %214, %cst_60 [2] : vector<2x8x8xf32> to vector<2x8xf32>
    %216 = vector.shape_cast %215 : vector<2x8xf32> to vector<2x8x1xf32>
    %217 = vector.broadcast %216 : vector<2x8x1xf32> to vector<2x8x8xf32>
    %218 = arith.subf %214, %217 : vector<2x8x8xf32>
    %219 = math.exp %218 : vector<2x8x8xf32>
    %cst_61 = arith.constant dense<0.000000e+00> : vector<2x8xf32>
    %220 = vector.multi_reduction <add>, %219, %cst_61 [2] : vector<2x8x8xf32> to vector<2x8xf32>
    %221 = vector.shape_cast %220 : vector<2x8xf32> to vector<2x8x1xf32>
    %222 = tpu.reciprocal %221 {approx = true} : vector<2x8x1xf32> -> vector<2x8x1xf32>
    %223 = vector.broadcast %222 : vector<2x8x1xf32> to vector<2x8x8xf32>
    %224 = arith.mulf %219, %223 : vector<2x8x8xf32>
    "tpu.trace_start"() <{level = 10 : i32, message = "bqk,bkd->bqd"}> : () -> ()
    %cst_62 = arith.constant dense<0.000000e+00> : vector<2x8x8xf32>
    %225 = tpu.matmul %224, %212, %cst_62 {dimension_numbers = #tpu.dot_dimension_numbers<[2], [1], [1], [2], [0, 0, 0, 1, 1, 2], [0], [0]>} : vector<2x8x8xf32>, vector<2x8x8xf32>, vector<2x8x8xf32> -> vector<2x8x8xf32>
    "tpu.trace_stop"() : () -> ()
    %c384 = arith.constant 384 : index
    %c0_63 = arith.constant 0 : index
    %226 = vector.load %arg2[%c384, %c0_63] : memref<584x128xf32, #tpu.memory_space<vmem>>, vector<8x32xf32>
    %227 = vector.shape_cast %225 : vector<2x8x8xf32> to vector<16x8xf32>
    %cst_64 = arith.constant dense<0.000000e+00> : vector<16x32xf32>
    %228 = tpu.matmul %227, %226, %cst_64 {dimension_numbers = #tpu.dot_dimension_numbers<[1], [0], [0], [1], [0, 0, 1, 1], [], []>} : vector<16x8xf32>, vector<8x32xf32>, vector<16x32xf32> -> vector<16x32xf32>
    %229 = vector.extract_strided_slice %205 {offsets = [0, 0, 8], sizes = [2, 8, 8], strides = [1, 1, 1]} : vector<2x8x32xf32> to vector<2x8x8xf32>
    %230 = vector.extract_strided_slice %207 {offsets = [0, 0, 8], sizes = [2, 8, 8], strides = [1, 1, 1]} : vector<2x8x32xf32> to vector<2x8x8xf32>
    %231 = vector.extract_strided_slice %209 {offsets = [0, 0, 8], sizes = [2, 8, 8], strides = [1, 1, 1]} : vector<2x8x32xf32> to vector<2x8x8xf32>
    "tpu.trace_start"() <{level = 10 : i32, message = "bqd,bkd->bqk"}> : () -> ()
    %cst_65 = arith.constant dense<0.000000e+00> : vector<2x8x8xf32>
    %232 = tpu.matmul %229, %230, %cst_65 {dimension_numbers = #tpu.dot_dimension_numbers<[2], [2], [1], [1], [0, 0, 0, 1, 1, 1], [0], [0]>} : vector<2x8x8xf32>, vector<2x8x8xf32>, vector<2x8x8xf32> -> vector<2x8x8xf32>
    "tpu.trace_stop"() : () -> ()
    %233 = arith.addf %232, %10 : vector<2x8x8xf32>
    %cst_66 = arith.constant dense<0xFF800000> : vector<2x8xf32>
    %234 = vector.multi_reduction <maximumf>, %233, %cst_66 [2] : vector<2x8x8xf32> to vector<2x8xf32>
    %235 = vector.shape_cast %234 : vector<2x8xf32> to vector<2x8x1xf32>
    %236 = vector.broadcast %235 : vector<2x8x1xf32> to vector<2x8x8xf32>
    %237 = arith.subf %233, %236 : vector<2x8x8xf32>
    %238 = math.exp %237 : vector<2x8x8xf32>
    %cst_67 = arith.constant dense<0.000000e+00> : vector<2x8xf32>
    %239 = vector.multi_reduction <add>, %238, %cst_67 [2] : vector<2x8x8xf32> to vector<2x8xf32>
    %240 = vector.shape_cast %239 : vector<2x8xf32> to vector<2x8x1xf32>
    %241 = tpu.reciprocal %240 {approx = true} : vector<2x8x1xf32> -> vector<2x8x1xf32>
    %242 = vector.broadcast %241 : vector<2x8x1xf32> to vector<2x8x8xf32>
    %243 = arith.mulf %238, %242 : vector<2x8x8xf32>
    "tpu.trace_start"() <{level = 10 : i32, message = "bqk,bkd->bqd"}> : () -> ()
    %cst_68 = arith.constant dense<0.000000e+00> : vector<2x8x8xf32>
    %244 = tpu.matmul %243, %231, %cst_68 {dimension_numbers = #tpu.dot_dimension_numbers<[2], [1], [1], [2], [0, 0, 0, 1, 1, 2], [0], [0]>} : vector<2x8x8xf32>, vector<2x8x8xf32>, vector<2x8x8xf32> -> vector<2x8x8xf32>
    "tpu.trace_stop"() : () -> ()
    %c392 = arith.constant 392 : index
    %c0_69 = arith.constant 0 : index
    %245 = vector.load %arg2[%c392, %c0_69] : memref<584x128xf32, #tpu.memory_space<vmem>>, vector<8x32xf32>
    %246 = vector.shape_cast %244 : vector<2x8x8xf32> to vector<16x8xf32>
    %cst_70 = arith.constant dense<0.000000e+00> : vector<16x32xf32>
    %247 = tpu.matmul %246, %245, %cst_70 {dimension_numbers = #tpu.dot_dimension_numbers<[1], [0], [0], [1], [0, 0, 1, 1], [], []>} : vector<16x8xf32>, vector<8x32xf32>, vector<16x32xf32> -> vector<16x32xf32>
    %248 = arith.addf %228, %247 : vector<16x32xf32>
    %249 = vector.extract_strided_slice %205 {offsets = [0, 0, 16], sizes = [2, 8, 8], strides = [1, 1, 1]} : vector<2x8x32xf32> to vector<2x8x8xf32>
    %250 = vector.extract_strided_slice %207 {offsets = [0, 0, 16], sizes = [2, 8, 8], strides = [1, 1, 1]} : vector<2x8x32xf32> to vector<2x8x8xf32>
    %251 = vector.extract_strided_slice %209 {offsets = [0, 0, 16], sizes = [2, 8, 8], strides = [1, 1, 1]} : vector<2x8x32xf32> to vector<2x8x8xf32>
    "tpu.trace_start"() <{level = 10 : i32, message = "bqd,bkd->bqk"}> : () -> ()
    %cst_71 = arith.constant dense<0.000000e+00> : vector<2x8x8xf32>
    %252 = tpu.matmul %249, %250, %cst_71 {dimension_numbers = #tpu.dot_dimension_numbers<[2], [2], [1], [1], [0, 0, 0, 1, 1, 1], [0], [0]>} : vector<2x8x8xf32>, vector<2x8x8xf32>, vector<2x8x8xf32> -> vector<2x8x8xf32>
    "tpu.trace_stop"() : () -> ()
    %253 = arith.addf %252, %10 : vector<2x8x8xf32>
    %cst_72 = arith.constant dense<0xFF800000> : vector<2x8xf32>
    %254 = vector.multi_reduction <maximumf>, %253, %cst_72 [2] : vector<2x8x8xf32> to vector<2x8xf32>
    %255 = vector.shape_cast %254 : vector<2x8xf32> to vector<2x8x1xf32>
    %256 = vector.broadcast %255 : vector<2x8x1xf32> to vector<2x8x8xf32>
    %257 = arith.subf %253, %256 : vector<2x8x8xf32>
    %258 = math.exp %257 : vector<2x8x8xf32>
    %cst_73 = arith.constant dense<0.000000e+00> : vector<2x8xf32>
    %259 = vector.multi_reduction <add>, %258, %cst_73 [2] : vector<2x8x8xf32> to vector<2x8xf32>
    %260 = vector.shape_cast %259 : vector<2x8xf32> to vector<2x8x1xf32>
    %261 = tpu.reciprocal %260 {approx = true} : vector<2x8x1xf32> -> vector<2x8x1xf32>
    %262 = vector.broadcast %261 : vector<2x8x1xf32> to vector<2x8x8xf32>
    %263 = arith.mulf %258, %262 : vector<2x8x8xf32>
    "tpu.trace_start"() <{level = 10 : i32, message = "bqk,bkd->bqd"}> : () -> ()
    %cst_74 = arith.constant dense<0.000000e+00> : vector<2x8x8xf32>
    %264 = tpu.matmul %263, %251, %cst_74 {dimension_numbers = #tpu.dot_dimension_numbers<[2], [1], [1], [2], [0, 0, 0, 1, 1, 2], [0], [0]>} : vector<2x8x8xf32>, vector<2x8x8xf32>, vector<2x8x8xf32> -> vector<2x8x8xf32>
    "tpu.trace_stop"() : () -> ()
    %c400 = arith.constant 400 : index
    %c0_75 = arith.constant 0 : index
    %265 = vector.load %arg2[%c400, %c0_75] : memref<584x128xf32, #tpu.memory_space<vmem>>, vector<8x32xf32>
    %266 = vector.shape_cast %264 : vector<2x8x8xf32> to vector<16x8xf32>
    %cst_76 = arith.constant dense<0.000000e+00> : vector<16x32xf32>
    %267 = tpu.matmul %266, %265, %cst_76 {dimension_numbers = #tpu.dot_dimension_numbers<[1], [0], [0], [1], [0, 0, 1, 1], [], []>} : vector<16x8xf32>, vector<8x32xf32>, vector<16x32xf32> -> vector<16x32xf32>
    %268 = arith.addf %248, %267 : vector<16x32xf32>
    %269 = vector.extract_strided_slice %205 {offsets = [0, 0, 24], sizes = [2, 8, 8], strides = [1, 1, 1]} : vector<2x8x32xf32> to vector<2x8x8xf32>
    %270 = vector.extract_strided_slice %207 {offsets = [0, 0, 24], sizes = [2, 8, 8], strides = [1, 1, 1]} : vector<2x8x32xf32> to vector<2x8x8xf32>
    %271 = vector.extract_strided_slice %209 {offsets = [0, 0, 24], sizes = [2, 8, 8], strides = [1, 1, 1]} : vector<2x8x32xf32> to vector<2x8x8xf32>
    "tpu.trace_start"() <{level = 10 : i32, message = "bqd,bkd->bqk"}> : () -> ()
    %cst_77 = arith.constant dense<0.000000e+00> : vector<2x8x8xf32>
    %272 = tpu.matmul %269, %270, %cst_77 {dimension_numbers = #tpu.dot_dimension_numbers<[2], [2], [1], [1], [0, 0, 0, 1, 1, 1], [0], [0]>} : vector<2x8x8xf32>, vector<2x8x8xf32>, vector<2x8x8xf32> -> vector<2x8x8xf32>
    "tpu.trace_stop"() : () -> ()
    %273 = arith.addf %272, %10 : vector<2x8x8xf32>
    %cst_78 = arith.constant dense<0xFF800000> : vector<2x8xf32>
    %274 = vector.multi_reduction <maximumf>, %273, %cst_78 [2] : vector<2x8x8xf32> to vector<2x8xf32>
    %275 = vector.shape_cast %274 : vector<2x8xf32> to vector<2x8x1xf32>
    %276 = vector.broadcast %275 : vector<2x8x1xf32> to vector<2x8x8xf32>
    %277 = arith.subf %273, %276 : vector<2x8x8xf32>
    %278 = math.exp %277 : vector<2x8x8xf32>
    %cst_79 = arith.constant dense<0.000000e+00> : vector<2x8xf32>
    %279 = vector.multi_reduction <add>, %278, %cst_79 [2] : vector<2x8x8xf32> to vector<2x8xf32>
    %280 = vector.shape_cast %279 : vector<2x8xf32> to vector<2x8x1xf32>
    %281 = tpu.reciprocal %280 {approx = true} : vector<2x8x1xf32> -> vector<2x8x1xf32>
    %282 = vector.broadcast %281 : vector<2x8x1xf32> to vector<2x8x8xf32>
    %283 = arith.mulf %278, %282 : vector<2x8x8xf32>
    "tpu.trace_start"() <{level = 10 : i32, message = "bqk,bkd->bqd"}> : () -> ()
    %cst_80 = arith.constant dense<0.000000e+00> : vector<2x8x8xf32>
    %284 = tpu.matmul %283, %271, %cst_80 {dimension_numbers = #tpu.dot_dimension_numbers<[2], [1], [1], [2], [0, 0, 0, 1, 1, 2], [0], [0]>} : vector<2x8x8xf32>, vector<2x8x8xf32>, vector<2x8x8xf32> -> vector<2x8x8xf32>
    "tpu.trace_stop"() : () -> ()
    %c408 = arith.constant 408 : index
    %c0_81 = arith.constant 0 : index
    %285 = vector.load %arg2[%c408, %c0_81] : memref<584x128xf32, #tpu.memory_space<vmem>>, vector<8x32xf32>
    %286 = vector.shape_cast %284 : vector<2x8x8xf32> to vector<16x8xf32>
    %cst_82 = arith.constant dense<0.000000e+00> : vector<16x32xf32>
    %287 = tpu.matmul %286, %285, %cst_82 {dimension_numbers = #tpu.dot_dimension_numbers<[1], [0], [0], [1], [0, 0, 1, 1], [], []>} : vector<16x8xf32>, vector<8x32xf32>, vector<16x32xf32> -> vector<16x32xf32>
    %288 = arith.addf %268, %287 : vector<16x32xf32>
    %289 = arith.addf %166, %288 : vector<16x32xf32>
    %290 = vector.broadcast %173 : vector<1x32xf32> to vector<16x32xf32>
    %291 = arith.addf %289, %290 : vector<16x32xf32>
    %cst_83 = arith.constant dense<0.000000e+00> : vector<16xf32>
    %292 = vector.multi_reduction <add>, %291, %cst_83 [1] : vector<16x32xf32> to vector<16xf32>
    %293 = vector.shape_cast %292 : vector<16xf32> to vector<16x1xf32>
    %cst_84 = arith.constant 3.200000e+01 : f32
    %294 = vector.broadcast %cst_84 : f32 to vector<16x1xf32>
    %295 = arith.divf %293, %294 : vector<16x1xf32>
    %296 = vector.broadcast %295 : vector<16x1xf32> to vector<16x32xf32>
    %297 = arith.subf %291, %296 : vector<16x32xf32>
    %298 = arith.mulf %297, %297 : vector<16x32xf32>
    %cst_85 = arith.constant dense<0.000000e+00> : vector<16xf32>
    %299 = vector.multi_reduction <add>, %298, %cst_85 [1] : vector<16x32xf32> to vector<16xf32>
    %300 = vector.shape_cast %299 : vector<16xf32> to vector<16x1xf32>
    %cst_86 = arith.constant 3.200000e+01 : f32
    %301 = vector.broadcast %cst_86 : f32 to vector<16x1xf32>
    %302 = arith.divf %300, %301 : vector<16x1xf32>
    %303 = vector.broadcast %295 : vector<16x1xf32> to vector<16x32xf32>
    %304 = arith.subf %291, %303 : vector<16x32xf32>
    %305 = vector.broadcast %177 : vector<1x32xf32> to vector<16x32xf32>
    %306 = arith.mulf %305, %304 : vector<16x32xf32>
    %cst_87 = arith.constant 9.99999974E-6 : f32
    %307 = vector.broadcast %cst_87 : f32 to vector<16x1xf32>
    %308 = arith.addf %302, %307 : vector<16x1xf32>
    %309 = math.rsqrt %308 : vector<16x1xf32>
    %310 = vector.broadcast %309 : vector<16x1xf32> to vector<16x32xf32>
    %311 = arith.mulf %306, %310 : vector<16x32xf32>
    %312 = vector.broadcast %178 : vector<1x32xf32> to vector<16x32xf32>
    %313 = arith.addf %311, %312 : vector<16x32xf32>
    %cst_88 = arith.constant dense<0.000000e+00> : vector<16x128xf32>
    %314 = tpu.matmul %313, %168, %cst_88 {dimension_numbers = #tpu.dot_dimension_numbers<[1], [0], [0], [1], [0, 0, 1, 1], [], []>} : vector<16x32xf32>, vector<32x128xf32>, vector<16x128xf32> -> vector<16x128xf32>
    %315 = vector.broadcast %172 : vector<1x128xf32> to vector<16x128xf32>
    %316 = arith.addf %314, %315 : vector<16x128xf32>
    %cst_89 = arith.constant 0.000000e+00 : f32
    %317 = vector.broadcast %cst_89 : f32 to vector<16x128xf32>
    %318 = arith.maximumf %316, %317 : vector<16x128xf32>
    %cst_90 = arith.constant dense<0.000000e+00> : vector<16x32xf32>
    %319 = tpu.matmul %318, %169, %cst_90 {dimension_numbers = #tpu.dot_dimension_numbers<[1], [0], [0], [1], [0, 0, 1, 1], [], []>} : vector<16x128xf32>, vector<128x32xf32>, vector<16x32xf32> -> vector<16x32xf32>
    %320 = arith.addf %291, %319 : vector<16x32xf32>
    %321 = vector.broadcast %174 : vector<1x32xf32> to vector<16x32xf32>
    %322 = arith.addf %320, %321 : vector<16x32xf32>
    %c113 = arith.constant 113 : index
    %c0_91 = arith.constant 0 : index
    %323 = vector.load %arg2[%c113, %c0_91] : memref<584x128xf32, #tpu.memory_space<vmem>>, vector<1x128xf32>
    %324 = vector.extract_strided_slice %323 {offsets = [0, 0], sizes = [1, 32], strides = [1, 1]} : vector<1x128xf32> to vector<1x32xf32>
    %325 = vector.extract_strided_slice %323 {offsets = [0, 32], sizes = [1, 32], strides = [1, 1]} : vector<1x128xf32> to vector<1x32xf32>
    %cst_92 = arith.constant dense<0.000000e+00> : vector<16xf32>
    %326 = vector.multi_reduction <add>, %322, %cst_92 [1] : vector<16x32xf32> to vector<16xf32>
    %327 = vector.shape_cast %326 : vector<16xf32> to vector<16x1xf32>
    %cst_93 = arith.constant 3.200000e+01 : f32
    %328 = vector.broadcast %cst_93 : f32 to vector<16x1xf32>
    %329 = arith.divf %327, %328 : vector<16x1xf32>
    %330 = vector.broadcast %329 : vector<16x1xf32> to vector<16x32xf32>
    %331 = arith.subf %322, %330 : vector<16x32xf32>
    %332 = arith.mulf %331, %331 : vector<16x32xf32>
    %cst_94 = arith.constant dense<0.000000e+00> : vector<16xf32>
    %333 = vector.multi_reduction <add>, %332, %cst_94 [1] : vector<16x32xf32> to vector<16xf32>
    %334 = vector.shape_cast %333 : vector<16xf32> to vector<16x1xf32>
    %cst_95 = arith.constant 3.200000e+01 : f32
    %335 = vector.broadcast %cst_95 : f32 to vector<16x1xf32>
    %336 = arith.divf %334, %335 : vector<16x1xf32>
    %337 = vector.broadcast %329 : vector<16x1xf32> to vector<16x32xf32>
    %338 = arith.subf %322, %337 : vector<16x32xf32>
    %339 = vector.broadcast %324 : vector<1x32xf32> to vector<16x32xf32>
    %340 = arith.mulf %339, %338 : vector<16x32xf32>
    %cst_96 = arith.constant 9.99999974E-6 : f32
    %341 = vector.broadcast %cst_96 : f32 to vector<16x1xf32>
    %342 = arith.addf %336, %341 : vector<16x1xf32>
    %343 = math.rsqrt %342 : vector<16x1xf32>
    %344 = vector.broadcast %343 : vector<16x1xf32> to vector<16x32xf32>
    %345 = arith.mulf %340, %344 : vector<16x32xf32>
    %346 = vector.broadcast %325 : vector<1x32xf32> to vector<16x32xf32>
    %347 = arith.addf %345, %346 : vector<16x32xf32>
    %c80 = arith.constant 80 : index
    %c0_97 = arith.constant 0 : index
    %348 = vector.load %arg2[%c80, %c0_97] : memref<584x128xf32, #tpu.memory_space<vmem>>, vector<32x128xf32>
    %c112 = arith.constant 112 : index
    %c0_98 = arith.constant 0 : index
    %349 = vector.load %arg2[%c112, %c0_98] : memref<584x128xf32, #tpu.memory_space<vmem>>, vector<1x128xf32>
    %cst_99 = arith.constant dense<0.000000e+00> : vector<16x128xf32>
    %350 = tpu.matmul %347, %348, %cst_99 {dimension_numbers = #tpu.dot_dimension_numbers<[1], [0], [0], [1], [0, 0, 1, 1], [], []>} : vector<16x32xf32>, vector<32x128xf32>, vector<16x128xf32> -> vector<16x128xf32>
    %351 = vector.broadcast %349 : vector<1x128xf32> to vector<16x128xf32>
    %352 = arith.addf %350, %351 : vector<16x128xf32>
    %353 = tpu.iota {dimensions = array<i32: 1>} : vector<16x128xi32>
    %c64_i32 = arith.constant 64 : i32
    %354 = vector.broadcast %c64_i32 : i32 to vector<16x128xi32>
    %355 = arith.cmpi slt, %353, %354 : vector<16x128xi32>
    %cst_100 = arith.constant -1.000000e+30 : f32
    %356 = vector.broadcast %cst_100 : f32 to vector<16x128xf32>
    %357 = arith.select %355, %352, %356 : vector<16x128xi1>, vector<16x128xf32>
    %cst_101 = arith.constant dense<0xFF800000> : vector<16xf32>
    %358 = vector.multi_reduction <maximumf>, %357, %cst_101 [1] : vector<16x128xf32> to vector<16xf32>
    %359 = vector.shape_cast %358 : vector<16xf32> to vector<16x1xf32>
    %360 = vector.broadcast %359 : vector<16x1xf32> to vector<16x128xf32>
    %361 = arith.subf %357, %360 : vector<16x128xf32>
    %362 = math.exp %361 : vector<16x128xf32>
    %cst_102 = arith.constant dense<0.000000e+00> : vector<16xf32>
    %363 = vector.multi_reduction <add>, %362, %cst_102 [1] : vector<16x128xf32> to vector<16xf32>
    %364 = vector.shape_cast %363 : vector<16xf32> to vector<16x1xf32>
    %365 = math.log %364 : vector<16x1xf32>
    %366 = vector.broadcast %365 : vector<16x1xf32> to vector<16x128xf32>
    %367 = arith.subf %361, %366 : vector<16x128xf32>
    %c0_103 = arith.constant 0 : index
    %c0_104 = arith.constant 0 : index
    %368 = vector.load %arg3[%c0_103, %c0_104] : memref<16x128xf32, #tpu.memory_space<vmem>>, vector<16x128xf32>
    tpu.vector_store %arg3[%c0_103, %c0_104], %367 {strides = array<i32>} : memref<16x128xf32, #tpu.memory_space<vmem>>, vector<16x128xf32>,
    return
  }
}

</mosaic_0001>

<llo_original>
// kernel: tpu_custom_call.1
$region0: #{tpu_custom_call.1}
  #allocation0 [shape = 'u32[]', space=smem, size = 0x4, offset = 0x4, fixed_abs, tag = 'smem constant byte address 0x4 - core index']
  #allocation1 [shape = 'u32[144,128]{1,0:T(1,128)}', space=vmem, size = 0x12000, scoped, tag = 'internal scratch']
  %s0 = inlined_call_operand.vmem [shape: s32[16,1], index: 0, kind: input, shape index: {}]
  %s1 = inlined_call_operand.vmem [shape: f32[2,8,8], index: 1, kind: input, shape index: {}]
  %s2 = inlined_call_operand.hbm [shape: f32[584,128], index: 2, kind: input, shape index: {}]
  %s3 = inlined_call_operand.hbm [shape: f32[16,128], index: 3, kind: output, shape index: {}]
  %s4 = sld [smem:[#allocation0]]
  $region26: #{tpu_custom_call.1} parent=0
    _
  %s6 = ssub.s32 1, %s4
  %s7 = scalar_select 0, %s6, %s4
  $region1: #{tpu_custom_call.1} parent=0
    #allocation2 [shape = 'u8[299008]{0}', space=vmem, size = 0x49000, scoped, tag = 'input window, operand 2, single buffered']
    #allocation3 [shape = 's32[1]{0}', space=sflag, size = 0x4, scoped, tag = 'scoped memory for tpu_custom_call.1']
    #allocation4 [shape = 's32[1]{0}', space=sflag, size = 0x4, scoped, tag = 'scoped memory for tpu_custom_call.1']
    #allocation5 [shape = 'u8[8192]{0}', space=vmem, size = 0x2000, scoped, tag = 'output window, operand 0, single buffered']
    %8 = vsyncpa [#allocation3], 0
    %9 = vsyncpa [#allocation4], 0
    // Predicated region
    $region2: #{tpu_custom_call.1} parent=1 // pred_check
      _
    $region3: #{tpu_custom_call.1} parent=1 // pred_check_branch
      %11 = sbr.rel (0) target = $region5
    $region4: #{tpu_custom_call.1} parent=1 // pred_region
      _
    $region5: #{tpu_custom_call.1} parent=1 // pred_fallthru
      _
    // Predicated region
    $region6: #{tpu_custom_call.1} parent=1 // pred_check
      _
    $region7: #{tpu_custom_call.1} parent=1 // pred_check_branch
      %13 = sbr.rel (0) target = $region9
    $region8: #{tpu_custom_call.1} parent=1 // pred_region
      _
    $region9: #{tpu_custom_call.1} parent=1 // pred_fallthru
      _
    // Predicated region
    $region10: #{tpu_custom_call.1} parent=1 // pred_check
      _
    $region11: #{tpu_custom_call.1} parent=1 // pred_check_branch
      %15 = sbr.rel (0) target = $region13
    $region12: #{tpu_custom_call.1} parent=1 // pred_region
      %s17 = ssub.s32 9344, 9344
      %18 = vsyncadd [#allocation3], %s17
      %s19 = sshll.u32 [#allocation2], 4
      %s20 = int_to_ptr.vmem [resolvable:$true] %s19
      %25 = dma.hbm_to_vmem [thread:$0]  %s2, 9344, %s20, [#allocation3], 128, 128, 8
    $region13: #{tpu_custom_call.1} parent=1 // pred_fallthru
      _
    // Predicated region
    $region14: #{tpu_custom_call.1} parent=1 // pred_check
      _
    $region15: #{tpu_custom_call.1} parent=1 // pred_check_branch
      %27 = sbr.rel (0) target = $region17
    $region16: #{tpu_custom_call.1} parent=1 // pred_region
      %28 = dma.done [#allocation3], 9344
    $region17: #{tpu_custom_call.1} parent=1 // pred_fallthru
      _
    %v29 = vld [vmem:[%s0] sm:$0xff]
    %v30 = vld [vmem:[%s0 + $0x8] sm:$0xff]
    %v31 = vlaneseq
    %v32 = vand.u32 %v31, 127
    %33 = vset.pattern.permute.xlu0 0
    %34 = vperm.xlu0 %33, %v29
    %v35 = vpop.permute.xlu0 %34
    %36 = vset.pattern.permute.xlu0 0
    %37 = vperm.xlu0 %36, %v30
    %v38 = vpop.permute.xlu0 %37
    %vm39 = vcmp.eq.s32.totalorder %v35, %v32
    %vm40 = vcmp.eq.s32.totalorder %v38, %v32
    %v41 = vsel %vm39, 1, 0
    %v42 = vsel %vm40, 1, 0
    %v43 = vcvt.s32.f32 %v41
    %v44 = vcvt.s32.f32 %v42
    %v45 = vld [vmem:[#allocation2] sm:$0xff]
    %v46 = vld [vmem:[#allocation2 + $0x8] sm:$0xff]
    %v47 = vld [vmem:[#allocation2 + $0x10] sm:$0xff]
    %v48 = vld [vmem:[#allocation2 + $0x18] sm:$0xff]
    %v49 = vld [vmem:[#allocation2 + $0x20] sm:$0xff]
    %v50 = vld [vmem:[#allocation2 + $0x28] sm:$0xff]
    %v51 = vld [vmem:[#allocation2 + $0x30] sm:$0xff]
    %v52 = vld [vmem:[#allocation2 + $0x38] sm:$0xff]
    %v53 = vld [vmem:[#allocation2 + $0x40] sm:$0xff]
    %v54 = vld [vmem:[#allocation2 + $0x48] sm:$0xff]
    %vm55 = vcmask 523264
    %v57 = vsel %vm55, %v43, 0
    %v60 = vsel %vm55, %v44, 0
    %62 = vmatprep.subr.mxu0 0.0
    %63 = vmatpush1.msra.mxu0 %v45
    %64 = vmatprep.subr.mxu0 0.0
    %65 = vmatpush1.msra.mxu0 %v46
    %66 = vmatprep.subr.mxu0 0.0
    %67 = vmatpush1.msra.mxu0 %v47
    %68 = vmatprep.subr.mxu0 0.0
    %69 = vmatpush1.msra.mxu0 %v48
    %70 = vmatprep.subr.mxu0 0.0
    %71 = vmatpush1.msra.mxu0 %v49
    %72 = vmatprep.subr.mxu0 0.0
    %73 = vmatpush1.msra.mxu0 %v50
    %74 = vmatprep.subr.mxu0 0.0
    %75 = vmatpush1.msra.mxu0 %v51
    %76 = vmatprep.subr.mxu0 0.0
    %77 = vmatpush1.msra.mxu0 %v52
    %78 = vmatprep.subr.mxu0 0.0
    %79 = vmatpush1.msra.mxu0 0.0
    %80 = vmatprep.subr.mxu0 0.0
    %81 = vmatpush1.msra.mxu0 0.0
    %82 = vmatprep.subr.mxu0 0.0
    %83 = vmatpush1.msra.mxu0 0.0
    %84 = vmatprep.subr.mxu0 0.0
    %85 = vmatpush1.msra.mxu0 0.0
    %86 = vmatprep.subr.mxu0 0.0
    %87 = vmatpush1.msra.mxu0 0.0
    %88 = vmatprep.subr.mxu0 0.0
    %89 = vmatpush1.msra.mxu0 0.0
    %90 = vmatprep.subr.mxu0 0.0
    %91 = vmatpush1.msra.mxu0 0.0
    %92 = vmatprep.subr.mxu0 0.0
    %93 = vmatpush1.msra.mxu0 0.0
    %94 = vmatprep.subr.mxu0 0.0
    %95 = vmatpush1.msra.mxu0 0.0
    %96 = vmatprep.subr.mxu0 0.0
    %97 = vmatpush1.msra.mxu0 0.0
    %98 = vmatprep.subr.mxu0 0.0
    %99 = vmatpush1.msra.mxu0 0.0
    %100 = vmatprep.subr.mxu0 0.0
    %101 = vmatpush1.msra.mxu0 0.0
    %102 = vmatprep.subr.mxu0 0.0
    %103 = vmatpush1.msra.mxu0 0.0
    %104 = vmatprep.subr.mxu0 0.0
    %105 = vmatpush1.msra.mxu0 0.0
    %106 = vmatprep.subr.mxu0 0.0
    %107 = vmatpush1.msra.mxu0 0.0
    %108 = vmatprep.subr.mxu0 0.0
    %109 = vmatpush1.msra.mxu0 0.0
    %110 = vmatprep.subr.mxu0 0.0
    %111 = vmatpush1.msra.mxu0 0.0
    %112 = vmatprep.subr.mxu0 0.0
    %113 = vmatpush1.msra.mxu0 0.0
    %114 = vmatprep.subr.mxu0 0.0
    %115 = vmatpush1.msra.mxu0 0.0
    %116 = vmatprep.subr.mxu0 0.0
    %117 = vmatpush1.msra.mxu0 0.0
    %118 = vmatprep.subr.mxu0 0.0
    %119 = vmatpush1.msra.mxu0 0.0
    %120 = vmatprep.subr.mxu0 0.0
    %121 = vmatpush1.msra.mxu0 0.0
    %122 = vmatprep.subr.mxu0 0.0
    %123 = vmatpush1.msra.mxu0 0.0
    %124 = vmatprep.subr.mxu0 0.0
    %125 = vmatpush1.msra.mxu0 0.0
    %126 = vmatprep.mubr.f32.mxu0 0.0
    %127 = vmatmul.mubr.f32.gmra.mrb[0].mxu0 %v57
    %v128 = vpop.f32.mrb[0].mxu0
    %v129 = vadd.f32 %v53, %v128
    %v130 = vpop.f32.mrb[0].mxu0
    %131 = vmatprep.mubr.f32.mxu0 0.0
    %132 = vmatmul.mubr.f32.gmra.mrb[0].mxu0 %v60
    %v133 = vpop.f32.mrb[0].mxu0
    %v134 = vadd.f32 %v54, %v133
    %v135 = vpop.f32.mrb[0].mxu0
    %136 = vdwg.mxu0
    %v137 = vld [vmem:[%s1] sm:$0xff]
    %v138 = vld [vmem:[%s1 + $0x8] sm:$0xff]
    %v139 = vld [vmem:[#allocation2 + $0x78] sm:$0xff]
    %v140 = vld [vmem:[#allocation2 + $0x80] sm:$0xff]
    %v141 = vld [vmem:[#allocation2 + $0x88] sm:$0xff]
    %v142 = vld [vmem:[#allocation2 + $0x90] sm:$0xff]
    %v143 = vld [vmem:[#allocation2 + $0xb8] sm:$0xff]
    %v144 = vld [vmem:[#allocation2 + $0xc0] sm:$0xff]
    %v145 = vld [vmem:[#allocation2 + $0xc8] sm:$0xff]
    %v146 = vld [vmem:[#allocation2 + $0xd0] sm:$0xff]
    %v147 = vld [vmem:[#allocation2 + $0xd8] sm:$0xff]
    %v148 = vld [vmem:[#allocation2 + $0xe0] sm:$0xff]
    %v149 = vld [vmem:[#allocation2 + $0xe8] sm:$0xff]
    %v150 = vld [vmem:[#allocation2 + $0xf0] sm:$0xff]
    %v151 = vld [vmem:[#allocation2 + $0xf8] sm:$0xff]
    %v152 = vld [vmem:[#allocation2 + $0x100] sm:$0xff]
    %v153 = vld [vmem:[#allocation2 + $0x108] sm:$0xff]
    %v154 = vld [vmem:[#allocation2 + $0x110] sm:$0xff]
    %v155 = vld [vmem:[#allocation2 + $0x118] sm:$0xff]
    %v156 = vld [vmem:[#allocation2 + $0x120] sm:$0xff]
    %v157 = vld [vmem:[#allocation2 + $0x128] sm:$0xff]
    %v158 = vld [vmem:[#allocation2 + $0x130] sm:$0xff]
    %v159 = vld [vmem:[#allocation2 + $0x138] sm:$0xff]
    %v160 = vld [vmem:[#allocation2 + $0x140] sm:$0xff]
    %v161 = vld [vmem:[#allocation2 + $0x148] sm:$0xff]
    %v162 = vld [vmem:[#allocation2 + $0x150] sm:$0xff]
    %v163 = vld [vmem:[#allocation2 + $0x158] sm:$0xf]
    %vm164 = vcmask 261120
    %v165 = vsel %vm164, %v129, 0.0
    %166 = vadd.xlane.f32.xlu0 %v165
    %v167 = vpop.xlane.xlu0 %166
    %v168 = vsel %vm164, %v134, 0.0
    %169 = vadd.xlane.f32.xlu0 %v168
    %v170 = vpop.xlane.xlu0 %169
    %v171 = vrcp.pop 32.0
    %v172 = vmul.f32 %v167, %v171
    %v173 = vmul.f32 %v170, %v171
    %v174 = vsub.f32 %v129, %v172
    %v175 = vsub.f32 %v134, %v173
    %v176 = vmul.f32 %v174, %v174
    %v177 = vmul.f32 %v175, %v175
    %v178 = vsel %vm164, %v176, 0.0
    %179 = vadd.xlane.f32.xlu0 %v178
    %v180 = vpop.xlane.xlu0 %179
    %v181 = vsel %vm164, %v177, 0.0
    %182 = vadd.xlane.f32.xlu0 %v181
    %v183 = vpop.xlane.xlu0 %182
    %v184 = vmul.f32 %v180, %v171
    %v185 = vmul.f32 %v183, %v171
    %v186 = vlaneseq
    %v187 = vshrl.u32 %v186, 7
    %v188 = vsub.s32 3, %v187
    %v189 = vrot.slane %v163, %v188
    %v190 = vmul.f32 %v189, %v174
    %v191 = vmul.f32 %v189, %v175
    %v192 = vadd.f32 %v184, 1e-05
    %v193 = vadd.f32 %v185, 1e-05
    %v194 = vrsqrt.pop %v192
    %v195 = vrsqrt.pop %v193
    %v196 = vmul.f32 %v190, %v194
    %v197 = vmul.f32 %v191, %v195
    %199 = vrot.lane.b32.xlu0 %v189, 96
    %v200 = vpop.permute.xlu0 %199
    %v202 = vadd.f32 %v196, %v200
    %v203 = vadd.f32 %v197, %v200
    %v204 = vlaneseq
    %v205 = vshrl.u32 %v204, 7
    %v206 = vsub.s32 0, %v205
    %v207 = vrot.slane %v163, %v206
    %v209 = vsel %vm164, %v202, 0
    %v212 = vsel %vm164, %v203, 0
    %214 = vmatprep.subr.mxu0 0.0
    %215 = vmatpush1.msra.mxu0 %v139
    %216 = vmatprep.subr.mxu0 0.0
    %217 = vmatpush1.msra.mxu0 %v140
    %218 = vmatprep.subr.mxu0 0.0
    %219 = vmatpush1.msra.mxu0 %v141
    %220 = vmatprep.subr.mxu0 0.0
    %221 = vmatpush1.msra.mxu0 %v142
    %222 = vmatprep.subr.mxu0 0.0
    %223 = vmatpush1.msra.mxu0 0.0
    %224 = vmatprep.subr.mxu0 0.0
    %225 = vmatpush1.msra.mxu0 0.0
    %226 = vmatprep.subr.mxu0 0.0
    %227 = vmatpush1.msra.mxu0 0.0
    %228 = vmatprep.subr.mxu0 0.0
    %229 = vmatpush1.msra.mxu0 0.0
    %230 = vmatprep.subr.mxu0 0.0
    %231 = vmatpush1.msra.mxu0 0.0
    %232 = vmatprep.subr.mxu0 0.0
    %233 = vmatpush1.msra.mxu0 0.0
    %234 = vmatprep.subr.mxu0 0.0
    %235 = vmatpush1.msra.mxu0 0.0
    %236 = vmatprep.subr.mxu0 0.0
    %237 = vmatpush1.msra.mxu0 0.0
    %238 = vmatprep.subr.mxu0 0.0
    %239 = vmatpush1.msra.mxu0 0.0
    %240 = vmatprep.subr.mxu0 0.0
    %241 = vmatpush1.msra.mxu0 0.0
    %242 = vmatprep.subr.mxu0 0.0
    %243 = vmatpush1.msra.mxu0 0.0
    %244 = vmatprep.subr.mxu0 0.0
    %245 = vmatpush1.msra.mxu0 0.0
    %246 = vmatprep.subr.mxu0 0.0
    %247 = vmatpush1.msra.mxu0 0.0
    %248 = vmatprep.subr.mxu0 0.0
    %249 = vmatpush1.msra.mxu0 0.0
    %250 = vmatprep.subr.mxu0 0.0
    %251 = vmatpush1.msra.mxu0 0.0
    %252 = vmatprep.subr.mxu0 0.0
    %253 = vmatpush1.msra.mxu0 0.0
    %254 = vmatprep.subr.mxu0 0.0
    %255 = vmatpush1.msra.mxu0 0.0
    %256 = vmatprep.subr.mxu0 0.0
    %257 = vmatpush1.msra.mxu0 0.0
    %258 = vmatprep.subr.mxu0 0.0
    %259 = vmatpush1.msra.mxu0 0.0
    %260 = vmatprep.subr.mxu0 0.0
    %261 = vmatpush1.msra.mxu0 0.0
    %262 = vmatprep.subr.mxu0 0.0
    %263 = vmatpush1.msra.mxu0 0.0
    %264 = vmatprep.subr.mxu0 0.0
    %265 = vmatpush1.msra.mxu0 0.0
    %266 = vmatprep.subr.mxu0 0.0
    %267 = vmatpush1.msra.mxu0 0.0
    %268 = vmatprep.subr.mxu0 0.0
    %269 = vmatpush1.msra.mxu0 0.0
    %270 = vmatprep.subr.mxu0 0.0
    %271 = vmatpush1.msra.mxu0 0.0
    %272 = vmatprep.subr.mxu0 0.0
    %273 = vmatpush1.msra.mxu0 0.0
    %274 = vmatprep.subr.mxu0 0.0
    %275 = vmatpush1.msra.mxu0 0.0
    %276 = vmatprep.subr.mxu0 0.0
    %277 = vmatpush1.msra.mxu0 0.0
    %278 = vmatprep.mubr.f32.mxu0 0.0
    %279 = vmatmul.mubr.f32.gmra.mrb[0].mxu0 %v209
    %v280 = vpop.f32.mrb[0].mxu0
    %v281 = vadd.f32 %v207, %v280
    %v282 = vpop.f32.mrb[0].mxu0
    %283 = vmatprep.mubr.f32.mxu0 0.0
    %284 = vmatmul.mubr.f32.gmra.mrb[0].mxu0 %v212
    %v285 = vpop.f32.mrb[0].mxu0
    %v286 = vadd.f32 %v207, %v285
    %v287 = vpop.f32.mrb[0].mxu0
    %288 = vdwg.mxu0
    %290 = vrot.lane.b32.xlu0 %v281, 96
    %v291 = vpop.permute.xlu0 %290
    %vm292 = vcmask 64512
    %v293 = vsel %vm292, %v281, 0
    %v295 = vsel %vm292, %v291, 0
    %297 = vmatprep.subr.mxu0 0.0
    %298 = vmatpush1.xpose.msra.mxu0 %v295
    %299 = vmatprep.subr.mxu0 0.0
    %300 = vmatpush1.xpose.msra.mxu0 0.0
    %301 = vmatprep.subr.mxu0 0.0
    %302 = vmatpush1.xpose.msra.mxu0 0.0
    %303 = vmatprep.subr.mxu0 0.0
    %304 = vmatpush1.xpose.msra.mxu0 0.0
    %305 = vmatprep.subr.mxu0 0.0
    %306 = vmatpush1.xpose.msra.mxu0 0.0
    %307 = vmatprep.subr.mxu0 0.0
    %308 = vmatpush1.xpose.msra.mxu0 0.0
    %309 = vmatprep.subr.mxu0 0.0
    %310 = vmatpush1.xpose.msra.mxu0 0.0
    %311 = vmatprep.subr.mxu0 0.0
    %312 = vmatpush1.xpose.msra.mxu0 0.0
    %313 = vmatprep.subr.mxu0 0.0
    %314 = vmatpush1.xpose.msra.mxu0 0.0
    %315 = vmatprep.subr.mxu0 0.0
    %316 = vmatpush1.xpose.msra.mxu0 0.0
    %317 = vmatprep.subr.mxu0 0.0
    %318 = vmatpush1.xpose.msra.mxu0 0.0
    %319 = vmatprep.subr.mxu0 0.0
    %320 = vmatpush1.xpose.msra.mxu0 0.0
    %321 = vmatprep.subr.mxu0 0.0
    %322 = vmatpush1.xpose.msra.mxu0 0.0
    %323 = vmatprep.subr.mxu0 0.0
    %324 = vmatpush1.xpose.msra.mxu0 0.0
    %325 = vmatprep.subr.mxu0 0.0
    %326 = vmatpush1.xpose.msra.mxu0 0.0
    %327 = vmatprep.subr.mxu0 0.0
    %328 = vmatpush1.xpose.msra.mxu0 0.0
    %329 = vmatprep.subr.mxu0 0.0
    %330 = vmatpush1.xpose.msra.mxu0 0.0
    %331 = vmatprep.subr.mxu0 0.0
    %332 = vmatpush1.xpose.msra.mxu0 0.0
    %333 = vmatprep.subr.mxu0 0.0
    %334 = vmatpush1.xpose.msra.mxu0 0.0
    %335 = vmatprep.subr.mxu0 0.0
    %336 = vmatpush1.xpose.msra.mxu0 0.0
    %337 = vmatprep.subr.mxu0 0.0
    %338 = vmatpush1.xpose.msra.mxu0 0.0
    %339 = vmatprep.subr.mxu0 0.0
    %340 = vmatpush1.xpose.msra.mxu0 0.0
    %341 = vmatprep.subr.mxu0 0.0
    %342 = vmatpush1.xpose.msra.mxu0 0.0
    %343 = vmatprep.subr.mxu0 0.0
    %344 = vmatpush1.xpose.msra.mxu0 0.0
    %345 = vmatprep.subr.mxu0 0.0
    %346 = vmatpush1.xpose.msra.mxu0 0.0
    %347 = vmatprep.subr.mxu0 0.0
    %348 = vmatpush1.xpose.msra.mxu0 0.0
    %349 = vmatprep.subr.mxu0 0.0
    %350 = vmatpush1.xpose.msra.mxu0 0.0
    %351 = vmatprep.subr.mxu0 0.0
    %352 = vmatpush1.xpose.msra.mxu0 0.0
    %353 = vmatprep.subr.mxu0 0.0
    %354 = vmatpush1.xpose.msra.mxu0 0.0
    %355 = vmatprep.subr.mxu0 0.0
    %356 = vmatpush1.xpose.msra.mxu0 0.0
    %357 = vmatprep.subr.mxu0 0.0
    %358 = vmatpush1.xpose.msra.mxu0 0.0
    %359 = vmatprep.subr.mxu0 0.0
    %360 = vmatpush1.xpose.msra.mxu0 0.0
    %361 = vmatprep.mubr.f32.mxu0 0.0
    %362 = vmatmul.mubr.f32.gmra.mrb[0].mxu0 %v293
    %v363 = vpop.f32.mrb[0].mxu0
    %v364 = vadd.f32 %v137, %v363
    %v365 = vpop.f32.mrb[0].mxu0
    %366 = vdwg.mxu0
    %368 = vrot.lane.b32.xlu0 %v286, 96
    %v369 = vpop.permute.xlu0 %368
    %v370 = vsel %vm292, %v286, 0
    %v372 = vsel %vm292, %v369, 0
    %374 = vmatprep.subr.mxu0 0.0
    %375 = vmatpush1.xpose.msra.mxu0 %v372
    %376 = vmatprep.subr.mxu0 0.0
    %377 = vmatpush1.xpose.msra.mxu0 0.0
    %378 = vmatprep.subr.mxu0 0.0
    %379 = vmatpush1.xpose.msra.mxu0 0.0
    %380 = vmatprep.subr.mxu0 0.0
    %381 = vmatpush1.xpose.msra.mxu0 0.0
    %382 = vmatprep.subr.mxu0 0.0
    %383 = vmatpush1.xpose.msra.mxu0 0.0
    %384 = vmatprep.subr.mxu0 0.0
    %385 = vmatpush1.xpose.msra.mxu0 0.0
    %386 = vmatprep.subr.mxu0 0.0
    %387 = vmatpush1.xpose.msra.mxu0 0.0
    %388 = vmatprep.subr.mxu0 0.0
    %389 = vmatpush1.xpose.msra.mxu0 0.0
    %390 = vmatprep.subr.mxu0 0.0
    %391 = vmatpush1.xpose.msra.mxu0 0.0
    %392 = vmatprep.subr.mxu0 0.0
    %393 = vmatpush1.xpose.msra.mxu0 0.0
    %394 = vmatprep.subr.mxu0 0.0
    %395 = vmatpush1.xpose.msra.mxu0 0.0
    %396 = vmatprep.subr.mxu0 0.0
    %397 = vmatpush1.xpose.msra.mxu0 0.0
    %398 = vmatprep.subr.mxu0 0.0
    %399 = vmatpush1.xpose.msra.mxu0 0.0
    %400 = vmatprep.subr.mxu0 0.0
    %401 = vmatpush1.xpose.msra.mxu0 0.0
    %402 = vmatprep.subr.mxu0 0.0
    %403 = vmatpush1.xpose.msra.mxu0 0.0
    %404 = vmatprep.subr.mxu0 0.0
    %405 = vmatpush1.xpose.msra.mxu0 0.0
    %406 = vmatprep.subr.mxu0 0.0
    %407 = vmatpush1.xpose.msra.mxu0 0.0
    %408 = vmatprep.subr.mxu0 0.0
    %409 = vmatpush1.xpose.msra.mxu0 0.0
    %410 = vmatprep.subr.mxu0 0.0
    %411 = vmatpush1.xpose.msra.mxu0 0.0
    %412 = vmatprep.subr.mxu0 0.0
    %413 = vmatpush1.xpose.msra.mxu0 0.0
    %414 = vmatprep.subr.mxu0 0.0
    %415 = vmatpush1.xpose.msra.mxu0 0.0
    %416 = vmatprep.subr.mxu0 0.0
    %417 = vmatpush1.xpose.msra.mxu0 0.0
    %418 = vmatprep.subr.mxu0 0.0
    %419 = vmatpush1.xpose.msra.mxu0 0.0
    %420 = vmatprep.subr.mxu0 0.0
    %421 = vmatpush1.xpose.msra.mxu0 0.0
    %422 = vmatprep.subr.mxu0 0.0
    %423 = vmatpush1.xpose.msra.mxu0 0.0
    %424 = vmatprep.subr.mxu0 0.0
    %425 = vmatpush1.xpose.msra.mxu0 0.0
    %426 = vmatprep.subr.mxu0 0.0
    %427 = vmatpush1.xpose.msra.mxu0 0.0
    %428 = vmatprep.subr.mxu0 0.0
    %429 = vmatpush1.xpose.msra.mxu0 0.0
    %430 = vmatprep.subr.mxu0 0.0
    %431 = vmatpush1.xpose.msra.mxu0 0.0
    %432 = vmatprep.subr.mxu0 0.0
    %433 = vmatpush1.xpose.msra.mxu0 0.0
    %434 = vmatprep.subr.mxu0 0.0
    %435 = vmatpush1.xpose.msra.mxu0 0.0
    %436 = vmatprep.subr.mxu0 0.0
    %437 = vmatpush1.xpose.msra.mxu0 0.0
    %438 = vmatprep.mubr.f32.mxu0 0.0
    %439 = vmatmul.mubr.f32.gmra.mrb[0].mxu0 %v370
    %v440 = vpop.f32.mrb[0].mxu0
    %v441 = vadd.f32 %v138, %v440
    %v442 = vpop.f32.mrb[0].mxu0
    %443 = vdwg.mxu0
    %v444 = vsel %vm292, %v364, -inf
    %445 = vmax.xlane.f32.xlu0 %v444
    %v446 = vpop.xlane.xlu0 %445
    %v447 = vsel %vm292, %v441, -inf
    %448 = vmax.xlane.f32.xlu0 %v447
    %v449 = vpop.xlane.xlu0 %448
    %v450 = vsub.f32 %v364, %v446
    %v451 = vsub.f32 %v441, %v449
    %v452 = vmul.f32 %v450, 1.442695
    %v453 = vpow.pop %v452
    %v454 = vmul.f32 %v451, 1.442695
    %v455 = vpow.pop %v454
    %v456 = vsel %vm292, %v453, 0.0
    %457 = vadd.xlane.f32.xlu0 %v456
    %v458 = vpop.xlane.xlu0 %457
    %v459 = vsel %vm292, %v455, 0.0
    %460 = vadd.xlane.f32.xlu0 %v459
    %v461 = vpop.xlane.xlu0 %460
    %v462 = vrcp.pop %v458
    %v463 = vrcp.pop %v461
    %v464 = vmul.f32 %v453, %v462
    %v465 = vmul.f32 %v455, %v463
    %466 = vrot.lane.b32.xlu0 %v281, 64
    %v467 = vpop.permute.xlu0 %466
    %v470 = vsel %vm292, %v464, 0
    %472 = vmatprep.subr.mxu0 0.0
    %473 = vmatpush1.msra.mxu0 %v467
    %474 = vmatprep.subr.mxu0 0.0
    %475 = vmatpush1.msra.mxu0 0.0
    %476 = vmatprep.subr.mxu0 0.0
    %477 = vmatpush1.msra.mxu0 0.0
    %478 = vmatprep.subr.mxu0 0.0
    %479 = vmatpush1.msra.mxu0 0.0
    %480 = vmatprep.subr.mxu0 0.0
    %481 = vmatpush1.msra.mxu0 0.0
    %482 = vmatprep.subr.mxu0 0.0
    %483 = vmatpush1.msra.mxu0 0.0
    %484 = vmatprep.subr.mxu0 0.0
    %485 = vmatpush1.msra.mxu0 0.0
    %486 = vmatprep.subr.mxu0 0.0
    %487 = vmatpush1.msra.mxu0 0.0
    %488 = vmatprep.subr.mxu0 0.0
    %489 = vmatpush1.msra.mxu0 0.0
    %490 = vmatprep.subr.mxu0 0.0
    %491 = vmatpush1.msra.mxu0 0.0
    %492 = vmatprep.subr.mxu0 0.0
    %493 = vmatpush1.msra.mxu0 0.0
    %494 = vmatprep.subr.mxu0 0.0
    %495 = vmatpush1.msra.mxu0 0.0
    %496 = vmatprep.subr.mxu0 0.0
    %497 = vmatpush1.msra.mxu0 0.0
    %498 = vmatprep.subr.mxu0 0.0
    %499 = vmatpush1.msra.mxu0 0.0
    %500 = vmatprep.subr.mxu0 0.0
    %501 = vmatpush1.msra.mxu0 0.0
    %502 = vmatprep.subr.mxu0 0.0
    %503 = vmatpush1.msra.mxu0 0.0
    %504 = vmatprep.subr.mxu0 0.0
    %505 = vmatpush1.msra.mxu0 0.0
    %506 = vmatprep.subr.mxu0 0.0
    %507 = vmatpush1.msra.mxu0 0.0
    %508 = vmatprep.subr.mxu0 0.0
    %509 = vmatpush1.msra.mxu0 0.0
    %510 = vmatprep.subr.mxu0 0.0
    %511 = vmatpush1.msra.mxu0 0.0
    %512 = vmatprep.subr.mxu0 0.0
    %513 = vmatpush1.msra.mxu0 0.0
    %514 = vmatprep.subr.mxu0 0.0
    %515 = vmatpush1.msra.mxu0 0.0
    %516 = vmatprep.subr.mxu0 0.0
    %517 = vmatpush1.msra.mxu0 0.0
    %518 = vmatprep.subr.mxu0 0.0
    %519 = vmatpush1.msra.mxu0 0.0
    %520 = vmatprep.subr.mxu0 0.0
    %521 = vmatpush1.msra.mxu0 0.0
    %522 = vmatprep.subr.mxu0 0.0
    %523 = vmatpush1.msra.mxu0 0.0
    %524 = vmatprep.subr.mxu0 0.0
    %525 = vmatpush1.msra.mxu0 0.0
    %526 = vmatprep.subr.mxu0 0.0
    %527 = vmatpush1.msra.mxu0 0.0
    %528 = vmatprep.subr.mxu0 0.0
    %529 = vmatpush1.msra.mxu0 0.0
    %530 = vmatprep.subr.mxu0 0.0
    %531 = vmatpush1.msra.mxu0 0.0
    %532 = vmatprep.subr.mxu0 0.0
    %533 = vmatpush1.msra.mxu0 0.0
    %534 = vmatprep.subr.mxu0 0.0
    %535 = vmatpush1.msra.mxu0 0.0
    %536 = vmatprep.mubr.f32.mxu0 0.0
    %537 = vmatmul.mubr.f32.gmra.mrb[0].mxu0 %v470
    %v538 = vpop.f32.mrb[0].mxu0
    %v539 = vadd.f32 0.0, %v538
    %v540 = vpop.f32.mrb[0].mxu0
    %541 = vdwg.mxu0
    %542 = vrot.lane.b32.xlu0 %v286, 64
    %v543 = vpop.permute.xlu0 %542
    %v546 = vsel %vm292, %v465, 0
    %548 = vmatprep.subr.mxu0 0.0
    %549 = vmatpush1.msra.mxu0 %v543
    %550 = vmatprep.subr.mxu0 0.0
    %551 = vmatpush1.msra.mxu0 0.0
    %552 = vmatprep.subr.mxu0 0.0
    %553 = vmatpush1.msra.mxu0 0.0
    %554 = vmatprep.subr.mxu0 0.0
    %555 = vmatpush1.msra.mxu0 0.0
    %556 = vmatprep.subr.mxu0 0.0
    %557 = vmatpush1.msra.mxu0 0.0
    %558 = vmatprep.subr.mxu0 0.0
    %559 = vmatpush1.msra.mxu0 0.0
    %560 = vmatprep.subr.mxu0 0.0
    %561 = vmatpush1.msra.mxu0 0.0
    %562 = vmatprep.subr.mxu0 0.0
    %563 = vmatpush1.msra.mxu0 0.0
    %564 = vmatprep.subr.mxu0 0.0
    %565 = vmatpush1.msra.mxu0 0.0
    %566 = vmatprep.subr.mxu0 0.0
    %567 = vmatpush1.msra.mxu0 0.0
    %568 = vmatprep.subr.mxu0 0.0
    %569 = vmatpush1.msra.mxu0 0.0
    %570 = vmatprep.subr.mxu0 0.0
    %571 = vmatpush1.msra.mxu0 0.0
    %572 = vmatprep.subr.mxu0 0.0
    %573 = vmatpush1.msra.mxu0 0.0
    %574 = vmatprep.subr.mxu0 0.0
    %575 = vmatpush1.msra.mxu0 0.0
    %576 = vmatprep.subr.mxu0 0.0
    %577 = vmatpush1.msra.mxu0 0.0
    %578 = vmatprep.subr.mxu0 0.0
    %579 = vmatpush1.msra.mxu0 0.0
    %580 = vmatprep.subr.mxu0 0.0
    %581 = vmatpush1.msra.mxu0 0.0
    %582 = vmatprep.subr.mxu0 0.0
    %583 = vmatpush1.msra.mxu0 0.0
    %584 = vmatprep.subr.mxu0 0.0
    %585 = vmatpush1.msra.mxu0 0.0
    %586 = vmatprep.subr.mxu0 0.0
    %587 = vmatpush1.msra.mxu0 0.0
    %588 = vmatprep.subr.mxu0 0.0
    %589 = vmatpush1.msra.mxu0 0.0
    %590 = vmatprep.subr.mxu0 0.0
    %591 = vmatpush1.msra.mxu0 0.0
    %592 = vmatprep.subr.mxu0 0.0
    %593 = vmatpush1.msra.mxu0 0.0
    %594 = vmatprep.subr.mxu0 0.0
    %595 = vmatpush1.msra.mxu0 0.0
    %596 = vmatprep.subr.mxu0 0.0
    %597 = vmatpush1.msra.mxu0 0.0
    %598 = vmatprep.subr.mxu0 0.0
    %599 = vmatpush1.msra.mxu0 0.0
    %600 = vmatprep.subr.mxu0 0.0
    %601 = vmatpush1.msra.mxu0 0.0
    %602 = vmatprep.subr.mxu0 0.0
    %603 = vmatpush1.msra.mxu0 0.0
    %604 = vmatprep.subr.mxu0 0.0
    %605 = vmatpush1.msra.mxu0 0.0
    %606 = vmatprep.subr.mxu0 0.0
    %607 = vmatpush1.msra.mxu0 0.0
    %608 = vmatprep.subr.mxu0 0.0
    %609 = vmatpush1.msra.mxu0 0.0
    %610 = vmatprep.subr.mxu0 0.0
    %611 = vmatpush1.msra.mxu0 0.0
    %612 = vmatprep.mubr.f32.mxu0 0.0
    %613 = vmatmul.mubr.f32.gmra.mrb[0].mxu0 %v546
    %v614 = vpop.f32.mrb[0].mxu0
    %v615 = vadd.f32 0.0, %v614
    %v616 = vpop.f32.mrb[0].mxu0
    %617 = vdwg.mxu0
    %v618 = vld [vmem:[#allocation2 + $0x98] sm:$0xff]
    %619 = vrot.lane.b32.xlu0 %v281, 120
    %v620 = vpop.permute.xlu0 %619
    %621 = vrot.lane.b32.xlu0 %v281, 88
    %v622 = vpop.permute.xlu0 %621
    %v623 = vsel %vm292, %v620, 0
    %v625 = vsel %vm292, %v622, 0
    %627 = vmatprep.subr.mxu0 0.0
    %628 = vmatpush1.xpose.msra.mxu0 %v625
    %629 = vmatprep.subr.mxu0 0.0
    %630 = vmatpush1.xpose.msra.mxu0 0.0
    %631 = vmatprep.subr.mxu0 0.0
    %632 = vmatpush1.xpose.msra.mxu0 0.0
    %633 = vmatprep.subr.mxu0 0.0
    %634 = vmatpush1.xpose.msra.mxu0 0.0
    %635 = vmatprep.subr.mxu0 0.0
    %636 = vmatpush1.xpose.msra.mxu0 0.0
    %637 = vmatprep.subr.mxu0 0.0
    %638 = vmatpush1.xpose.msra.mxu0 0.0
    %639 = vmatprep.subr.mxu0 0.0
    %640 = vmatpush1.xpose.msra.mxu0 0.0
    %641 = vmatprep.subr.mxu0 0.0
    %642 = vmatpush1.xpose.msra.mxu0 0.0
    %643 = vmatprep.subr.mxu0 0.0
    %644 = vmatpush1.xpose.msra.mxu0 0.0
    %645 = vmatprep.subr.mxu0 0.0
    %646 = vmatpush1.xpose.msra.mxu0 0.0
    %647 = vmatprep.subr.mxu0 0.0
    %648 = vmatpush1.xpose.msra.mxu0 0.0
    %649 = vmatprep.subr.mxu0 0.0
    %650 = vmatpush1.xpose.msra.mxu0 0.0
    %651 = vmatprep.subr.mxu0 0.0
    %652 = vmatpush1.xpose.msra.mxu0 0.0
    %653 = vmatprep.subr.mxu0 0.0
    %654 = vmatpush1.xpose.msra.mxu0 0.0
    %655 = vmatprep.subr.mxu0 0.0
    %656 = vmatpush1.xpose.msra.mxu0 0.0
    %657 = vmatprep.subr.mxu0 0.0
    %658 = vmatpush1.xpose.msra.mxu0 0.0
    %659 = vmatprep.subr.mxu0 0.0
    %660 = vmatpush1.xpose.msra.mxu0 0.0
    %661 = vmatprep.subr.mxu0 0.0
    %662 = vmatpush1.xpose.msra.mxu0 0.0
    %663 = vmatprep.subr.mxu0 0.0
    %664 = vmatpush1.xpose.msra.mxu0 0.0
    %665 = vmatprep.subr.mxu0 0.0
    %666 = vmatpush1.xpose.msra.mxu0 0.0
    %667 = vmatprep.subr.mxu0 0.0
    %668 = vmatpush1.xpose.msra.mxu0 0.0
    %669 = vmatprep.subr.mxu0 0.0
    %670 = vmatpush1.xpose.msra.mxu0 0.0
    %671 = vmatprep.subr.mxu0 0.0
    %672 = vmatpush1.xpose.msra.mxu0 0.0
    %673 = vmatprep.subr.mxu0 0.0
    %674 = vmatpush1.xpose.msra.mxu0 0.0
    %675 = vmatprep.subr.mxu0 0.0
    %676 = vmatpush1.xpose.msra.mxu0 0.0
    %677 = vmatprep.subr.mxu0 0.0
    %678 = vmatpush1.xpose.msra.mxu0 0.0
    %679 = vmatprep.subr.mxu0 0.0
    %680 = vmatpush1.xpose.msra.mxu0 0.0
    %681 = vmatprep.subr.mxu0 0.0
    %682 = vmatpush1.xpose.msra.mxu0 0.0
    %683 = vmatprep.subr.mxu0 0.0
    %684 = vmatpush1.xpose.msra.mxu0 0.0
    %685 = vmatprep.subr.mxu0 0.0
    %686 = vmatpush1.xpose.msra.mxu0 0.0
    %687 = vmatprep.subr.mxu0 0.0
    %688 = vmatpush1.xpose.msra.mxu0 0.0
    %689 = vmatprep.subr.mxu0 0.0
    %690 = vmatpush1.xpose.msra.mxu0 0.0
    %691 = vmatprep.mubr.f32.mxu0 0.0
    %692 = vmatmul.mubr.f32.gmra.mrb[0].mxu0 %v623
    %v693 = vpop.f32.mrb[0].mxu0
    %v694 = vadd.f32 %v137, %v693
    %v695 = vpop.f32.mrb[0].mxu0
    %696 = vdwg.mxu0
    %697 = vrot.lane.b32.xlu0 %v286, 120
    %v698 = vpop.permute.xlu0 %697
    %699 = vrot.lane.b32.xlu0 %v286, 88
    %v700 = vpop.permute.xlu0 %699
    %v701 = vsel %vm292, %v698, 0
    %v703 = vsel %vm292, %v700, 0
    %705 = vmatprep.subr.mxu0 0.0
    %706 = vmatpush1.xpose.msra.mxu0 %v703
    %707 = vmatprep.subr.mxu0 0.0
    %708 = vmatpush1.xpose.msra.mxu0 0.0
    %709 = vmatprep.subr.mxu0 0.0
    %710 = vmatpush1.xpose.msra.mxu0 0.0
    %711 = vmatprep.subr.mxu0 0.0
    %712 = vmatpush1.xpose.msra.mxu0 0.0
    %713 = vmatprep.subr.mxu0 0.0
    %714 = vmatpush1.xpose.msra.mxu0 0.0
    %715 = vmatprep.subr.mxu0 0.0
    %716 = vmatpush1.xpose.msra.mxu0 0.0
    %717 = vmatprep.subr.mxu0 0.0
    %718 = vmatpush1.xpose.msra.mxu0 0.0
    %719 = vmatprep.subr.mxu0 0.0
    %720 = vmatpush1.xpose.msra.mxu0 0.0
    %721 = vmatprep.subr.mxu0 0.0
    %722 = vmatpush1.xpose.msra.mxu0 0.0
    %723 = vmatprep.subr.mxu0 0.0
    %724 = vmatpush1.xpose.msra.mxu0 0.0
    %725 = vmatprep.subr.mxu0 0.0
    %726 = vmatpush1.xpose.msra.mxu0 0.0
    %727 = vmatprep.subr.mxu0 0.0
    %728 = vmatpush1.xpose.msra.mxu0 0.0
    %729 = vmatprep.subr.mxu0 0.0
    %730 = vmatpush1.xpose.msra.mxu0 0.0
    %731 = vmatprep.subr.mxu0 0.0
    %732 = vmatpush1.xpose.msra.mxu0 0.0
    %733 = vmatprep.subr.mxu0 0.0
    %734 = vmatpush1.xpose.msra.mxu0 0.0
    %735 = vmatprep.subr.mxu0 0.0
    %736 = vmatpush1.xpose.msra.mxu0 0.0
    %737 = vmatprep.subr.mxu0 0.0
    %738 = vmatpush1.xpose.msra.mxu0 0.0
    %739 = vmatprep.subr.mxu0 0.0
    %740 = vmatpush1.xpose.msra.mxu0 0.0
    %741 = vmatprep.subr.mxu0 0.0
    %742 = vmatpush1.xpose.msra.mxu0 0.0
    %743 = vmatprep.subr.mxu0 0.0
    %744 = vmatpush1.xpose.msra.mxu0 0.0
    %745 = vmatprep.subr.mxu0 0.0
    %746 = vmatpush1.xpose.msra.mxu0 0.0
    %747 = vmatprep.subr.mxu0 0.0
    %748 = vmatpush1.xpose.msra.mxu0 0.0
    %749 = vmatprep.subr.mxu0 0.0
    %750 = vmatpush1.xpose.msra.mxu0 0.0
    %751 = vmatprep.subr.mxu0 0.0
    %752 = vmatpush1.xpose.msra.mxu0 0.0
    %753 = vmatprep.subr.mxu0 0.0
    %754 = vmatpush1.xpose.msra.mxu0 0.0
    %755 = vmatprep.subr.mxu0 0.0
    %756 = vmatpush1.xpose.msra.mxu0 0.0
    %757 = vmatprep.subr.mxu0 0.0
    %758 = vmatpush1.xpose.msra.mxu0 0.0
    %759 = vmatprep.subr.mxu0 0.0
    %760 = vmatpush1.xpose.msra.mxu0 0.0
    %761 = vmatprep.subr.mxu0 0.0
    %762 = vmatpush1.xpose.msra.mxu0 0.0
    %763 = vmatprep.subr.mxu0 0.0
    %764 = vmatpush1.xpose.msra.mxu0 0.0
    %765 = vmatprep.subr.mxu0 0.0
    %766 = vmatpush1.xpose.msra.mxu0 0.0
    %767 = vmatprep.subr.mxu0 0.0
    %768 = vmatpush1.xpose.msra.mxu0 0.0
    %769 = vmatprep.mubr.f32.mxu0 0.0
    %770 = vmatmul.mubr.f32.gmra.mrb[0].mxu0 %v701
    %v771 = vpop.f32.mrb[0].mxu0
    %v772 = vadd.f32 %v138, %v771
    %v773 = vpop.f32.mrb[0].mxu0
    %774 = vdwg.mxu0
    %v775 = vsel %vm292, %v694, -inf
    %776 = vmax.xlane.f32.xlu0 %v775
    %v777 = vpop.xlane.xlu0 %776
    %v778 = vsel %vm292, %v772, -inf
    %779 = vmax.xlane.f32.xlu0 %v778
    %v780 = vpop.xlane.xlu0 %779
    %v781 = vsub.f32 %v694, %v777
    %v782 = vsub.f32 %v772, %v780
    %v783 = vmul.f32 %v781, 1.442695
    %v784 = vpow.pop %v783
    %v785 = vmul.f32 %v782, 1.442695
    %v786 = vpow.pop %v785
    %v787 = vsel %vm292, %v784, 0.0
    %788 = vadd.xlane.f32.xlu0 %v787
    %v789 = vpop.xlane.xlu0 %788
    %v790 = vsel %vm292, %v786, 0.0
    %791 = vadd.xlane.f32.xlu0 %v790
    %v792 = vpop.xlane.xlu0 %791
    %v793 = vrcp.pop %v789
    %v794 = vrcp.pop %v792
    %v795 = vmul.f32 %v784, %v793
    %v796 = vmul.f32 %v786, %v794
    %797 = vrot.lane.b32.xlu0 %v281, 56
    %v798 = vpop.permute.xlu0 %797
    %v801 = vsel %vm292, %v795, 0
    %803 = vmatprep.subr.mxu0 0.0
    %804 = vmatpush1.msra.mxu0 %v798
    %805 = vmatprep.subr.mxu0 0.0
    %806 = vmatpush1.msra.mxu0 0.0
    %807 = vmatprep.subr.mxu0 0.0
    %808 = vmatpush1.msra.mxu0 0.0
    %809 = vmatprep.subr.mxu0 0.0
    %810 = vmatpush1.msra.mxu0 0.0
    %811 = vmatprep.subr.mxu0 0.0
    %812 = vmatpush1.msra.mxu0 0.0
    %813 = vmatprep.subr.mxu0 0.0
    %814 = vmatpush1.msra.mxu0 0.0
    %815 = vmatprep.subr.mxu0 0.0
    %816 = vmatpush1.msra.mxu0 0.0
    %817 = vmatprep.subr.mxu0 0.0
    %818 = vmatpush1.msra.mxu0 0.0
    %819 = vmatprep.subr.mxu0 0.0
    %820 = vmatpush1.msra.mxu0 0.0
    %821 = vmatprep.subr.mxu0 0.0
    %822 = vmatpush1.msra.mxu0 0.0
    %823 = vmatprep.subr.mxu0 0.0
    %824 = vmatpush1.msra.mxu0 0.0
    %825 = vmatprep.subr.mxu0 0.0
    %826 = vmatpush1.msra.mxu0 0.0
    %827 = vmatprep.subr.mxu0 0.0
    %828 = vmatpush1.msra.mxu0 0.0
    %829 = vmatprep.subr.mxu0 0.0
    %830 = vmatpush1.msra.mxu0 0.0
    %831 = vmatprep.subr.mxu0 0.0
    %832 = vmatpush1.msra.mxu0 0.0
    %833 = vmatprep.subr.mxu0 0.0
    %834 = vmatpush1.msra.mxu0 0.0
    %835 = vmatprep.subr.mxu0 0.0
    %836 = vmatpush1.msra.mxu0 0.0
    %837 = vmatprep.subr.mxu0 0.0
    %838 = vmatpush1.msra.mxu0 0.0
    %839 = vmatprep.subr.mxu0 0.0
    %840 = vmatpush1.msra.mxu0 0.0
    %841 = vmatprep.subr.mxu0 0.0
    %842 = vmatpush1.msra.mxu0 0.0
    %843 = vmatprep.subr.mxu0 0.0
    %844 = vmatpush1.msra.mxu0 0.0
    %845 = vmatprep.subr.mxu0 0.0
    %846 = vmatpush1.msra.mxu0 0.0
    %847 = vmatprep.subr.mxu0 0.0
    %848 = vmatpush1.msra.mxu0 0.0
    %849 = vmatprep.subr.mxu0 0.0
    %850 = vmatpush1.msra.mxu0 0.0
    %851 = vmatprep.subr.mxu0 0.0
    %852 = vmatpush1.msra.mxu0 0.0
    %853 = vmatprep.subr.mxu0 0.0
    %854 = vmatpush1.msra.mxu0 0.0
    %855 = vmatprep.subr.mxu0 0.0
    %856 = vmatpush1.msra.mxu0 0.0
    %857 = vmatprep.subr.mxu0 0.0
    %858 = vmatpush1.msra.mxu0 0.0
    %859 = vmatprep.subr.mxu0 0.0
    %860 = vmatpush1.msra.mxu0 0.0
    %861 = vmatprep.subr.mxu0 0.0
    %862 = vmatpush1.msra.mxu0 0.0
    %863 = vmatprep.subr.mxu0 0.0
    %864 = vmatpush1.msra.mxu0 0.0
    %865 = vmatprep.subr.mxu0 0.0
    %866 = vmatpush1.msra.mxu0 0.0
    %867 = vmatprep.mubr.f32.mxu0 0.0
    %868 = vmatmul.mubr.f32.gmra.mrb[0].mxu0 %v801
    %v869 = vpop.f32.mrb[0].mxu0
    %v870 = vadd.f32 0.0, %v869
    %v871 = vpop.f32.mrb[0].mxu0
    %872 = vdwg.mxu0
    %873 = vrot.lane.b32.xlu0 %v286, 56
    %v874 = vpop.permute.xlu0 %873
    %v877 = vsel %vm292, %v796, 0
    %879 = vmatprep.subr.mxu0 0.0
    %880 = vmatpush1.msra.mxu0 %v874
    %881 = vmatprep.subr.mxu0 0.0
    %882 = vmatpush1.msra.mxu0 0.0
    %883 = vmatprep.subr.mxu0 0.0
    %884 = vmatpush1.msra.mxu0 0.0
    %885 = vmatprep.subr.mxu0 0.0
    %886 = vmatpush1.msra.mxu0 0.0
    %887 = vmatprep.subr.mxu0 0.0
    %888 = vmatpush1.msra.mxu0 0.0
    %889 = vmatprep.subr.mxu0 0.0
    %890 = vmatpush1.msra.mxu0 0.0
    %891 = vmatprep.subr.mxu0 0.0
    %892 = vmatpush1.msra.mxu0 0.0
    %893 = vmatprep.subr.mxu0 0.0
    %894 = vmatpush1.msra.mxu0 0.0
    %895 = vmatprep.subr.mxu0 0.0
    %896 = vmatpush1.msra.mxu0 0.0
    %897 = vmatprep.subr.mxu0 0.0
    %898 = vmatpush1.msra.mxu0 0.0
    %899 = vmatprep.subr.mxu0 0.0
    %900 = vmatpush1.msra.mxu0 0.0
    %901 = vmatprep.subr.mxu0 0.0
    %902 = vmatpush1.msra.mxu0 0.0
    %903 = vmatprep.subr.mxu0 0.0
    %904 = vmatpush1.msra.mxu0 0.0
    %905 = vmatprep.subr.mxu0 0.0
    %906 = vmatpush1.msra.mxu0 0.0
    %907 = vmatprep.subr.mxu0 0.0
    %908 = vmatpush1.msra.mxu0 0.0
    %909 = vmatprep.subr.mxu0 0.0
    %910 = vmatpush1.msra.mxu0 0.0
    %911 = vmatprep.subr.mxu0 0.0
    %912 = vmatpush1.msra.mxu0 0.0
    %913 = vmatprep.subr.mxu0 0.0
    %914 = vmatpush1.msra.mxu0 0.0
    %915 = vmatprep.subr.mxu0 0.0
    %916 = vmatpush1.msra.mxu0 0.0
    %917 = vmatprep.subr.mxu0 0.0
    %918 = vmatpush1.msra.mxu0 0.0
    %919 = vmatprep.subr.mxu0 0.0
    %920 = vmatpush1.msra.mxu0 0.0
    %921 = vmatprep.subr.mxu0 0.0
    %922 = vmatpush1.msra.mxu0 0.0
    %923 = vmatprep.subr.mxu0 0.0
    %924 = vmatpush1.msra.mxu0 0.0
    %925 = vmatprep.subr.mxu0 0.0
    %926 = vmatpush1.msra.mxu0 0.0
    %927 = vmatprep.subr.mxu0 0.0
    %928 = vmatpush1.msra.mxu0 0.0
    %929 = vmatprep.subr.mxu0 0.0
    %930 = vmatpush1.msra.mxu0 0.0
    %931 = vmatprep.subr.mxu0 0.0
    %932 = vmatpush1.msra.mxu0 0.0
    %933 = vmatprep.subr.mxu0 0.0
    %934 = vmatpush1.msra.mxu0 0.0
    %935 = vmatprep.subr.mxu0 0.0
    %936 = vmatpush1.msra.mxu0 0.0
    %937 = vmatprep.subr.mxu0 0.0
    %938 = vmatpush1.msra.mxu0 0.0
    %939 = vmatprep.subr.mxu0 0.0
    %940 = vmatpush1.msra.mxu0 0.0
    %941 = vmatprep.subr.mxu0 0.0
    %942 = vmatpush1.msra.mxu0 0.0
    %943 = vmatprep.mubr.f32.mxu0 0.0
    %944 = vmatmul.mubr.f32.gmra.mrb[0].mxu0 %v877
    %v945 = vpop.f32.mrb[0].mxu0
    %v946 = vadd.f32 0.0, %v945
    %v947 = vpop.f32.mrb[0].mxu0
    %948 = vdwg.mxu0
    %v949 = vld [vmem:[#allocation2 + $0xa0] sm:$0xff]
    %v951 = vsel %vm292, %v870, 0
    %v954 = vsel %vm292, %v946, 0
    %956 = vmatprep.subr.mxu0 0.0
    %957 = vmatpush1.msra.mxu0 %v949
    %958 = vmatprep.subr.mxu0 0.0
    %959 = vmatpush1.msra.mxu0 0.0
    %960 = vmatprep.subr.mxu0 0.0
    %961 = vmatpush1.msra.mxu0 0.0
    %962 = vmatprep.subr.mxu0 0.0
    %963 = vmatpush1.msra.mxu0 0.0
    %964 = vmatprep.subr.mxu0 0.0
    %965 = vmatpush1.msra.mxu0 0.0
    %966 = vmatprep.subr.mxu0 0.0
    %967 = vmatpush1.msra.mxu0 0.0
    %968 = vmatprep.subr.mxu0 0.0
    %969 = vmatpush1.msra.mxu0 0.0
    %970 = vmatprep.subr.mxu0 0.0
    %971 = vmatpush1.msra.mxu0 0.0
    %972 = vmatprep.subr.mxu0 0.0
    %973 = vmatpush1.msra.mxu0 0.0
    %974 = vmatprep.subr.mxu0 0.0
    %975 = vmatpush1.msra.mxu0 0.0
    %976 = vmatprep.subr.mxu0 0.0
    %977 = vmatpush1.msra.mxu0 0.0
    %978 = vmatprep.subr.mxu0 0.0
    %979 = vmatpush1.msra.mxu0 0.0
    %980 = vmatprep.subr.mxu0 0.0
    %981 = vmatpush1.msra.mxu0 0.0
    %982 = vmatprep.subr.mxu0 0.0
    %983 = vmatpush1.msra.mxu0 0.0
    %984 = vmatprep.subr.mxu0 0.0
    %985 = vmatpush1.msra.mxu0 0.0
    %986 = vmatprep.subr.mxu0 0.0
    %987 = vmatpush1.msra.mxu0 0.0
    %988 = vmatprep.subr.mxu0 0.0
    %989 = vmatpush1.msra.mxu0 0.0
    %990 = vmatprep.subr.mxu0 0.0
    %991 = vmatpush1.msra.mxu0 0.0
    %992 = vmatprep.subr.mxu0 0.0
    %993 = vmatpush1.msra.mxu0 0.0
    %994 = vmatprep.subr.mxu0 0.0
    %995 = vmatpush1.msra.mxu0 0.0
    %996 = vmatprep.subr.mxu0 0.0
    %997 = vmatpush1.msra.mxu0 0.0
    %998 = vmatprep.subr.mxu0 0.0
    %999 = vmatpush1.msra.mxu0 0.0
    %1000 = vmatprep.subr.mxu0 0.0
    %1001 = vmatpush1.msra.mxu0 0.0
    %1002 = vmatprep.subr.mxu0 0.0
    %1003 = vmatpush1.msra.mxu0 0.0
    %1004 = vmatprep.subr.mxu0 0.0
    %1005 = vmatpush1.msra.mxu0 0.0
    %1006 = vmatprep.subr.mxu0 0.0
    %1007 = vmatpush1.msra.mxu0 0.0
    %1008 = vmatprep.subr.mxu0 0.0
    %1009 = vmatpush1.msra.mxu0 0.0
    %1010 = vmatprep.subr.mxu0 0.0
    %1011 = vmatpush1.msra.mxu0 0.0
    %1012 = vmatprep.subr.mxu0 0.0
    %1013 = vmatpush1.msra.mxu0 0.0
    %1014 = vmatprep.subr.mxu0 0.0
    %1015 = vmatpush1.msra.mxu0 0.0
    %1016 = vmatprep.subr.mxu0 0.0
    %1017 = vmatpush1.msra.mxu0 0.0
    %1018 = vmatprep.subr.mxu0 0.0
    %1019 = vmatpush1.msra.mxu0 0.0
    %1020 = vmatprep.mubr.f32.mxu0 0.0
    %1021 = vmatmul.mubr.f32.gmra.mrb[0].mxu0 %v951
    %v1022 = vpop.f32.mrb[0].mxu0
    %v1023 = vadd.f32 0.0, %v1022
    %v1024 = vpop.f32.mrb[0].mxu0
    %1025 = vmatprep.mubr.f32.mxu0 0.0
    %1026 = vmatmul.mubr.f32.gmra.mrb[0].mxu0 %v954
    %v1027 = vpop.f32.mrb[0].mxu0
    %v1028 = vadd.f32 0.0, %v1027
    %v1029 = vpop.f32.mrb[0].mxu0
    %1030 = vdwg.mxu0
    %v1032 = vsel %vm292, %v539, 0
    %v1035 = vsel %vm292, %v615, 0
    %1037 = vmatprep.subr.mxu0 0.0
    %1038 = vmatpush1.msra.mxu0 %v618
    %1039 = vmatprep.subr.mxu0 0.0
    %1040 = vmatpush1.msra.mxu0 0.0
    %1041 = vmatprep.subr.mxu0 0.0
    %1042 = vmatpush1.msra.mxu0 0.0
    %1043 = vmatprep.subr.mxu0 0.0
    %1044 = vmatpush1.msra.mxu0 0.0
    %1045 = vmatprep.subr.mxu0 0.0
    %1046 = vmatpush1.msra.mxu0 0.0
    %1047 = vmatprep.subr.mxu0 0.0
    %1048 = vmatpush1.msra.mxu0 0.0
    %1049 = vmatprep.subr.mxu0 0.0
    %1050 = vmatpush1.msra.mxu0 0.0
    %1051 = vmatprep.subr.mxu0 0.0
    %1052 = vmatpush1.msra.mxu0 0.0
    %1053 = vmatprep.subr.mxu0 0.0
    %1054 = vmatpush1.msra.mxu0 0.0
    %1055 = vmatprep.subr.mxu0 0.0
    %1056 = vmatpush1.msra.mxu0 0.0
    %1057 = vmatprep.subr.mxu0 0.0
    %1058 = vmatpush1.msra.mxu0 0.0
    %1059 = vmatprep.subr.mxu0 0.0
    %1060 = vmatpush1.msra.mxu0 0.0
    %1061 = vmatprep.subr.mxu0 0.0
    %1062 = vmatpush1.msra.mxu0 0.0
    %1063 = vmatprep.subr.mxu0 0.0
    %1064 = vmatpush1.msra.mxu0 0.0
    %1065 = vmatprep.subr.mxu0 0.0
    %1066 = vmatpush1.msra.mxu0 0.0
    %1067 = vmatprep.subr.mxu0 0.0
    %1068 = vmatpush1.msra.mxu0 0.0
    %1069 = vmatprep.subr.mxu0 0.0
    %1070 = vmatpush1.msra.mxu0 0.0
    %1071 = vmatprep.subr.mxu0 0.0
    %1072 = vmatpush1.msra.mxu0 0.0
    %1073 = vmatprep.subr.mxu0 0.0
    %1074 = vmatpush1.msra.mxu0 0.0
    %1075 = vmatprep.subr.mxu0 0.0
    %1076 = vmatpush1.msra.mxu0 0.0
    %1077 = vmatprep.subr.mxu0 0.0
    %1078 = vmatpush1.msra.mxu0 0.0
    %1079 = vmatprep.subr.mxu0 0.0
    %1080 = vmatpush1.msra.mxu0 0.0
    %1081 = vmatprep.subr.mxu0 0.0
    %1082 = vmatpush1.msra.mxu0 0.0
    %1083 = vmatprep.subr.mxu0 0.0
    %1084 = vmatpush1.msra.mxu0 0.0
    %1085 = vmatprep.subr.mxu0 0.0
    %1086 = vmatpush1.msra.mxu0 0.0
    %1087 = vmatprep.subr.mxu0 0.0
    %1088 = vmatpush1.msra.mxu0 0.0
    %1089 = vmatprep.subr.mxu0 0.0
    %1090 = vmatpush1.msra.mxu0 0.0
    %1091 = vmatprep.subr.mxu0 0.0
    %1092 = vmatpush1.msra.mxu0 0.0
    %1093 = vmatprep.subr.mxu0 0.0
    %1094 = vmatpush1.msra.mxu0 0.0
    %1095 = vmatprep.subr.mxu0 0.0
    %1096 = vmatpush1.msra.mxu0 0.0
    %1097 = vmatprep.subr.mxu0 0.0
    %1098 = vmatpush1.msra.mxu0 0.0
    %1099 = vmatprep.subr.mxu0 0.0
    %1100 = vmatpush1.msra.mxu0 0.0
    %1101 = vmatprep.mubr.f32.mxu0 0.0
    %1102 = vmatmul.mubr.f32.gmra.mrb[0].mxu0 %v1032
    %v1103 = vpop.f32.mrb[0].mxu0
    %v1104 = vadd.f32 %v1023, %v1103
    %v1105 = vpop.f32.mrb[0].mxu0
    %1106 = vmatprep.mubr.f32.mxu0 0.0
    %1107 = vmatmul.mubr.f32.gmra.mrb[0].mxu0 %v1035
    %v1108 = vpop.f32.mrb[0].mxu0
    %v1109 = vadd.f32 %v1028, %v1108
    %v1110 = vpop.f32.mrb[0].mxu0
    %1111 = vdwg.mxu0
    %1112 = vrot.lane.b32.xlu0 %v281, 112
    %v1113 = vpop.permute.xlu0 %1112
    %1114 = vrot.lane.b32.xlu0 %v281, 80
    %v1115 = vpop.permute.xlu0 %1114
    %v1116 = vsel %vm292, %v1113, 0
    %v1118 = vsel %vm292, %v1115, 0
    %1120 = vmatprep.subr.mxu0 0.0
    %1121 = vmatpush1.xpose.msra.mxu0 %v1118
    %1122 = vmatprep.subr.mxu0 0.0
    %1123 = vmatpush1.xpose.msra.mxu0 0.0
    %1124 = vmatprep.subr.mxu0 0.0
    %1125 = vmatpush1.xpose.msra.mxu0 0.0
    %1126 = vmatprep.subr.mxu0 0.0
    %1127 = vmatpush1.xpose.msra.mxu0 0.0
    %1128 = vmatprep.subr.mxu0 0.0
    %1129 = vmatpush1.xpose.msra.mxu0 0.0
    %1130 = vmatprep.subr.mxu0 0.0
    %1131 = vmatpush1.xpose.msra.mxu0 0.0
    %1132 = vmatprep.subr.mxu0 0.0
    %1133 = vmatpush1.xpose.msra.mxu0 0.0
    %1134 = vmatprep.subr.mxu0 0.0
    %1135 = vmatpush1.xpose.msra.mxu0 0.0
    %1136 = vmatprep.subr.mxu0 0.0
    %1137 = vmatpush1.xpose.msra.mxu0 0.0
    %1138 = vmatprep.subr.mxu0 0.0
    %1139 = vmatpush1.xpose.msra.mxu0 0.0
    %1140 = vmatprep.subr.mxu0 0.0
    %1141 = vmatpush1.xpose.msra.mxu0 0.0
    %1142 = vmatprep.subr.mxu0 0.0
    %1143 = vmatpush1.xpose.msra.mxu0 0.0
    %1144 = vmatprep.subr.mxu0 0.0
    %1145 = vmatpush1.xpose.msra.mxu0 0.0
    %1146 = vmatprep.subr.mxu0 0.0
    %1147 = vmatpush1.xpose.msra.mxu0 0.0
    %1148 = vmatprep.subr.mxu0 0.0
    %1149 = vmatpush1.xpose.msra.mxu0 0.0
    %1150 = vmatprep.subr.mxu0 0.0
    %1151 = vmatpush1.xpose.msra.mxu0 0.0
    %1152 = vmatprep.subr.mxu0 0.0
    %1153 = vmatpush1.xpose.msra.mxu0 0.0
    %1154 = vmatprep.subr.mxu0 0.0
    %1155 = vmatpush1.xpose.msra.mxu0 0.0
    %1156 = vmatprep.subr.mxu0 0.0
    %1157 = vmatpush1.xpose.msra.mxu0 0.0
    %1158 = vmatprep.subr.mxu0 0.0
    %1159 = vmatpush1.xpose.msra.mxu0 0.0
    %1160 = vmatprep.subr.mxu0 0.0
    %1161 = vmatpush1.xpose.msra.mxu0 0.0
    %1162 = vmatprep.subr.mxu0 0.0
    %1163 = vmatpush1.xpose.msra.mxu0 0.0
    %1164 = vmatprep.subr.mxu0 0.0
    %1165 = vmatpush1.xpose.msra.mxu0 0.0
    %1166 = vmatprep.subr.mxu0 0.0
    %1167 = vmatpush1.xpose.msra.mxu0 0.0
    %1168 = vmatprep.subr.mxu0 0.0
    %1169 = vmatpush1.xpose.msra.mxu0 0.0
    %1170 = vmatprep.subr.mxu0 0.0
    %1171 = vmatpush1.xpose.msra.mxu0 0.0
    %1172 = vmatprep.subr.mxu0 0.0
    %1173 = vmatpush1.xpose.msra.mxu0 0.0
    %1174 = vmatprep.subr.mxu0 0.0
    %1175 = vmatpush1.xpose.msra.mxu0 0.0
    %1176 = vmatprep.subr.mxu0 0.0
    %1177 = vmatpush1.xpose.msra.mxu0 0.0
    %1178 = vmatprep.subr.mxu0 0.0
    %1179 = vmatpush1.xpose.msra.mxu0 0.0
    %1180 = vmatprep.subr.mxu0 0.0
    %1181 = vmatpush1.xpose.msra.mxu0 0.0
    %1182 = vmatprep.subr.mxu0 0.0
    %1183 = vmatpush1.xpose.msra.mxu0 0.0
    %1184 = vmatprep.mubr.f32.mxu0 0.0
    %1185 = vmatmul.mubr.f32.gmra.mrb[0].mxu0 %v1116
    %v1186 = vpop.f32.mrb[0].mxu0
    %v1187 = vadd.f32 %v137, %v1186
    %v1188 = vpop.f32.mrb[0].mxu0
    %1189 = vdwg.mxu0
    %1190 = vrot.lane.b32.xlu0 %v286, 112
    %v1191 = vpop.permute.xlu0 %1190
    %1192 = vrot.lane.b32.xlu0 %v286, 80
    %v1193 = vpop.permute.xlu0 %1192
    %v1194 = vsel %vm292, %v1191, 0
    %v1196 = vsel %vm292, %v1193, 0
    %1198 = vmatprep.subr.mxu0 0.0
    %1199 = vmatpush1.xpose.msra.mxu0 %v1196
    %1200 = vmatprep.subr.mxu0 0.0
    %1201 = vmatpush1.xpose.msra.mxu0 0.0
    %1202 = vmatprep.subr.mxu0 0.0
    %1203 = vmatpush1.xpose.msra.mxu0 0.0
    %1204 = vmatprep.subr.mxu0 0.0
    %1205 = vmatpush1.xpose.msra.mxu0 0.0
    %1206 = vmatprep.subr.mxu0 0.0
    %1207 = vmatpush1.xpose.msra.mxu0 0.0
    %1208 = vmatprep.subr.mxu0 0.0
    %1209 = vmatpush1.xpose.msra.mxu0 0.0
    %1210 = vmatprep.subr.mxu0 0.0
    %1211 = vmatpush1.xpose.msra.mxu0 0.0
    %1212 = vmatprep.subr.mxu0 0.0
    %1213 = vmatpush1.xpose.msra.mxu0 0.0
    %1214 = vmatprep.subr.mxu0 0.0
    %1215 = vmatpush1.xpose.msra.mxu0 0.0
    %1216 = vmatprep.subr.mxu0 0.0
    %1217 = vmatpush1.xpose.msra.mxu0 0.0
    %1218 = vmatprep.subr.mxu0 0.0
    %1219 = vmatpush1.xpose.msra.mxu0 0.0
    %1220 = vmatprep.subr.mxu0 0.0
    %1221 = vmatpush1.xpose.msra.mxu0 0.0
    %1222 = vmatprep.subr.mxu0 0.0
    %1223 = vmatpush1.xpose.msra.mxu0 0.0
    %1224 = vmatprep.subr.mxu0 0.0
    %1225 = vmatpush1.xpose.msra.mxu0 0.0
    %1226 = vmatprep.subr.mxu0 0.0
    %1227 = vmatpush1.xpose.msra.mxu0 0.0
    %1228 = vmatprep.subr.mxu0 0.0
    %1229 = vmatpush1.xpose.msra.mxu0 0.0
    %1230 = vmatprep.subr.mxu0 0.0
    %1231 = vmatpush1.xpose.msra.mxu0 0.0
    %1232 = vmatprep.subr.mxu0 0.0
    %1233 = vmatpush1.xpose.msra.mxu0 0.0
    %1234 = vmatprep.subr.mxu0 0.0
    %1235 = vmatpush1.xpose.msra.mxu0 0.0
    %1236 = vmatprep.subr.mxu0 0.0
    %1237 = vmatpush1.xpose.msra.mxu0 0.0
    %1238 = vmatprep.subr.mxu0 0.0
    %1239 = vmatpush1.xpose.msra.mxu0 0.0
    %1240 = vmatprep.subr.mxu0 0.0
    %1241 = vmatpush1.xpose.msra.mxu0 0.0
    %1242 = vmatprep.subr.mxu0 0.0
    %1243 = vmatpush1.xpose.msra.mxu0 0.0
    %1244 = vmatprep.subr.mxu0 0.0
    %1245 = vmatpush1.xpose.msra.mxu0 0.0
    %1246 = vmatprep.subr.mxu0 0.0
    %1247 = vmatpush1.xpose.msra.mxu0 0.0
    %1248 = vmatprep.subr.mxu0 0.0
    %1249 = vmatpush1.xpose.msra.mxu0 0.0
    %1250 = vmatprep.subr.mxu0 0.0
    %1251 = vmatpush1.xpose.msra.mxu0 0.0
    %1252 = vmatprep.subr.mxu0 0.0
    %1253 = vmatpush1.xpose.msra.mxu0 0.0
    %1254 = vmatprep.subr.mxu0 0.0
    %1255 = vmatpush1.xpose.msra.mxu0 0.0
    %1256 = vmatprep.subr.mxu0 0.0
    %1257 = vmatpush1.xpose.msra.mxu0 0.0
    %1258 = vmatprep.subr.mxu0 0.0
    %1259 = vmatpush1.xpose.msra.mxu0 0.0
    %1260 = vmatprep.subr.mxu0 0.0
    %1261 = vmatpush1.xpose.msra.mxu0 0.0
    %1262 = vmatprep.mubr.f32.mxu0 0.0
    %1263 = vmatmul.mubr.f32.gmra.mrb[0].mxu0 %v1194
    %v1264 = vpop.f32.mrb[0].mxu0
    %v1265 = vadd.f32 %v138, %v1264
    %v1266 = vpop.f32.mrb[0].mxu0
    %1267 = vdwg.mxu0
    %v1268 = vsel %vm292, %v1187, -inf
    %1269 = vmax.xlane.f32.xlu0 %v1268
    %v1270 = vpop.xlane.xlu0 %1269
    %v1271 = vsel %vm292, %v1265, -inf
    %1272 = vmax.xlane.f32.xlu0 %v1271
    %v1273 = vpop.xlane.xlu0 %1272
    %v1274 = vsub.f32 %v1187, %v1270
    %v1275 = vsub.f32 %v1265, %v1273
    %v1276 = vmul.f32 %v1274, 1.442695
    %v1277 = vpow.pop %v1276
    %v1278 = vmul.f32 %v1275, 1.442695
    %v1279 = vpow.pop %v1278
    %v1280 = vsel %vm292, %v1277, 0.0
    %1281 = vadd.xlane.f32.xlu0 %v1280
    %v1282 = vpop.xlane.xlu0 %1281
    %v1283 = vsel %vm292, %v1279, 0.0
    %1284 = vadd.xlane.f32.xlu0 %v1283
    %v1285 = vpop.xlane.xlu0 %1284
    %v1286 = vrcp.pop %v1282
    %v1287 = vrcp.pop %v1285
    %v1288 = vmul.f32 %v1277, %v1286
    %v1289 = vmul.f32 %v1279, %v1287
    %1290 = vrot.lane.b32.xlu0 %v281, 48
    %v1291 = vpop.permute.xlu0 %1290
    %v1294 = vsel %vm292, %v1288, 0
    %1296 = vmatprep.subr.mxu0 0.0
    %1297 = vmatpush1.msra.mxu0 %v1291
    %1298 = vmatprep.subr.mxu0 0.0
    %1299 = vmatpush1.msra.mxu0 0.0
    %1300 = vmatprep.subr.mxu0 0.0
    %1301 = vmatpush1.msra.mxu0 0.0
    %1302 = vmatprep.subr.mxu0 0.0
    %1303 = vmatpush1.msra.mxu0 0.0
    %1304 = vmatprep.subr.mxu0 0.0
    %1305 = vmatpush1.msra.mxu0 0.0
    %1306 = vmatprep.subr.mxu0 0.0
    %1307 = vmatpush1.msra.mxu0 0.0
    %1308 = vmatprep.subr.mxu0 0.0
    %1309 = vmatpush1.msra.mxu0 0.0
    %1310 = vmatprep.subr.mxu0 0.0
    %1311 = vmatpush1.msra.mxu0 0.0
    %1312 = vmatprep.subr.mxu0 0.0
    %1313 = vmatpush1.msra.mxu0 0.0
    %1314 = vmatprep.subr.mxu0 0.0
    %1315 = vmatpush1.msra.mxu0 0.0
    %1316 = vmatprep.subr.mxu0 0.0
    %1317 = vmatpush1.msra.mxu0 0.0
    %1318 = vmatprep.subr.mxu0 0.0
    %1319 = vmatpush1.msra.mxu0 0.0
    %1320 = vmatprep.subr.mxu0 0.0
    %1321 = vmatpush1.msra.mxu0 0.0
    %1322 = vmatprep.subr.mxu0 0.0
    %1323 = vmatpush1.msra.mxu0 0.0
    %1324 = vmatprep.subr.mxu0 0.0
    %1325 = vmatpush1.msra.mxu0 0.0
    %1326 = vmatprep.subr.mxu0 0.0
    %1327 = vmatpush1.msra.mxu0 0.0
    %1328 = vmatprep.subr.mxu0 0.0
    %1329 = vmatpush1.msra.mxu0 0.0
    %1330 = vmatprep.subr.mxu0 0.0
    %1331 = vmatpush1.msra.mxu0 0.0
    %1332 = vmatprep.subr.mxu0 0.0
    %1333 = vmatpush1.msra.mxu0 0.0
    %1334 = vmatprep.subr.mxu0 0.0
    %1335 = vmatpush1.msra.mxu0 0.0
    %1336 = vmatprep.subr.mxu0 0.0
    %1337 = vmatpush1.msra.mxu0 0.0
    %1338 = vmatprep.subr.mxu0 0.0
    %1339 = vmatpush1.msra.mxu0 0.0
    %1340 = vmatprep.subr.mxu0 0.0
    %1341 = vmatpush1.msra.mxu0 0.0
    %1342 = vmatprep.subr.mxu0 0.0
    %1343 = vmatpush1.msra.mxu0 0.0
    %1344 = vmatprep.subr.mxu0 0.0
    %1345 = vmatpush1.msra.mxu0 0.0
    %1346 = vmatprep.subr.mxu0 0.0
    %1347 = vmatpush1.msra.mxu0 0.0
    %1348 = vmatprep.subr.mxu0 0.0
    %1349 = vmatpush1.msra.mxu0 0.0
    %1350 = vmatprep.subr.mxu0 0.0
    %1351 = vmatpush1.msra.mxu0 0.0
    %1352 = vmatprep.subr.mxu0 0.0
    %1353 = vmatpush1.msra.mxu0 0.0
    %1354 = vmatprep.subr.mxu0 0.0
    %1355 = vmatpush1.msra.mxu0 0.0
    %1356 = vmatprep.subr.mxu0 0.0
    %1357 = vmatpush1.msra.mxu0 0.0
    %1358 = vmatprep.subr.mxu0 0.0
    %1359 = vmatpush1.msra.mxu0 0.0
    %1360 = vmatprep.mubr.f32.mxu0 0.0
    %1361 = vmatmul.mubr.f32.gmra.mrb[0].mxu0 %v1294
    %v1362 = vpop.f32.mrb[0].mxu0
    %v1363 = vadd.f32 0.0, %v1362
    %v1364 = vpop.f32.mrb[0].mxu0
    %1365 = vdwg.mxu0
    %1366 = vrot.lane.b32.xlu0 %v286, 48
    %v1367 = vpop.permute.xlu0 %1366
    %v1370 = vsel %vm292, %v1289, 0
    %1372 = vmatprep.subr.mxu0 0.0
    %1373 = vmatpush1.msra.mxu0 %v1367
    %1374 = vmatprep.subr.mxu0 0.0
    %1375 = vmatpush1.msra.mxu0 0.0
    %1376 = vmatprep.subr.mxu0 0.0
    %1377 = vmatpush1.msra.mxu0 0.0
    %1378 = vmatprep.subr.mxu0 0.0
    %1379 = vmatpush1.msra.mxu0 0.0
    %1380 = vmatprep.subr.mxu0 0.0
    %1381 = vmatpush1.msra.mxu0 0.0
    %1382 = vmatprep.subr.mxu0 0.0
    %1383 = vmatpush1.msra.mxu0 0.0
    %1384 = vmatprep.subr.mxu0 0.0
    %1385 = vmatpush1.msra.mxu0 0.0
    %1386 = vmatprep.subr.mxu0 0.0
    %1387 = vmatpush1.msra.mxu0 0.0
    %1388 = vmatprep.subr.mxu0 0.0
    %1389 = vmatpush1.msra.mxu0 0.0
    %1390 = vmatprep.subr.mxu0 0.0
    %1391 = vmatpush1.msra.mxu0 0.0
    %1392 = vmatprep.subr.mxu0 0.0
    %1393 = vmatpush1.msra.mxu0 0.0
    %1394 = vmatprep.subr.mxu0 0.0
    %1395 = vmatpush1.msra.mxu0 0.0
    %1396 = vmatprep.subr.mxu0 0.0
    %1397 = vmatpush1.msra.mxu0 0.0
    %1398 = vmatprep.subr.mxu0 0.0
    %1399 = vmatpush1.msra.mxu0 0.0
    %1400 = vmatprep.subr.mxu0 0.0
    %1401 = vmatpush1.msra.mxu0 0.0
    %1402 = vmatprep.subr.mxu0 0.0
    %1403 = vmatpush1.msra.mxu0 0.0
    %1404 = vmatprep.subr.mxu0 0.0
    %1405 = vmatpush1.msra.mxu0 0.0
    %1406 = vmatprep.subr.mxu0 0.0
    %1407 = vmatpush1.msra.mxu0 0.0
    %1408 = vmatprep.subr.mxu0 0.0
    %1409 = vmatpush1.msra.mxu0 0.0
    %1410 = vmatprep.subr.mxu0 0.0
    %1411 = vmatpush1.msra.mxu0 0.0
    %1412 = vmatprep.subr.mxu0 0.0
    %1413 = vmatpush1.msra.mxu0 0.0
    %1414 = vmatprep.subr.mxu0 0.0
    %1415 = vmatpush1.msra.mxu0 0.0
    %1416 = vmatprep.subr.mxu0 0.0
    %1417 = vmatpush1.msra.mxu0 0.0
    %1418 = vmatprep.subr.mxu0 0.0
    %1419 = vmatpush1.msra.mxu0 0.0
    %1420 = vmatprep.subr.mxu0 0.0
    %1421 = vmatpush1.msra.mxu0 0.0
    %1422 = vmatprep.subr.mxu0 0.0
    %1423 = vmatpush1.msra.mxu0 0.0
    %1424 = vmatprep.subr.mxu0 0.0
    %1425 = vmatpush1.msra.mxu0 0.0
    %1426 = vmatprep.subr.mxu0 0.0
    %1427 = vmatpush1.msra.mxu0 0.0
    %1428 = vmatprep.subr.mxu0 0.0
    %1429 = vmatpush1.msra.mxu0 0.0
    %1430 = vmatprep.subr.mxu0 0.0
    %1431 = vmatpush1.msra.mxu0 0.0
    %1432 = vmatprep.subr.mxu0 0.0
    %1433 = vmatpush1.msra.mxu0 0.0
    %1434 = vmatprep.subr.mxu0 0.0
    %1435 = vmatpush1.msra.mxu0 0.0
    %1436 = vmatprep.mubr.f32.mxu0 0.0
    %1437 = vmatmul.mubr.f32.gmra.mrb[0].mxu0 %v1370
    %v1438 = vpop.f32.mrb[0].mxu0
    %v1439 = vadd.f32 0.0, %v1438
    %v1440 = vpop.f32.mrb[0].mxu0
    %1441 = vdwg.mxu0
    %v1442 = vld [vmem:[#allocation2 + $0xa8] sm:$0xff]
    %v1444 = vsel %vm292, %v1363, 0
    %v1447 = vsel %vm292, %v1439, 0
    %1449 = vmatprep.subr.mxu0 0.0
    %1450 = vmatpush1.msra.mxu0 %v1442
    %1451 = vmatprep.subr.mxu0 0.0
    %1452 = vmatpush1.msra.mxu0 0.0
    %1453 = vmatprep.subr.mxu0 0.0
    %1454 = vmatpush1.msra.mxu0 0.0
    %1455 = vmatprep.subr.mxu0 0.0
    %1456 = vmatpush1.msra.mxu0 0.0
    %1457 = vmatprep.subr.mxu0 0.0
    %1458 = vmatpush1.msra.mxu0 0.0
    %1459 = vmatprep.subr.mxu0 0.0
    %1460 = vmatpush1.msra.mxu0 0.0
    %1461 = vmatprep.subr.mxu0 0.0
    %1462 = vmatpush1.msra.mxu0 0.0
    %1463 = vmatprep.subr.mxu0 0.0
    %1464 = vmatpush1.msra.mxu0 0.0
    %1465 = vmatprep.subr.mxu0 0.0
    %1466 = vmatpush1.msra.mxu0 0.0
    %1467 = vmatprep.subr.mxu0 0.0
    %1468 = vmatpush1.msra.mxu0 0.0
    %1469 = vmatprep.subr.mxu0 0.0
    %1470 = vmatpush1.msra.mxu0 0.0
    %1471 = vmatprep.subr.mxu0 0.0
    %1472 = vmatpush1.msra.mxu0 0.0
    %1473 = vmatprep.subr.mxu0 0.0
    %1474 = vmatpush1.msra.mxu0 0.0
    %1475 = vmatprep.subr.mxu0 0.0
    %1476 = vmatpush1.msra.mxu0 0.0
    %1477 = vmatprep.subr.mxu0 0.0
    %1478 = vmatpush1.msra.mxu0 0.0
    %1479 = vmatprep.subr.mxu0 0.0
    %1480 = vmatpush1.msra.mxu0 0.0
    %1481 = vmatprep.subr.mxu0 0.0
    %1482 = vmatpush1.msra.mxu0 0.0
    %1483 = vmatprep.subr.mxu0 0.0
    %1484 = vmatpush1.msra.mxu0 0.0
    %1485 = vmatprep.subr.mxu0 0.0
    %1486 = vmatpush1.msra.mxu0 0.0
    %1487 = vmatprep.subr.mxu0 0.0
    %1488 = vmatpush1.msra.mxu0 0.0
    %1489 = vmatprep.subr.mxu0 0.0
    %1490 = vmatpush1.msra.mxu0 0.0
    %1491 = vmatprep.subr.mxu0 0.0
    %1492 = vmatpush1.msra.mxu0 0.0
    %1493 = vmatprep.subr.mxu0 0.0
    %1494 = vmatpush1.msra.mxu0 0.0
    %1495 = vmatprep.subr.mxu0 0.0
    %1496 = vmatpush1.msra.mxu0 0.0
    %1497 = vmatprep.subr.mxu0 0.0
    %1498 = vmatpush1.msra.mxu0 0.0
    %1499 = vmatprep.subr.mxu0 0.0
    %1500 = vmatpush1.msra.mxu0 0.0
    %1501 = vmatprep.subr.mxu0 0.0
    %1502 = vmatpush1.msra.mxu0 0.0
    %1503 = vmatprep.subr.mxu0 0.0
    %1504 = vmatpush1.msra.mxu0 0.0
    %1505 = vmatprep.subr.mxu0 0.0
    %1506 = vmatpush1.msra.mxu0 0.0
    %1507 = vmatprep.subr.mxu0 0.0
    %1508 = vmatpush1.msra.mxu0 0.0
    %1509 = vmatprep.subr.mxu0 0.0
    %1510 = vmatpush1.msra.mxu0 0.0
    %1511 = vmatprep.subr.mxu0 0.0
    %1512 = vmatpush1.msra.mxu0 0.0
    %1513 = vmatprep.mubr.f32.mxu0 0.0
    %1514 = vmatmul.mubr.f32.gmra.mrb[0].mxu0 %v1444
    %v1515 = vpop.f32.mrb[0].mxu0
    %v1516 = vadd.f32 0.0, %v1515
    %v1517 = vpop.f32.mrb[0].mxu0
    %1518 = vmatprep.mubr.f32.mxu0 0.0
    %1519 = vmatmul.mubr.f32.gmra.mrb[0].mxu0 %v1447
    %v1520 = vpop.f32.mrb[0].mxu0
    %v1521 = vadd.f32 0.0, %v1520
    %v1522 = vpop.f32.mrb[0].mxu0
    %1523 = vdwg.mxu0
    %v1524 = vadd.f32 %v1104, %v1516
    %v1525 = vadd.f32 %v1109, %v1521
    %1526 = vrot.lane.b32.xlu0 %v281, 104
    %v1527 = vpop.permute.xlu0 %1526
    %1528 = vrot.lane.b32.xlu0 %v281, 72
    %v1529 = vpop.permute.xlu0 %1528
    %v1530 = vsel %vm292, %v1527, 0
    %v1532 = vsel %vm292, %v1529, 0
    %1534 = vmatprep.subr.mxu0 0.0
    %1535 = vmatpush1.xpose.msra.mxu0 %v1532
    %1536 = vmatprep.subr.mxu0 0.0
    %1537 = vmatpush1.xpose.msra.mxu0 0.0
    %1538 = vmatprep.subr.mxu0 0.0
    %1539 = vmatpush1.xpose.msra.mxu0 0.0
    %1540 = vmatprep.subr.mxu0 0.0
    %1541 = vmatpush1.xpose.msra.mxu0 0.0
    %1542 = vmatprep.subr.mxu0 0.0
    %1543 = vmatpush1.xpose.msra.mxu0 0.0
    %1544 = vmatprep.subr.mxu0 0.0
    %1545 = vmatpush1.xpose.msra.mxu0 0.0
    %1546 = vmatprep.subr.mxu0 0.0
    %1547 = vmatpush1.xpose.msra.mxu0 0.0
    %1548 = vmatprep.subr.mxu0 0.0
    %1549 = vmatpush1.xpose.msra.mxu0 0.0
    %1550 = vmatprep.subr.mxu0 0.0
    %1551 = vmatpush1.xpose.msra.mxu0 0.0
    %1552 = vmatprep.subr.mxu0 0.0
    %1553 = vmatpush1.xpose.msra.mxu0 0.0
    %1554 = vmatprep.subr.mxu0 0.0
    %1555 = vmatpush1.xpose.msra.mxu0 0.0
    %1556 = vmatprep.subr.mxu0 0.0
    %1557 = vmatpush1.xpose.msra.mxu0 0.0
    %1558 = vmatprep.subr.mxu0 0.0
    %1559 = vmatpush1.xpose.msra.mxu0 0.0
    %1560 = vmatprep.subr.mxu0 0.0
    %1561 = vmatpush1.xpose.msra.mxu0 0.0
    %1562 = vmatprep.subr.mxu0 0.0
    %1563 = vmatpush1.xpose.msra.mxu0 0.0
    %1564 = vmatprep.subr.mxu0 0.0
    %1565 = vmatpush1.xpose.msra.mxu0 0.0
    %1566 = vmatprep.subr.mxu0 0.0
    %1567 = vmatpush1.xpose.msra.mxu0 0.0
    %1568 = vmatprep.subr.mxu0 0.0
    %1569 = vmatpush1.xpose.msra.mxu0 0.0
    %1570 = vmatprep.subr.mxu0 0.0
    %1571 = vmatpush1.xpose.msra.mxu0 0.0
    %1572 = vmatprep.subr.mxu0 0.0
    %1573 = vmatpush1.xpose.msra.mxu0 0.0
    %1574 = vmatprep.subr.mxu0 0.0
    %1575 = vmatpush1.xpose.msra.mxu0 0.0
    %1576 = vmatprep.subr.mxu0 0.0
    %1577 = vmatpush1.xpose.msra.mxu0 0.0
    %1578 = vmatprep.subr.mxu0 0.0
    %1579 = vmatpush1.xpose.msra.mxu0 0.0
    %1580 = vmatprep.subr.mxu0 0.0
    %1581 = vmatpush1.xpose.msra.mxu0 0.0
    %1582 = vmatprep.subr.mxu0 0.0
    %1583 = vmatpush1.xpose.msra.mxu0 0.0
    %1584 = vmatprep.subr.mxu0 0.0
    %1585 = vmatpush1.xpose.msra.mxu0 0.0
    %1586 = vmatprep.subr.mxu0 0.0
    %1587 = vmatpush1.xpose.msra.mxu0 0.0
    %1588 = vmatprep.subr.mxu0 0.0
    %1589 = vmatpush1.xpose.msra.mxu0 0.0
    %1590 = vmatprep.subr.mxu0 0.0
    %1591 = vmatpush1.xpose.msra.mxu0 0.0
    %1592 = vmatprep.subr.mxu0 0.0
    %1593 = vmatpush1.xpose.msra.mxu0 0.0
    %1594 = vmatprep.subr.mxu0 0.0
    %1595 = vmatpush1.xpose.msra.mxu0 0.0
    %1596 = vmatprep.subr.mxu0 0.0
    %1597 = vmatpush1.xpose.msra.mxu0 0.0
    %1598 = vmatprep.mubr.f32.mxu0 0.0
    %1599 = vmatmul.mubr.f32.gmra.mrb[0].mxu0 %v1530
    %v1600 = vpop.f32.mrb[0].mxu0
    %v1601 = vadd.f32 %v137, %v1600
    %v1602 = vpop.f32.mrb[0].mxu0
    %1603 = vdwg.mxu0
    %1604 = vrot.lane.b32.xlu0 %v286, 104
    %v1605 = vpop.permute.xlu0 %1604
    %1606 = vrot.lane.b32.xlu0 %v286, 72
    %v1607 = vpop.permute.xlu0 %1606
    %v1608 = vsel %vm292, %v1605, 0
    %v1610 = vsel %vm292, %v1607, 0
    %1612 = vmatprep.subr.mxu0 0.0
    %1613 = vmatpush1.xpose.msra.mxu0 %v1610
    %1614 = vmatprep.subr.mxu0 0.0
    %1615 = vmatpush1.xpose.msra.mxu0 0.0
    %1616 = vmatprep.subr.mxu0 0.0
    %1617 = vmatpush1.xpose.msra.mxu0 0.0
    %1618 = vmatprep.subr.mxu0 0.0
    %1619 = vmatpush1.xpose.msra.mxu0 0.0
    %1620 = vmatprep.subr.mxu0 0.0
    %1621 = vmatpush1.xpose.msra.mxu0 0.0
    %1622 = vmatprep.subr.mxu0 0.0
    %1623 = vmatpush1.xpose.msra.mxu0 0.0
    %1624 = vmatprep.subr.mxu0 0.0
    %1625 = vmatpush1.xpose.msra.mxu0 0.0
    %1626 = vmatprep.subr.mxu0 0.0
    %1627 = vmatpush1.xpose.msra.mxu0 0.0
    %1628 = vmatprep.subr.mxu0 0.0
    %1629 = vmatpush1.xpose.msra.mxu0 0.0
    %1630 = vmatprep.subr.mxu0 0.0
    %1631 = vmatpush1.xpose.msra.mxu0 0.0
    %1632 = vmatprep.subr.mxu0 0.0
    %1633 = vmatpush1.xpose.msra.mxu0 0.0
    %1634 = vmatprep.subr.mxu0 0.0
    %1635 = vmatpush1.xpose.msra.mxu0 0.0
    %1636 = vmatprep.subr.mxu0 0.0
    %1637 = vmatpush1.xpose.msra.mxu0 0.0
    %1638 = vmatprep.subr.mxu0 0.0
    %1639 = vmatpush1.xpose.msra.mxu0 0.0
    %1640 = vmatprep.subr.mxu0 0.0
    %1641 = vmatpush1.xpose.msra.mxu0 0.0
    %1642 = vmatprep.subr.mxu0 0.0
    %1643 = vmatpush1.xpose.msra.mxu0 0.0
    %1644 = vmatprep.subr.mxu0 0.0
    %1645 = vmatpush1.xpose.msra.mxu0 0.0
    %1646 = vmatprep.subr.mxu0 0.0
    %1647 = vmatpush1.xpose.msra.mxu0 0.0
    %1648 = vmatprep.subr.mxu0 0.0
    %1649 = vmatpush1.xpose.msra.mxu0 0.0
    %1650 = vmatprep.subr.mxu0 0.0
    %1651 = vmatpush1.xpose.msra.mxu0 0.0
    %1652 = vmatprep.subr.mxu0 0.0
    %1653 = vmatpush1.xpose.msra.mxu0 0.0
    %1654 = vmatprep.subr.mxu0 0.0
    %1655 = vmatpush1.xpose.msra.mxu0 0.0
    %1656 = vmatprep.subr.mxu0 0.0
    %1657 = vmatpush1.xpose.msra.mxu0 0.0
    %1658 = vmatprep.subr.mxu0 0.0
    %1659 = vmatpush1.xpose.msra.mxu0 0.0
    %1660 = vmatprep.subr.mxu0 0.0
    %1661 = vmatpush1.xpose.msra.mxu0 0.0
    %1662 = vmatprep.subr.mxu0 0.0
    %1663 = vmatpush1.xpose.msra.mxu0 0.0
    %1664 = vmatprep.subr.mxu0 0.0
    %1665 = vmatpush1.xpose.msra.mxu0 0.0
    %1666 = vmatprep.subr.mxu0 0.0
    %1667 = vmatpush1.xpose.msra.mxu0 0.0
    %1668 = vmatprep.subr.mxu0 0.0
    %1669 = vmatpush1.xpose.msra.mxu0 0.0
    %1670 = vmatprep.subr.mxu0 0.0
    %1671 = vmatpush1.xpose.msra.mxu0 0.0
    %1672 = vmatprep.subr.mxu0 0.0
    %1673 = vmatpush1.xpose.msra.mxu0 0.0
    %1674 = vmatprep.subr.mxu0 0.0
    %1675 = vmatpush1.xpose.msra.mxu0 0.0
    %1676 = vmatprep.mubr.f32.mxu0 0.0
    %1677 = vmatmul.mubr.f32.gmra.mrb[0].mxu0 %v1608
    %v1678 = vpop.f32.mrb[0].mxu0
    %v1679 = vadd.f32 %v138, %v1678
    %v1680 = vpop.f32.mrb[0].mxu0
    %1681 = vdwg.mxu0
    %v1682 = vsel %vm292, %v1601, -inf
    %1683 = vmax.xlane.f32.xlu0 %v1682
    %v1684 = vpop.xlane.xlu0 %1683
    %v1685 = vsel %vm292, %v1679, -inf
    %1686 = vmax.xlane.f32.xlu0 %v1685
    %v1687 = vpop.xlane.xlu0 %1686
    %v1688 = vsub.f32 %v1601, %v1684
    %v1689 = vsub.f32 %v1679, %v1687
    %v1690 = vmul.f32 %v1688, 1.442695
    %v1691 = vpow.pop %v1690
    %v1692 = vmul.f32 %v1689, 1.442695
    %v1693 = vpow.pop %v1692
    %v1694 = vsel %vm292, %v1691, 0.0
    %1695 = vadd.xlane.f32.xlu0 %v1694
    %v1696 = vpop.xlane.xlu0 %1695
    %v1697 = vsel %vm292, %v1693, 0.0
    %1698 = vadd.xlane.f32.xlu0 %v1697
    %v1699 = vpop.xlane.xlu0 %1698
    %v1700 = vrcp.pop %v1696
    %v1701 = vrcp.pop %v1699
    %v1702 = vmul.f32 %v1691, %v1700
    %v1703 = vmul.f32 %v1693, %v1701
    %1704 = vrot.lane.b32.xlu0 %v281, 40
    %v1705 = vpop.permute.xlu0 %1704
    %v1708 = vsel %vm292, %v1702, 0
    %1710 = vmatprep.subr.mxu0 0.0
    %1711 = vmatpush1.msra.mxu0 %v1705
    %1712 = vmatprep.subr.mxu0 0.0
    %1713 = vmatpush1.msra.mxu0 0.0
    %1714 = vmatprep.subr.mxu0 0.0
    %1715 = vmatpush1.msra.mxu0 0.0
    %1716 = vmatprep.subr.mxu0 0.0
    %1717 = vmatpush1.msra.mxu0 0.0
    %1718 = vmatprep.subr.mxu0 0.0
    %1719 = vmatpush1.msra.mxu0 0.0
    %1720 = vmatprep.subr.mxu0 0.0
    %1721 = vmatpush1.msra.mxu0 0.0
    %1722 = vmatprep.subr.mxu0 0.0
    %1723 = vmatpush1.msra.mxu0 0.0
    %1724 = vmatprep.subr.mxu0 0.0
    %1725 = vmatpush1.msra.mxu0 0.0
    %1726 = vmatprep.subr.mxu0 0.0
    %1727 = vmatpush1.msra.mxu0 0.0
    %1728 = vmatprep.subr.mxu0 0.0
    %1729 = vmatpush1.msra.mxu0 0.0
    %1730 = vmatprep.subr.mxu0 0.0
    %1731 = vmatpush1.msra.mxu0 0.0
    %1732 = vmatprep.subr.mxu0 0.0
    %1733 = vmatpush1.msra.mxu0 0.0
    %1734 = vmatprep.subr.mxu0 0.0
    %1735 = vmatpush1.msra.mxu0 0.0
    %1736 = vmatprep.subr.mxu0 0.0
    %1737 = vmatpush1.msra.mxu0 0.0
    %1738 = vmatprep.subr.mxu0 0.0
    %1739 = vmatpush1.msra.mxu0 0.0
    %1740 = vmatprep.subr.mxu0 0.0
    %1741 = vmatpush1.msra.mxu0 0.0
    %1742 = vmatprep.subr.mxu0 0.0
    %1743 = vmatpush1.msra.mxu0 0.0
    %1744 = vmatprep.subr.mxu0 0.0
    %1745 = vmatpush1.msra.mxu0 0.0
    %1746 = vmatprep.subr.mxu0 0.0
    %1747 = vmatpush1.msra.mxu0 0.0
    %1748 = vmatprep.subr.mxu0 0.0
    %1749 = vmatpush1.msra.mxu0 0.0
    %1750 = vmatprep.subr.mxu0 0.0
    %1751 = vmatpush1.msra.mxu0 0.0
    %1752 = vmatprep.subr.mxu0 0.0
    %1753 = vmatpush1.msra.mxu0 0.0
    %1754 = vmatprep.subr.mxu0 0.0
    %1755 = vmatpush1.msra.mxu0 0.0
    %1756 = vmatprep.subr.mxu0 0.0
    %1757 = vmatpush1.msra.mxu0 0.0
    %1758 = vmatprep.subr.mxu0 0.0
    %1759 = vmatpush1.msra.mxu0 0.0
    %1760 = vmatprep.subr.mxu0 0.0
    %1761 = vmatpush1.msra.mxu0 0.0
    %1762 = vmatprep.subr.mxu0 0.0
    %1763 = vmatpush1.msra.mxu0 0.0
    %1764 = vmatprep.subr.mxu0 0.0
    %1765 = vmatpush1.msra.mxu0 0.0
    %1766 = vmatprep.subr.mxu0 0.0
    %1767 = vmatpush1.msra.mxu0 0.0
    %1768 = vmatprep.subr.mxu0 0.0
    %1769 = vmatpush1.msra.mxu0 0.0
    %1770 = vmatprep.subr.mxu0 0.0
    %1771 = vmatpush1.msra.mxu0 0.0
    %1772 = vmatprep.subr.mxu0 0.0
    %1773 = vmatpush1.msra.mxu0 0.0
    %1774 = vmatprep.mubr.f32.mxu0 0.0
    %1775 = vmatmul.mubr.f32.gmra.mrb[0].mxu0 %v1708
    %v1776 = vpop.f32.mrb[0].mxu0
    %v1777 = vadd.f32 0.0, %v1776
    %v1778 = vpop.f32.mrb[0].mxu0
    %1779 = vdwg.mxu0
    %1780 = vrot.lane.b32.xlu0 %v286, 40
    %v1781 = vpop.permute.xlu0 %1780
    %v1784 = vsel %vm292, %v1703, 0
    %1786 = vmatprep.subr.mxu0 0.0
    %1787 = vmatpush1.msra.mxu0 %v1781
    %1788 = vmatprep.subr.mxu0 0.0
    %1789 = vmatpush1.msra.mxu0 0.0
    %1790 = vmatprep.subr.mxu0 0.0
    %1791 = vmatpush1.msra.mxu0 0.0
    %1792 = vmatprep.subr.mxu0 0.0
    %1793 = vmatpush1.msra.mxu0 0.0
    %1794 = vmatprep.subr.mxu0 0.0
    %1795 = vmatpush1.msra.mxu0 0.0
    %1796 = vmatprep.subr.mxu0 0.0
    %1797 = vmatpush1.msra.mxu0 0.0
    %1798 = vmatprep.subr.mxu0 0.0
    %1799 = vmatpush1.msra.mxu0 0.0
    %1800 = vmatprep.subr.mxu0 0.0
    %1801 = vmatpush1.msra.mxu0 0.0
    %1802 = vmatprep.subr.mxu0 0.0
    %1803 = vmatpush1.msra.mxu0 0.0
    %1804 = vmatprep.subr.mxu0 0.0
    %1805 = vmatpush1.msra.mxu0 0.0
    %1806 = vmatprep.subr.mxu0 0.0
    %1807 = vmatpush1.msra.mxu0 0.0
    %1808 = vmatprep.subr.mxu0 0.0
    %1809 = vmatpush1.msra.mxu0 0.0
    %1810 = vmatprep.subr.mxu0 0.0
    %1811 = vmatpush1.msra.mxu0 0.0
    %1812 = vmatprep.subr.mxu0 0.0
    %1813 = vmatpush1.msra.mxu0 0.0
    %1814 = vmatprep.subr.mxu0 0.0
    %1815 = vmatpush1.msra.mxu0 0.0
    %1816 = vmatprep.subr.mxu0 0.0
    %1817 = vmatpush1.msra.mxu0 0.0
    %1818 = vmatprep.subr.mxu0 0.0
    %1819 = vmatpush1.msra.mxu0 0.0
    %1820 = vmatprep.subr.mxu0 0.0
    %1821 = vmatpush1.msra.mxu0 0.0
    %1822 = vmatprep.subr.mxu0 0.0
    %1823 = vmatpush1.msra.mxu0 0.0
    %1824 = vmatprep.subr.mxu0 0.0
    %1825 = vmatpush1.msra.mxu0 0.0
    %1826 = vmatprep.subr.mxu0 0.0
    %1827 = vmatpush1.msra.mxu0 0.0
    %1828 = vmatprep.subr.mxu0 0.0
    %1829 = vmatpush1.msra.mxu0 0.0
    %1830 = vmatprep.subr.mxu0 0.0
    %1831 = vmatpush1.msra.mxu0 0.0
    %1832 = vmatprep.subr.mxu0 0.0
    %1833 = vmatpush1.msra.mxu0 0.0
    %1834 = vmatprep.subr.mxu0 0.0
    %1835 = vmatpush1.msra.mxu0 0.0
    %1836 = vmatprep.subr.mxu0 0.0
    %1837 = vmatpush1.msra.mxu0 0.0
    %1838 = vmatprep.subr.mxu0 0.0
    %1839 = vmatpush1.msra.mxu0 0.0
    %1840 = vmatprep.subr.mxu0 0.0
    %1841 = vmatpush1.msra.mxu0 0.0
    %1842 = vmatprep.subr.mxu0 0.0
    %1843 = vmatpush1.msra.mxu0 0.0
    %1844 = vmatprep.subr.mxu0 0.0
    %1845 = vmatpush1.msra.mxu0 0.0
    %1846 = vmatprep.subr.mxu0 0.0
    %1847 = vmatpush1.msra.mxu0 0.0
    %1848 = vmatprep.subr.mxu0 0.0
    %1849 = vmatpush1.msra.mxu0 0.0
    %1850 = vmatprep.mubr.f32.mxu0 0.0
    %1851 = vmatmul.mubr.f32.gmra.mrb[0].mxu0 %v1784
    %v1852 = vpop.f32.mrb[0].mxu0
    %v1853 = vadd.f32 0.0, %v1852
    %v1854 = vpop.f32.mrb[0].mxu0
    %1855 = vdwg.mxu0
    %v1856 = vld [vmem:[#allocation2 + $0xb0] sm:$0xff]
    %v1858 = vsel %vm292, %v1777, 0
    %v1861 = vsel %vm292, %v1853, 0
    %1863 = vmatprep.subr.mxu0 0.0
    %1864 = vmatpush1.msra.mxu0 %v1856
    %1865 = vmatprep.subr.mxu0 0.0
    %1866 = vmatpush1.msra.mxu0 0.0
    %1867 = vmatprep.subr.mxu0 0.0
    %1868 = vmatpush1.msra.mxu0 0.0
    %1869 = vmatprep.subr.mxu0 0.0
    %1870 = vmatpush1.msra.mxu0 0.0
    %1871 = vmatprep.subr.mxu0 0.0
    %1872 = vmatpush1.msra.mxu0 0.0
    %1873 = vmatprep.subr.mxu0 0.0
    %1874 = vmatpush1.msra.mxu0 0.0
    %1875 = vmatprep.subr.mxu0 0.0
    %1876 = vmatpush1.msra.mxu0 0.0
    %1877 = vmatprep.subr.mxu0 0.0
    %1878 = vmatpush1.msra.mxu0 0.0
    %1879 = vmatprep.subr.mxu0 0.0
    %1880 = vmatpush1.msra.mxu0 0.0
    %1881 = vmatprep.subr.mxu0 0.0
    %1882 = vmatpush1.msra.mxu0 0.0
    %1883 = vmatprep.subr.mxu0 0.0
    %1884 = vmatpush1.msra.mxu0 0.0
    %1885 = vmatprep.subr.mxu0 0.0
    %1886 = vmatpush1.msra.mxu0 0.0
    %1887 = vmatprep.subr.mxu0 0.0
    %1888 = vmatpush1.msra.mxu0 0.0
    %1889 = vmatprep.subr.mxu0 0.0
    %1890 = vmatpush1.msra.mxu0 0.0
    %1891 = vmatprep.subr.mxu0 0.0
    %1892 = vmatpush1.msra.mxu0 0.0
    %1893 = vmatprep.subr.mxu0 0.0
    %1894 = vmatpush1.msra.mxu0 0.0
    %1895 = vmatprep.subr.mxu0 0.0
    %1896 = vmatpush1.msra.mxu0 0.0
    %1897 = vmatprep.subr.mxu0 0.0
    %1898 = vmatpush1.msra.mxu0 0.0
    %1899 = vmatprep.subr.mxu0 0.0
    %1900 = vmatpush1.msra.mxu0 0.0
    %1901 = vmatprep.subr.mxu0 0.0
    %1902 = vmatpush1.msra.mxu0 0.0
    %1903 = vmatprep.subr.mxu0 0.0
    %1904 = vmatpush1.msra.mxu0 0.0
    %1905 = vmatprep.subr.mxu0 0.0
    %1906 = vmatpush1.msra.mxu0 0.0
    %1907 = vmatprep.subr.mxu0 0.0
    %1908 = vmatpush1.msra.mxu0 0.0
    %1909 = vmatprep.subr.mxu0 0.0
    %1910 = vmatpush1.msra.mxu0 0.0
    %1911 = vmatprep.subr.mxu0 0.0
    %1912 = vmatpush1.msra.mxu0 0.0
    %1913 = vmatprep.subr.mxu0 0.0
    %1914 = vmatpush1.msra.mxu0 0.0
    %1915 = vmatprep.subr.mxu0 0.0
    %1916 = vmatpush1.msra.mxu0 0.0
    %1917 = vmatprep.subr.mxu0 0.0
    %1918 = vmatpush1.msra.mxu0 0.0
    %1919 = vmatprep.subr.mxu0 0.0
    %1920 = vmatpush1.msra.mxu0 0.0
    %1921 = vmatprep.subr.mxu0 0.0
    %1922 = vmatpush1.msra.mxu0 0.0
    %1923 = vmatprep.subr.mxu0 0.0
    %1924 = vmatpush1.msra.mxu0 0.0
    %1925 = vmatprep.subr.mxu0 0.0
    %1926 = vmatpush1.msra.mxu0 0.0
    %1927 = vmatprep.mubr.f32.mxu0 0.0
    %1928 = vmatmul.mubr.f32.gmra.mrb[0].mxu0 %v1858
    %v1929 = vpop.f32.mrb[0].mxu0
    %v1930 = vadd.f32 0.0, %v1929
    %v1931 = vpop.f32.mrb[0].mxu0
    %1932 = vmatprep.mubr.f32.mxu0 0.0
    %1933 = vmatmul.mubr.f32.gmra.mrb[0].mxu0 %v1861
    %v1934 = vpop.f32.mrb[0].mxu0
    %v1935 = vadd.f32 0.0, %v1934
    %v1936 = vpop.f32.mrb[0].mxu0
    %1937 = vdwg.mxu0
    %v1938 = vadd.f32 %v1524, %v1930
    %v1939 = vadd.f32 %v1525, %v1935
    %v1940 = vadd.f32 %v129, %v1938
    %v1941 = vadd.f32 %v134, %v1939
    %v1942 = vlaneseq
    %v1943 = vshrl.u32 %v1942, 7
    %v1944 = vsub.s32 2, %v1943
    %v1945 = vrot.slane %v163, %v1944
    %v1946 = vadd.f32 %v1940, %v1945
    %v1947 = vadd.f32 %v1941, %v1945
    %v1948 = vsel %vm164, %v1946, 0.0
    %1949 = vadd.xlane.f32.xlu0 %v1948
    %v1950 = vpop.xlane.xlu0 %1949
    %v1951 = vsel %vm164, %v1947, 0.0
    %1952 = vadd.xlane.f32.xlu0 %v1951
    %v1953 = vpop.xlane.xlu0 %1952
    %v1954 = vmul.f32 %v1950, %v171
    %v1955 = vmul.f32 %v1953, %v171
    %v1956 = vsub.f32 %v1946, %v1954
    %v1957 = vsub.f32 %v1947, %v1955
    %v1958 = vmul.f32 %v1956, %v1956
    %v1959 = vmul.f32 %v1957, %v1957
    %v1960 = vsel %vm164, %v1958, 0.0
    %1961 = vadd.xlane.f32.xlu0 %v1960
    %v1962 = vpop.xlane.xlu0 %1961
    %v1963 = vsel %vm164, %v1959, 0.0
    %1964 = vadd.xlane.f32.xlu0 %v1963
    %v1965 = vpop.xlane.xlu0 %1964
    %v1966 = vmul.f32 %v1962, %v171
    %v1967 = vmul.f32 %v1965, %v171
    %1970 = vrot.lane.b32.xlu0 %v1956, 64
    %v1971 = vpop.permute.xlu0 %1970
    %1972 = vrot.lane.b32.xlu0 %v1957, 64
    %v1973 = vpop.permute.xlu0 %1972
    %v1976 = vmul.f32 %v189, %v1971
    %v1977 = vmul.f32 %v189, %v1973
    %v1978 = vadd.f32 %v1966, 1e-05
    %v1979 = vadd.f32 %v1967, 1e-05
    %v1980 = vrsqrt.pop %v1978
    %v1981 = vrsqrt.pop %v1979
    %v1982 = vmul.f32 %v1976, %v1980
    %v1983 = vmul.f32 %v1977, %v1981
    %v1984 = vadd.f32 %v1982, %v200
    %v1985 = vadd.f32 %v1983, %v200
    %v1986 = vlaneseq
    %v1987 = vshrl.u32 %v1986, 7
    %v1988 = vsub.s32 1, %v1987
    %v1989 = vrot.slane %v163, %v1988
    %1992 = vrot.lane.b32.xlu0 %v1984, 64
    %v1993 = vpop.permute.xlu0 %1992
    %1994 = vrot.lane.b32.xlu0 %v1985, 64
    %v1995 = vpop.permute.xlu0 %1994
    %v1996 = vsel %vm164, %v1993, 0
    %v1998 = vsel %vm164, %v1995, 0
    %2000 = vmatprep.subr.mxu0 0.0
    %2001 = vmatpush1.msra.mxu0 %v143
    %2002 = vmatprep.subr.mxu0 0.0
    %2003 = vmatpush1.msra.mxu0 %v144
    %2004 = vmatprep.subr.mxu0 0.0
    %2005 = vmatpush1.msra.mxu0 %v145
    %2006 = vmatprep.subr.mxu0 0.0
    %2007 = vmatpush1.msra.mxu0 %v146
    %2008 = vmatprep.subr.mxu0 0.0
    %2009 = vmatpush1.msra.mxu0 0.0
    %2010 = vmatprep.subr.mxu0 0.0
    %2011 = vmatpush1.msra.mxu0 0.0
    %2012 = vmatprep.subr.mxu0 0.0
    %2013 = vmatpush1.msra.mxu0 0.0
    %2014 = vmatprep.subr.mxu0 0.0
    %2015 = vmatpush1.msra.mxu0 0.0
    %2016 = vmatprep.subr.mxu0 0.0
    %2017 = vmatpush1.msra.mxu0 0.0
    %2018 = vmatprep.subr.mxu0 0.0
    %2019 = vmatpush1.msra.mxu0 0.0
    %2020 = vmatprep.subr.mxu0 0.0
    %2021 = vmatpush1.msra.mxu0 0.0
    %2022 = vmatprep.subr.mxu0 0.0
    %2023 = vmatpush1.msra.mxu0 0.0
    %2024 = vmatprep.subr.mxu0 0.0
    %2025 = vmatpush1.msra.mxu0 0.0
    %2026 = vmatprep.subr.mxu0 0.0
    %2027 = vmatpush1.msra.mxu0 0.0
    %2028 = vmatprep.subr.mxu0 0.0
    %2029 = vmatpush1.msra.mxu0 0.0
    %2030 = vmatprep.subr.mxu0 0.0
    %2031 = vmatpush1.msra.mxu0 0.0
    %2032 = vmatprep.subr.mxu0 0.0
    %2033 = vmatpush1.msra.mxu0 0.0
    %2034 = vmatprep.subr.mxu0 0.0
    %2035 = vmatpush1.msra.mxu0 0.0
    %2036 = vmatprep.subr.mxu0 0.0
    %2037 = vmatpush1.msra.mxu0 0.0
    %2038 = vmatprep.subr.mxu0 0.0
    %2039 = vmatpush1.msra.mxu0 0.0
    %2040 = vmatprep.subr.mxu0 0.0
    %2041 = vmatpush1.msra.mxu0 0.0
    %2042 = vmatprep.subr.mxu0 0.0
    %2043 = vmatpush1.msra.mxu0 0.0
    %2044 = vmatprep.subr.mxu0 0.0
    %2045 = vmatpush1.msra.mxu0 0.0
    %2046 = vmatprep.subr.mxu0 0.0
    %2047 = vmatpush1.msra.mxu0 0.0
    %2048 = vmatprep.subr.mxu0 0.0
    %2049 = vmatpush1.msra.mxu0 0.0
    %2050 = vmatprep.subr.mxu0 0.0
    %2051 = vmatpush1.msra.mxu0 0.0
    %2052 = vmatprep.subr.mxu0 0.0
    %2053 = vmatpush1.msra.mxu0 0.0
    %2054 = vmatprep.subr.mxu0 0.0
    %2055 = vmatpush1.msra.mxu0 0.0
    %2056 = vmatprep.subr.mxu0 0.0
    %2057 = vmatpush1.msra.mxu0 0.0
    %2058 = vmatprep.subr.mxu0 0.0
    %2059 = vmatpush1.msra.mxu0 0.0
    %2060 = vmatprep.subr.mxu0 0.0
    %2061 = vmatpush1.msra.mxu0 0.0
    %2062 = vmatprep.subr.mxu0 0.0
    %2063 = vmatpush1.msra.mxu0 0.0
    %2064 = vmatprep.mubr.f32.mxu0 0.0
    %2065 = vmatmul.mubr.f32.gmra.mrb[0].mxu0 %v1996
    %v2066 = vpop.f32.mrb[0].mxu0
    %v2067 = vadd.f32 %v1989, %v2066
    %v2068 = vpop.f32.mrb[0].mxu0
    %2069 = vmatprep.mubr.f32.mxu0 0.0
    %2070 = vmatmul.mubr.f32.gmra.mrb[0].mxu0 %v1998
    %v2071 = vpop.f32.mrb[0].mxu0
    %v2072 = vadd.f32 %v1989, %v2071
    %v2073 = vpop.f32.mrb[0].mxu0
    %2074 = vdwg.mxu0
    %v2075 = vmax.f32 %v2067, 0.0
    %v2076 = vmax.f32 %v2072, 0.0
    %2077 = vmatprep.subr.mxu0 0.0
    %2078 = vmatpush1.msra.mxu0 %v147
    %2079 = vmatprep.subr.mxu0 0.0
    %2080 = vmatpush1.msra.mxu0 %v148
    %2081 = vmatprep.subr.mxu0 0.0
    %2082 = vmatpush1.msra.mxu0 %v149
    %2083 = vmatprep.subr.mxu0 0.0
    %2084 = vmatpush1.msra.mxu0 %v150
    %2085 = vmatprep.subr.mxu0 0.0
    %2086 = vmatpush1.msra.mxu0 %v151
    %2087 = vmatprep.subr.mxu0 0.0
    %2088 = vmatpush1.msra.mxu0 %v152
    %2089 = vmatprep.subr.mxu0 0.0
    %2090 = vmatpush1.msra.mxu0 %v153
    %2091 = vmatprep.subr.mxu0 0.0
    %2092 = vmatpush1.msra.mxu0 %v154
    %2093 = vmatprep.subr.mxu0 0.0
    %2094 = vmatpush1.msra.mxu0 %v155
    %2095 = vmatprep.subr.mxu0 0.0
    %2096 = vmatpush1.msra.mxu0 %v156
    %2097 = vmatprep.subr.mxu0 0.0
    %2098 = vmatpush1.msra.mxu0 %v157
    %2099 = vmatprep.subr.mxu0 0.0
    %2100 = vmatpush1.msra.mxu0 %v158
    %2101 = vmatprep.subr.mxu0 0.0
    %2102 = vmatpush1.msra.mxu0 %v159
    %2103 = vmatprep.subr.mxu0 0.0
    %2104 = vmatpush1.msra.mxu0 %v160
    %2105 = vmatprep.subr.mxu0 0.0
    %2106 = vmatpush1.msra.mxu0 %v161
    %2107 = vmatprep.subr.mxu0 0.0
    %2108 = vmatpush1.msra.mxu0 %v162
    %2109 = vmatprep.subr.mxu0 0.0
    %2110 = vmatpush1.msra.mxu0 0.0
    %2111 = vmatprep.subr.mxu0 0.0
    %2112 = vmatpush1.msra.mxu0 0.0
    %2113 = vmatprep.subr.mxu0 0.0
    %2114 = vmatpush1.msra.mxu0 0.0
    %2115 = vmatprep.subr.mxu0 0.0
    %2116 = vmatpush1.msra.mxu0 0.0
    %2117 = vmatprep.subr.mxu0 0.0
    %2118 = vmatpush1.msra.mxu0 0.0
    %2119 = vmatprep.subr.mxu0 0.0
    %2120 = vmatpush1.msra.mxu0 0.0
    %2121 = vmatprep.subr.mxu0 0.0
    %2122 = vmatpush1.msra.mxu0 0.0
    %2123 = vmatprep.subr.mxu0 0.0
    %2124 = vmatpush1.msra.mxu0 0.0
    %2125 = vmatprep.subr.mxu0 0.0
    %2126 = vmatpush1.msra.mxu0 0.0
    %2127 = vmatprep.subr.mxu0 0.0
    %2128 = vmatpush1.msra.mxu0 0.0
    %2129 = vmatprep.subr.mxu0 0.0
    %2130 = vmatpush1.msra.mxu0 0.0
    %2131 = vmatprep.subr.mxu0 0.0
    %2132 = vmatpush1.msra.mxu0 0.0
    %2133 = vmatprep.subr.mxu0 0.0
    %2134 = vmatpush1.msra.mxu0 0.0
    %2135 = vmatprep.subr.mxu0 0.0
    %2136 = vmatpush1.msra.mxu0 0.0
    %2137 = vmatprep.subr.mxu0 0.0
    %2138 = vmatpush1.msra.mxu0 0.0
    %2139 = vmatprep.subr.mxu0 0.0
    %2140 = vmatpush1.msra.mxu0 0.0
    %2141 = vmatprep.mubr.f32.mxu0 0.0
    %2142 = vmatmul.mubr.f32.gmra.mrb[0].mxu0 %v2075
    %v2143 = vpop.f32.mrb[0].mxu0
    %v2144 = vadd.f32 0.0, %v2143
    %v2145 = vpop.f32.mrb[0].mxu0
    %2146 = vmatprep.mubr.f32.mxu0 0.0
    %2147 = vmatmul.mubr.f32.gmra.mrb[0].mxu0 %v2076
    %v2148 = vpop.f32.mrb[0].mxu0
    %v2149 = vadd.f32 0.0, %v2148
    %v2150 = vpop.f32.mrb[0].mxu0
    %2151 = vdwg.mxu0
    %v2152 = vadd.f32 %v1946, %v2144
    %v2153 = vadd.f32 %v1947, %v2149
    %2155 = vrot.lane.b32.xlu0 %v1945, 96
    %v2156 = vpop.permute.xlu0 %2155
    %v2158 = vadd.f32 %v2152, %v2156
    %v2159 = vadd.f32 %v2153, %v2156
    %v2160 = vld [vmem:[#allocation2 + $0x160] sm:$0xff]
    %v2161 = vld [vmem:[#allocation2 + $0x168] sm:$0xff]
    %v2162 = vld [vmem:[#allocation2 + $0x170] sm:$0xff]
    %v2163 = vld [vmem:[#allocation2 + $0x178] sm:$0xff]
    %v2164 = vld [vmem:[#allocation2 + $0x1a0] sm:$0xff]
    %v2165 = vld [vmem:[#allocation2 + $0x1a8] sm:$0xff]
    %v2166 = vld [vmem:[#allocation2 + $0x1b0] sm:$0xff]
    %v2167 = vld [vmem:[#allocation2 + $0x1b8] sm:$0xff]
    %v2168 = vld [vmem:[#allocation2 + $0x1c0] sm:$0xff]
    %v2169 = vld [vmem:[#allocation2 + $0x1c8] sm:$0xff]
    %v2170 = vld [vmem:[#allocation2 + $0x1d0] sm:$0xff]
    %v2171 = vld [vmem:[#allocation2 + $0x1d8] sm:$0xff]
    %v2172 = vld [vmem:[#allocation2 + $0x1e0] sm:$0xff]
    %v2173 = vld [vmem:[#allocation2 + $0x1e8] sm:$0xff]
    %v2174 = vld [vmem:[#allocation2 + $0x1f0] sm:$0xff]
    %v2175 = vld [vmem:[#allocation2 + $0x1f8] sm:$0xff]
    %v2176 = vld [vmem:[#allocation2 + $0x200] sm:$0xff]
    %v2177 = vld [vmem:[#allocation2 + $0x208] sm:$0xff]
    %v2178 = vld [vmem:[#allocation2 + $0x210] sm:$0xff]
    %v2179 = vld [vmem:[#allocation2 + $0x218] sm:$0xff]
    %v2180 = vld [vmem:[#allocation2 + $0x220] sm:$0xff]
    %v2181 = vld [vmem:[#allocation2 + $0x228] sm:$0xff]
    %v2182 = vld [vmem:[#allocation2 + $0x230] sm:$0xff]
    %v2183 = vld [vmem:[#allocation2 + $0x238] sm:$0xff]
    %v2184 = vld [vmem:[#allocation2 + $0x240] sm:$0xf]
    %v2185 = vsel %vm164, %v2158, 0.0
    %2186 = vadd.xlane.f32.xlu0 %v2185
    %v2187 = vpop.xlane.xlu0 %2186
    %v2188 = vsel %vm164, %v2159, 0.0
    %2189 = vadd.xlane.f32.xlu0 %v2188
    %v2190 = vpop.xlane.xlu0 %2189
    %v2191 = vmul.f32 %v2187, %v171
    %v2192 = vmul.f32 %v2190, %v171
    %v2193 = vsub.f32 %v2158, %v2191
    %v2194 = vsub.f32 %v2159, %v2192
    %v2195 = vmul.f32 %v2193, %v2193
    %v2196 = vmul.f32 %v2194, %v2194
    %v2197 = vsel %vm164, %v2195, 0.0
    %2198 = vadd.xlane.f32.xlu0 %v2197
    %v2199 = vpop.xlane.xlu0 %2198
    %v2200 = vsel %vm164, %v2196, 0.0
    %2201 = vadd.xlane.f32.xlu0 %v2200
    %v2202 = vpop.xlane.xlu0 %2201
    %v2203 = vmul.f32 %v2199, %v171
    %v2204 = vmul.f32 %v2202, %v171
    %v2205 = vlaneseq
    %v2206 = vshrl.u32 %v2205, 7
    %v2207 = vsub.s32 3, %v2206
    %v2208 = vrot.slane %v2184, %v2207
    %v2209 = vmul.f32 %v2208, %v2193
    %v2210 = vmul.f32 %v2208, %v2194
    %v2211 = vadd.f32 %v2203, 1e-05
    %v2212 = vadd.f32 %v2204, 1e-05
    %v2213 = vrsqrt.pop %v2211
    %v2214 = vrsqrt.pop %v2212
    %v2215 = vmul.f32 %v2209, %v2213
    %v2216 = vmul.f32 %v2210, %v2214
    %2218 = vrot.lane.b32.xlu0 %v2208, 96
    %v2219 = vpop.permute.xlu0 %2218
    %v2221 = vadd.f32 %v2215, %v2219
    %v2222 = vadd.f32 %v2216, %v2219
    %v2223 = vlaneseq
    %v2224 = vshrl.u32 %v2223, 7
    %v2225 = vsub.s32 0, %v2224
    %v2226 = vrot.slane %v2184, %v2225
    %v2228 = vsel %vm164, %v2221, 0
    %v2231 = vsel %vm164, %v2222, 0
    %2233 = vmatprep.subr.mxu0 0.0
    %2234 = vmatpush1.msra.mxu0 %v2160
    %2235 = vmatprep.subr.mxu0 0.0
    %2236 = vmatpush1.msra.mxu0 %v2161
    %2237 = vmatprep.subr.mxu0 0.0
    %2238 = vmatpush1.msra.mxu0 %v2162
    %2239 = vmatprep.subr.mxu0 0.0
    %2240 = vmatpush1.msra.mxu0 %v2163
    %2241 = vmatprep.subr.mxu0 0.0
    %2242 = vmatpush1.msra.mxu0 0.0
    %2243 = vmatprep.subr.mxu0 0.0
    %2244 = vmatpush1.msra.mxu0 0.0
    %2245 = vmatprep.subr.mxu0 0.0
    %2246 = vmatpush1.msra.mxu0 0.0
    %2247 = vmatprep.subr.mxu0 0.0
    %2248 = vmatpush1.msra.mxu0 0.0
    %2249 = vmatprep.subr.mxu0 0.0
    %2250 = vmatpush1.msra.mxu0 0.0
    %2251 = vmatprep.subr.mxu0 0.0
    %2252 = vmatpush1.msra.mxu0 0.0
    %2253 = vmatprep.subr.mxu0 0.0
    %2254 = vmatpush1.msra.mxu0 0.0
    %2255 = vmatprep.subr.mxu0 0.0
    %2256 = vmatpush1.msra.mxu0 0.0
    %2257 = vmatprep.subr.mxu0 0.0
    %2258 = vmatpush1.msra.mxu0 0.0
    %2259 = vmatprep.subr.mxu0 0.0
    %2260 = vmatpush1.msra.mxu0 0.0
    %2261 = vmatprep.subr.mxu0 0.0
    %2262 = vmatpush1.msra.mxu0 0.0
    %2263 = vmatprep.subr.mxu0 0.0
    %2264 = vmatpush1.msra.mxu0 0.0
    %2265 = vmatprep.subr.mxu0 0.0
    %2266 = vmatpush1.msra.mxu0 0.0
    %2267 = vmatprep.subr.mxu0 0.0
    %2268 = vmatpush1.msra.mxu0 0.0
    %2269 = vmatprep.subr.mxu0 0.0
    %2270 = vmatpush1.msra.mxu0 0.0
    %2271 = vmatprep.subr.mxu0 0.0
    %2272 = vmatpush1.msra.mxu0 0.0
    %2273 = vmatprep.subr.mxu0 0.0
    %2274 = vmatpush1.msra.mxu0 0.0
    %2275 = vmatprep.subr.mxu0 0.0
    %2276 = vmatpush1.msra.mxu0 0.0
    %2277 = vmatprep.subr.mxu0 0.0
    %2278 = vmatpush1.msra.mxu0 0.0
    %2279 = vmatprep.subr.mxu0 0.0
    %2280 = vmatpush1.msra.mxu0 0.0
    %2281 = vmatprep.subr.mxu0 0.0
    %2282 = vmatpush1.msra.mxu0 0.0
    %2283 = vmatprep.subr.mxu0 0.0
    %2284 = vmatpush1.msra.mxu0 0.0
    %2285 = vmatprep.subr.mxu0 0.0
    %2286 = vmatpush1.msra.mxu0 0.0
    %2287 = vmatprep.subr.mxu0 0.0
    %2288 = vmatpush1.msra.mxu0 0.0
    %2289 = vmatprep.subr.mxu0 0.0
    %2290 = vmatpush1.msra.mxu0 0.0
    %2291 = vmatprep.subr.mxu0 0.0
    %2292 = vmatpush1.msra.mxu0 0.0
    %2293 = vmatprep.subr.mxu0 0.0
    %2294 = vmatpush1.msra.mxu0 0.0
    %2295 = vmatprep.subr.mxu0 0.0
    %2296 = vmatpush1.msra.mxu0 0.0
    %2297 = vmatprep.mubr.f32.mxu0 0.0
    %2298 = vmatmul.mubr.f32.gmra.mrb[0].mxu0 %v2228
    %v2299 = vpop.f32.mrb[0].mxu0
    %v2300 = vadd.f32 %v2226, %v2299
    %v2301 = vpop.f32.mrb[0].mxu0
    %2302 = vmatprep.mubr.f32.mxu0 0.0
    %2303 = vmatmul.mubr.f32.gmra.mrb[0].mxu0 %v2231
    %v2304 = vpop.f32.mrb[0].mxu0
    %v2305 = vadd.f32 %v2226, %v2304
    %v2306 = vpop.f32.mrb[0].mxu0
    %2307 = vdwg.mxu0
    %2309 = vrot.lane.b32.xlu0 %v2300, 96
    %v2310 = vpop.permute.xlu0 %2309
    %v2311 = vsel %vm292, %v2300, 0
    %v2313 = vsel %vm292, %v2310, 0
    %2315 = vmatprep.subr.mxu0 0.0
    %2316 = vmatpush1.xpose.msra.mxu0 %v2313
    %2317 = vmatprep.subr.mxu0 0.0
    %2318 = vmatpush1.xpose.msra.mxu0 0.0
    %2319 = vmatprep.subr.mxu0 0.0
    %2320 = vmatpush1.xpose.msra.mxu0 0.0
    %2321 = vmatprep.subr.mxu0 0.0
    %2322 = vmatpush1.xpose.msra.mxu0 0.0
    %2323 = vmatprep.subr.mxu0 0.0
    %2324 = vmatpush1.xpose.msra.mxu0 0.0
    %2325 = vmatprep.subr.mxu0 0.0
    %2326 = vmatpush1.xpose.msra.mxu0 0.0
    %2327 = vmatprep.subr.mxu0 0.0
    %2328 = vmatpush1.xpose.msra.mxu0 0.0
    %2329 = vmatprep.subr.mxu0 0.0
    %2330 = vmatpush1.xpose.msra.mxu0 0.0
    %2331 = vmatprep.subr.mxu0 0.0
    %2332 = vmatpush1.xpose.msra.mxu0 0.0
    %2333 = vmatprep.subr.mxu0 0.0
    %2334 = vmatpush1.xpose.msra.mxu0 0.0
    %2335 = vmatprep.subr.mxu0 0.0
    %2336 = vmatpush1.xpose.msra.mxu0 0.0
    %2337 = vmatprep.subr.mxu0 0.0
    %2338 = vmatpush1.xpose.msra.mxu0 0.0
    %2339 = vmatprep.subr.mxu0 0.0
    %2340 = vmatpush1.xpose.msra.mxu0 0.0
    %2341 = vmatprep.subr.mxu0 0.0
    %2342 = vmatpush1.xpose.msra.mxu0 0.0
    %2343 = vmatprep.subr.mxu0 0.0
    %2344 = vmatpush1.xpose.msra.mxu0 0.0
    %2345 = vmatprep.subr.mxu0 0.0
    %2346 = vmatpush1.xpose.msra.mxu0 0.0
    %2347 = vmatprep.subr.mxu0 0.0
    %2348 = vmatpush1.xpose.msra.mxu0 0.0
    %2349 = vmatprep.subr.mxu0 0.0
    %2350 = vmatpush1.xpose.msra.mxu0 0.0
    %2351 = vmatprep.subr.mxu0 0.0
    %2352 = vmatpush1.xpose.msra.mxu0 0.0
    %2353 = vmatprep.subr.mxu0 0.0
    %2354 = vmatpush1.xpose.msra.mxu0 0.0
    %2355 = vmatprep.subr.mxu0 0.0
    %2356 = vmatpush1.xpose.msra.mxu0 0.0
    %2357 = vmatprep.subr.mxu0 0.0
    %2358 = vmatpush1.xpose.msra.mxu0 0.0
    %2359 = vmatprep.subr.mxu0 0.0
    %2360 = vmatpush1.xpose.msra.mxu0 0.0
    %2361 = vmatprep.subr.mxu0 0.0
    %2362 = vmatpush1.xpose.msra.mxu0 0.0
    %2363 = vmatprep.subr.mxu0 0.0
    %2364 = vmatpush1.xpose.msra.mxu0 0.0
    %2365 = vmatprep.subr.mxu0 0.0
    %2366 = vmatpush1.xpose.msra.mxu0 0.0
    %2367 = vmatprep.subr.mxu0 0.0
    %2368 = vmatpush1.xpose.msra.mxu0 0.0
    %2369 = vmatprep.subr.mxu0 0.0
    %2370 = vmatpush1.xpose.msra.mxu0 0.0
    %2371 = vmatprep.subr.mxu0 0.0
    %2372 = vmatpush1.xpose.msra.mxu0 0.0
    %2373 = vmatprep.subr.mxu0 0.0
    %2374 = vmatpush1.xpose.msra.mxu0 0.0
    %2375 = vmatprep.subr.mxu0 0.0
    %2376 = vmatpush1.xpose.msra.mxu0 0.0
    %2377 = vmatprep.subr.mxu0 0.0
    %2378 = vmatpush1.xpose.msra.mxu0 0.0
    %2379 = vmatprep.mubr.f32.mxu0 0.0
    %2380 = vmatmul.mubr.f32.gmra.mrb[0].mxu0 %v2311
    %v2381 = vpop.f32.mrb[0].mxu0
    %v2382 = vadd.f32 %v137, %v2381
    %v2383 = vpop.f32.mrb[0].mxu0
    %2384 = vdwg.mxu0
    %2386 = vrot.lane.b32.xlu0 %v2305, 96
    %v2387 = vpop.permute.xlu0 %2386
    %v2388 = vsel %vm292, %v2305, 0
    %v2390 = vsel %vm292, %v2387, 0
    %2392 = vmatprep.subr.mxu0 0.0
    %2393 = vmatpush1.xpose.msra.mxu0 %v2390
    %2394 = vmatprep.subr.mxu0 0.0
    %2395 = vmatpush1.xpose.msra.mxu0 0.0
    %2396 = vmatprep.subr.mxu0 0.0
    %2397 = vmatpush1.xpose.msra.mxu0 0.0
    %2398 = vmatprep.subr.mxu0 0.0
    %2399 = vmatpush1.xpose.msra.mxu0 0.0
    %2400 = vmatprep.subr.mxu0 0.0
    %2401 = vmatpush1.xpose.msra.mxu0 0.0
    %2402 = vmatprep.subr.mxu0 0.0
    %2403 = vmatpush1.xpose.msra.mxu0 0.0
    %2404 = vmatprep.subr.mxu0 0.0
    %2405 = vmatpush1.xpose.msra.mxu0 0.0
    %2406 = vmatprep.subr.mxu0 0.0
    %2407 = vmatpush1.xpose.msra.mxu0 0.0
    %2408 = vmatprep.subr.mxu0 0.0
    %2409 = vmatpush1.xpose.msra.mxu0 0.0
    %2410 = vmatprep.subr.mxu0 0.0
    %2411 = vmatpush1.xpose.msra.mxu0 0.0
    %2412 = vmatprep.subr.mxu0 0.0
    %2413 = vmatpush1.xpose.msra.mxu0 0.0
    %2414 = vmatprep.subr.mxu0 0.0
    %2415 = vmatpush1.xpose.msra.mxu0 0.0
    %2416 = vmatprep.subr.mxu0 0.0
    %2417 = vmatpush1.xpose.msra.mxu0 0.0
    %2418 = vmatprep.subr.mxu0 0.0
    %2419 = vmatpush1.xpose.msra.mxu0 0.0
    %2420 = vmatprep.subr.mxu0 0.0
    %2421 = vmatpush1.xpose.msra.mxu0 0.0
    %2422 = vmatprep.subr.mxu0 0.0
    %2423 = vmatpush1.xpose.msra.mxu0 0.0
    %2424 = vmatprep.subr.mxu0 0.0
    %2425 = vmatpush1.xpose.msra.mxu0 0.0
    %2426 = vmatprep.subr.mxu0 0.0
    %2427 = vmatpush1.xpose.msra.mxu0 0.0
    %2428 = vmatprep.subr.mxu0 0.0
    %2429 = vmatpush1.xpose.msra.mxu0 0.0
    %2430 = vmatprep.subr.mxu0 0.0
    %2431 = vmatpush1.xpose.msra.mxu0 0.0
    %2432 = vmatprep.subr.mxu0 0.0
    %2433 = vmatpush1.xpose.msra.mxu0 0.0
    %2434 = vmatprep.subr.mxu0 0.0
    %2435 = vmatpush1.xpose.msra.mxu0 0.0
    %2436 = vmatprep.subr.mxu0 0.0
    %2437 = vmatpush1.xpose.msra.mxu0 0.0
    %2438 = vmatprep.subr.mxu0 0.0
    %2439 = vmatpush1.xpose.msra.mxu0 0.0
    %2440 = vmatprep.subr.mxu0 0.0
    %2441 = vmatpush1.xpose.msra.mxu0 0.0
    %2442 = vmatprep.subr.mxu0 0.0
    %2443 = vmatpush1.xpose.msra.mxu0 0.0
    %2444 = vmatprep.subr.mxu0 0.0
    %2445 = vmatpush1.xpose.msra.mxu0 0.0
    %2446 = vmatprep.subr.mxu0 0.0
    %2447 = vmatpush1.xpose.msra.mxu0 0.0
    %2448 = vmatprep.subr.mxu0 0.0
    %2449 = vmatpush1.xpose.msra.mxu0 0.0
    %2450 = vmatprep.subr.mxu0 0.0
    %2451 = vmatpush1.xpose.msra.mxu0 0.0
    %2452 = vmatprep.subr.mxu0 0.0
    %2453 = vmatpush1.xpose.msra.mxu0 0.0
    %2454 = vmatprep.subr.mxu0 0.0
    %2455 = vmatpush1.xpose.msra.mxu0 0.0
    %2456 = vmatprep.mubr.f32.mxu0 0.0
    %2457 = vmatmul.mubr.f32.gmra.mrb[0].mxu0 %v2388
    %v2458 = vpop.f32.mrb[0].mxu0
    %v2459 = vadd.f32 %v138, %v2458
    %v2460 = vpop.f32.mrb[0].mxu0
    %2461 = vdwg.mxu0
    %v2462 = vsel %vm292, %v2382, -inf
    %2463 = vmax.xlane.f32.xlu0 %v2462
    %v2464 = vpop.xlane.xlu0 %2463
    %v2465 = vsel %vm292, %v2459, -inf
    %2466 = vmax.xlane.f32.xlu0 %v2465
    %v2467 = vpop.xlane.xlu0 %2466
    %v2468 = vsub.f32 %v2382, %v2464
    %v2469 = vsub.f32 %v2459, %v2467
    %v2470 = vmul.f32 %v2468, 1.442695
    %v2471 = vpow.pop %v2470
    %v2472 = vmul.f32 %v2469, 1.442695
    %v2473 = vpow.pop %v2472
    %v2474 = vsel %vm292, %v2471, 0.0
    %2475 = vadd.xlane.f32.xlu0 %v2474
    %v2476 = vpop.xlane.xlu0 %2475
    %v2477 = vsel %vm292, %v2473, 0.0
    %2478 = vadd.xlane.f32.xlu0 %v2477
    %v2479 = vpop.xlane.xlu0 %2478
    %v2480 = vrcp.pop %v2476
    %v2481 = vrcp.pop %v2479
    %v2482 = vmul.f32 %v2471, %v2480
    %v2483 = vmul.f32 %v2473, %v2481
    %2484 = vrot.lane.b32.xlu0 %v2300, 64
    %v2485 = vpop.permute.xlu0 %2484
    %v2488 = vsel %vm292, %v2482, 0
    %2490 = vmatprep.subr.mxu0 0.0
    %2491 = vmatpush1.msra.mxu0 %v2485
    %2492 = vmatprep.subr.mxu0 0.0
    %2493 = vmatpush1.msra.mxu0 0.0
    %2494 = vmatprep.subr.mxu0 0.0
    %2495 = vmatpush1.msra.mxu0 0.0
    %2496 = vmatprep.subr.mxu0 0.0
    %2497 = vmatpush1.msra.mxu0 0.0
    %2498 = vmatprep.subr.mxu0 0.0
    %2499 = vmatpush1.msra.mxu0 0.0
    %2500 = vmatprep.subr.mxu0 0.0
    %2501 = vmatpush1.msra.mxu0 0.0
    %2502 = vmatprep.subr.mxu0 0.0
    %2503 = vmatpush1.msra.mxu0 0.0
    %2504 = vmatprep.subr.mxu0 0.0
    %2505 = vmatpush1.msra.mxu0 0.0
    %2506 = vmatprep.subr.mxu0 0.0
    %2507 = vmatpush1.msra.mxu0 0.0
    %2508 = vmatprep.subr.mxu0 0.0
    %2509 = vmatpush1.msra.mxu0 0.0
    %2510 = vmatprep.subr.mxu0 0.0
    %2511 = vmatpush1.msra.mxu0 0.0
    %2512 = vmatprep.subr.mxu0 0.0
    %2513 = vmatpush1.msra.mxu0 0.0
    %2514 = vmatprep.subr.mxu0 0.0
    %2515 = vmatpush1.msra.mxu0 0.0
    %2516 = vmatprep.subr.mxu0 0.0
    %2517 = vmatpush1.msra.mxu0 0.0
    %2518 = vmatprep.subr.mxu0 0.0
    %2519 = vmatpush1.msra.mxu0 0.0
    %2520 = vmatprep.subr.mxu0 0.0
    %2521 = vmatpush1.msra.mxu0 0.0
    %2522 = vmatprep.subr.mxu0 0.0
    %2523 = vmatpush1.msra.mxu0 0.0
    %2524 = vmatprep.subr.mxu0 0.0
    %2525 = vmatpush1.msra.mxu0 0.0
    %2526 = vmatprep.subr.mxu0 0.0
    %2527 = vmatpush1.msra.mxu0 0.0
    %2528 = vmatprep.subr.mxu0 0.0
    %2529 = vmatpush1.msra.mxu0 0.0
    %2530 = vmatprep.subr.mxu0 0.0
    %2531 = vmatpush1.msra.mxu0 0.0
    %2532 = vmatprep.subr.mxu0 0.0
    %2533 = vmatpush1.msra.mxu0 0.0
    %2534 = vmatprep.subr.mxu0 0.0
    %2535 = vmatpush1.msra.mxu0 0.0
    %2536 = vmatprep.subr.mxu0 0.0
    %2537 = vmatpush1.msra.mxu0 0.0
    %2538 = vmatprep.subr.mxu0 0.0
    %2539 = vmatpush1.msra.mxu0 0.0
    %2540 = vmatprep.subr.mxu0 0.0
    %2541 = vmatpush1.msra.mxu0 0.0
    %2542 = vmatprep.subr.mxu0 0.0
    %2543 = vmatpush1.msra.mxu0 0.0
    %2544 = vmatprep.subr.mxu0 0.0
    %2545 = vmatpush1.msra.mxu0 0.0
    %2546 = vmatprep.subr.mxu0 0.0
    %2547 = vmatpush1.msra.mxu0 0.0
    %2548 = vmatprep.subr.mxu0 0.0
    %2549 = vmatpush1.msra.mxu0 0.0
    %2550 = vmatprep.subr.mxu0 0.0
    %2551 = vmatpush1.msra.mxu0 0.0
    %2552 = vmatprep.subr.mxu0 0.0
    %2553 = vmatpush1.msra.mxu0 0.0
    %2554 = vmatprep.mubr.f32.mxu0 0.0
    %2555 = vmatmul.mubr.f32.gmra.mrb[0].mxu0 %v2488
    %v2556 = vpop.f32.mrb[0].mxu0
    %v2557 = vadd.f32 0.0, %v2556
    %v2558 = vpop.f32.mrb[0].mxu0
    %2559 = vdwg.mxu0
    %2560 = vrot.lane.b32.xlu0 %v2305, 64
    %v2561 = vpop.permute.xlu0 %2560
    %v2564 = vsel %vm292, %v2483, 0
    %2566 = vmatprep.subr.mxu0 0.0
    %2567 = vmatpush1.msra.mxu0 %v2561
    %2568 = vmatprep.subr.mxu0 0.0
    %2569 = vmatpush1.msra.mxu0 0.0
    %2570 = vmatprep.subr.mxu0 0.0
    %2571 = vmatpush1.msra.mxu0 0.0
    %2572 = vmatprep.subr.mxu0 0.0
    %2573 = vmatpush1.msra.mxu0 0.0
    %2574 = vmatprep.subr.mxu0 0.0
    %2575 = vmatpush1.msra.mxu0 0.0
    %2576 = vmatprep.subr.mxu0 0.0
    %2577 = vmatpush1.msra.mxu0 0.0
    %2578 = vmatprep.subr.mxu0 0.0
    %2579 = vmatpush1.msra.mxu0 0.0
    %2580 = vmatprep.subr.mxu0 0.0
    %2581 = vmatpush1.msra.mxu0 0.0
    %2582 = vmatprep.subr.mxu0 0.0
    %2583 = vmatpush1.msra.mxu0 0.0
    %2584 = vmatprep.subr.mxu0 0.0
    %2585 = vmatpush1.msra.mxu0 0.0
    %2586 = vmatprep.subr.mxu0 0.0
    %2587 = vmatpush1.msra.mxu0 0.0
    %2588 = vmatprep.subr.mxu0 0.0
    %2589 = vmatpush1.msra.mxu0 0.0
    %2590 = vmatprep.subr.mxu0 0.0
    %2591 = vmatpush1.msra.mxu0 0.0
    %2592 = vmatprep.subr.mxu0 0.0
    %2593 = vmatpush1.msra.mxu0 0.0
    %2594 = vmatprep.subr.mxu0 0.0
    %2595 = vmatpush1.msra.mxu0 0.0
    %2596 = vmatprep.subr.mxu0 0.0
    %2597 = vmatpush1.msra.mxu0 0.0
    %2598 = vmatprep.subr.mxu0 0.0
    %2599 = vmatpush1.msra.mxu0 0.0
    %2600 = vmatprep.subr.mxu0 0.0
    %2601 = vmatpush1.msra.mxu0 0.0
    %2602 = vmatprep.subr.mxu0 0.0
    %2603 = vmatpush1.msra.mxu0 0.0
    %2604 = vmatprep.subr.mxu0 0.0
    %2605 = vmatpush1.msra.mxu0 0.0
    %2606 = vmatprep.subr.mxu0 0.0
    %2607 = vmatpush1.msra.mxu0 0.0
    %2608 = vmatprep.subr.mxu0 0.0
    %2609 = vmatpush1.msra.mxu0 0.0
    %2610 = vmatprep.subr.mxu0 0.0
    %2611 = vmatpush1.msra.mxu0 0.0
    %2612 = vmatprep.subr.mxu0 0.0
    %2613 = vmatpush1.msra.mxu0 0.0
    %2614 = vmatprep.subr.mxu0 0.0
    %2615 = vmatpush1.msra.mxu0 0.0
    %2616 = vmatprep.subr.mxu0 0.0
    %2617 = vmatpush1.msra.mxu0 0.0
    %2618 = vmatprep.subr.mxu0 0.0
    %2619 = vmatpush1.msra.mxu0 0.0
    %2620 = vmatprep.subr.mxu0 0.0
    %2621 = vmatpush1.msra.mxu0 0.0
    %2622 = vmatprep.subr.mxu0 0.0
    %2623 = vmatpush1.msra.mxu0 0.0
    %2624 = vmatprep.subr.mxu0 0.0
    %2625 = vmatpush1.msra.mxu0 0.0
    %2626 = vmatprep.subr.mxu0 0.0
    %2627 = vmatpush1.msra.mxu0 0.0
    %2628 = vmatprep.subr.mxu0 0.0
    %2629 = vmatpush1.msra.mxu0 0.0
    %2630 = vmatprep.mubr.f32.mxu0 0.0
    %2631 = vmatmul.mubr.f32.gmra.mrb[0].mxu0 %v2564
    %v2632 = vpop.f32.mrb[0].mxu0
    %v2633 = vadd.f32 0.0, %v2632
    %v2634 = vpop.f32.mrb[0].mxu0
    %2635 = vdwg.mxu0
    %v2636 = vld [vmem:[#allocation2 + $0x180] sm:$0xff]
    %2637 = vrot.lane.b32.xlu0 %v2300, 120
    %v2638 = vpop.permute.xlu0 %2637
    %2639 = vrot.lane.b32.xlu0 %v2300, 88
    %v2640 = vpop.permute.xlu0 %2639
    %v2641 = vsel %vm292, %v2638, 0
    %v2643 = vsel %vm292, %v2640, 0
    %2645 = vmatprep.subr.mxu0 0.0
    %2646 = vmatpush1.xpose.msra.mxu0 %v2643
    %2647 = vmatprep.subr.mxu0 0.0
    %2648 = vmatpush1.xpose.msra.mxu0 0.0
    %2649 = vmatprep.subr.mxu0 0.0
    %2650 = vmatpush1.xpose.msra.mxu0 0.0
    %2651 = vmatprep.subr.mxu0 0.0
    %2652 = vmatpush1.xpose.msra.mxu0 0.0
    %2653 = vmatprep.subr.mxu0 0.0
    %2654 = vmatpush1.xpose.msra.mxu0 0.0
    %2655 = vmatprep.subr.mxu0 0.0
    %2656 = vmatpush1.xpose.msra.mxu0 0.0
    %2657 = vmatprep.subr.mxu0 0.0
    %2658 = vmatpush1.xpose.msra.mxu0 0.0
    %2659 = vmatprep.subr.mxu0 0.0
    %2660 = vmatpush1.xpose.msra.mxu0 0.0
    %2661 = vmatprep.subr.mxu0 0.0
    %2662 = vmatpush1.xpose.msra.mxu0 0.0
    %2663 = vmatprep.subr.mxu0 0.0
    %2664 = vmatpush1.xpose.msra.mxu0 0.0
    %2665 = vmatprep.subr.mxu0 0.0
    %2666 = vmatpush1.xpose.msra.mxu0 0.0
    %2667 = vmatprep.subr.mxu0 0.0
    %2668 = vmatpush1.xpose.msra.mxu0 0.0
    %2669 = vmatprep.subr.mxu0 0.0
    %2670 = vmatpush1.xpose.msra.mxu0 0.0
    %2671 = vmatprep.subr.mxu0 0.0
    %2672 = vmatpush1.xpose.msra.mxu0 0.0
    %2673 = vmatprep.subr.mxu0 0.0
    %2674 = vmatpush1.xpose.msra.mxu0 0.0
    %2675 = vmatprep.subr.mxu0 0.0
    %2676 = vmatpush1.xpose.msra.mxu0 0.0
    %2677 = vmatprep.subr.mxu0 0.0
    %2678 = vmatpush1.xpose.msra.mxu0 0.0
    %2679 = vmatprep.subr.mxu0 0.0
    %2680 = vmatpush1.xpose.msra.mxu0 0.0
    %2681 = vmatprep.subr.mxu0 0.0
    %2682 = vmatpush1.xpose.msra.mxu0 0.0
    %2683 = vmatprep.subr.mxu0 0.0
    %2684 = vmatpush1.xpose.msra.mxu0 0.0
    %2685 = vmatprep.subr.mxu0 0.0
    %2686 = vmatpush1.xpose.msra.mxu0 0.0
    %2687 = vmatprep.subr.mxu0 0.0
    %2688 = vmatpush1.xpose.msra.mxu0 0.0
    %2689 = vmatprep.subr.mxu0 0.0
    %2690 = vmatpush1.xpose.msra.mxu0 0.0
    %2691 = vmatprep.subr.mxu0 0.0
    %2692 = vmatpush1.xpose.msra.mxu0 0.0
    %2693 = vmatprep.subr.mxu0 0.0
    %2694 = vmatpush1.xpose.msra.mxu0 0.0
    %2695 = vmatprep.subr.mxu0 0.0
    %2696 = vmatpush1.xpose.msra.mxu0 0.0
    %2697 = vmatprep.subr.mxu0 0.0
    %2698 = vmatpush1.xpose.msra.mxu0 0.0
    %2699 = vmatprep.subr.mxu0 0.0
    %2700 = vmatpush1.xpose.msra.mxu0 0.0
    %2701 = vmatprep.subr.mxu0 0.0
    %2702 = vmatpush1.xpose.msra.mxu0 0.0
    %2703 = vmatprep.subr.mxu0 0.0
    %2704 = vmatpush1.xpose.msra.mxu0 0.0
    %2705 = vmatprep.subr.mxu0 0.0
    %2706 = vmatpush1.xpose.msra.mxu0 0.0
    %2707 = vmatprep.subr.mxu0 0.0
    %2708 = vmatpush1.xpose.msra.mxu0 0.0
    %2709 = vmatprep.mubr.f32.mxu0 0.0
    %2710 = vmatmul.mubr.f32.gmra.mrb[0].mxu0 %v2641
    %v2711 = vpop.f32.mrb[0].mxu0
    %v2712 = vadd.f32 %v137, %v2711
    %v2713 = vpop.f32.mrb[0].mxu0
    %2714 = vdwg.mxu0
    %2715 = vrot.lane.b32.xlu0 %v2305, 120
    %v2716 = vpop.permute.xlu0 %2715
    %2717 = vrot.lane.b32.xlu0 %v2305, 88
    %v2718 = vpop.permute.xlu0 %2717
    %v2719 = vsel %vm292, %v2716, 0
    %v2721 = vsel %vm292, %v2718, 0
    %2723 = vmatprep.subr.mxu0 0.0
    %2724 = vmatpush1.xpose.msra.mxu0 %v2721
    %2725 = vmatprep.subr.mxu0 0.0
    %2726 = vmatpush1.xpose.msra.mxu0 0.0
    %2727 = vmatprep.subr.mxu0 0.0
    %2728 = vmatpush1.xpose.msra.mxu0 0.0
    %2729 = vmatprep.subr.mxu0 0.0
    %2730 = vmatpush1.xpose.msra.mxu0 0.0
    %2731 = vmatprep.subr.mxu0 0.0
    %2732 = vmatpush1.xpose.msra.mxu0 0.0
    %2733 = vmatprep.subr.mxu0 0.0
    %2734 = vmatpush1.xpose.msra.mxu0 0.0
    %2735 = vmatprep.subr.mxu0 0.0
    %2736 = vmatpush1.xpose.msra.mxu0 0.0
    %2737 = vmatprep.subr.mxu0 0.0
    %2738 = vmatpush1.xpose.msra.mxu0 0.0
    %2739 = vmatprep.subr.mxu0 0.0
    %2740 = vmatpush1.xpose.msra.mxu0 0.0
    %2741 = vmatprep.subr.mxu0 0.0
    %2742 = vmatpush1.xpose.msra.mxu0 0.0
    %2743 = vmatprep.subr.mxu0 0.0
    %2744 = vmatpush1.xpose.msra.mxu0 0.0
    %2745 = vmatprep.subr.mxu0 0.0
    %2746 = vmatpush1.xpose.msra.mxu0 0.0
    %2747 = vmatprep.subr.mxu0 0.0
    %2748 = vmatpush1.xpose.msra.mxu0 0.0
    %2749 = vmatprep.subr.mxu0 0.0
    %2750 = vmatpush1.xpose.msra.mxu0 0.0
    %2751 = vmatprep.subr.mxu0 0.0
    %2752 = vmatpush1.xpose.msra.mxu0 0.0
    %2753 = vmatprep.subr.mxu0 0.0
    %2754 = vmatpush1.xpose.msra.mxu0 0.0
    %2755 = vmatprep.subr.mxu0 0.0
    %2756 = vmatpush1.xpose.msra.mxu0 0.0
    %2757 = vmatprep.subr.mxu0 0.0
    %2758 = vmatpush1.xpose.msra.mxu0 0.0
    %2759 = vmatprep.subr.mxu0 0.0
    %2760 = vmatpush1.xpose.msra.mxu0 0.0
    %2761 = vmatprep.subr.mxu0 0.0
    %2762 = vmatpush1.xpose.msra.mxu0 0.0
    %2763 = vmatprep.subr.mxu0 0.0
    %2764 = vmatpush1.xpose.msra.mxu0 0.0
    %2765 = vmatprep.subr.mxu0 0.0
    %2766 = vmatpush1.xpose.msra.mxu0 0.0
    %2767 = vmatprep.subr.mxu0 0.0
    %2768 = vmatpush1.xpose.msra.mxu0 0.0
    %2769 = vmatprep.subr.mxu0 0.0
    %2770 = vmatpush1.xpose.msra.mxu0 0.0
    %2771 = vmatprep.subr.mxu0 0.0
    %2772 = vmatpush1.xpose.msra.mxu0 0.0
    %2773 = vmatprep.subr.mxu0 0.0
    %2774 = vmatpush1.xpose.msra.mxu0 0.0
    %2775 = vmatprep.subr.mxu0 0.0
    %2776 = vmatpush1.xpose.msra.mxu0 0.0
    %2777 = vmatprep.subr.mxu0 0.0
    %2778 = vmatpush1.xpose.msra.mxu0 0.0
    %2779 = vmatprep.subr.mxu0 0.0
    %2780 = vmatpush1.xpose.msra.mxu0 0.0
    %2781 = vmatprep.subr.mxu0 0.0
    %2782 = vmatpush1.xpose.msra.mxu0 0.0
    %2783 = vmatprep.subr.mxu0 0.0
    %2784 = vmatpush1.xpose.msra.mxu0 0.0
    %2785 = vmatprep.subr.mxu0 0.0
    %2786 = vmatpush1.xpose.msra.mxu0 0.0
    %2787 = vmatprep.mubr.f32.mxu0 0.0
    %2788 = vmatmul.mubr.f32.gmra.mrb[0].mxu0 %v2719
    %v2789 = vpop.f32.mrb[0].mxu0
    %v2790 = vadd.f32 %v138, %v2789
    %v2791 = vpop.f32.mrb[0].mxu0
    %2792 = vdwg.mxu0
    %v2793 = vsel %vm292, %v2712, -inf
    %2794 = vmax.xlane.f32.xlu0 %v2793
    %v2795 = vpop.xlane.xlu0 %2794
    %v2796 = vsel %vm292, %v2790, -inf
    %2797 = vmax.xlane.f32.xlu0 %v2796
    %v2798 = vpop.xlane.xlu0 %2797
    %v2799 = vsub.f32 %v2712, %v2795
    %v2800 = vsub.f32 %v2790, %v2798
    %v2801 = vmul.f32 %v2799, 1.442695
    %v2802 = vpow.pop %v2801
    %v2803 = vmul.f32 %v2800, 1.442695
    %v2804 = vpow.pop %v2803
    %v2805 = vsel %vm292, %v2802, 0.0
    %2806 = vadd.xlane.f32.xlu0 %v2805
    %v2807 = vpop.xlane.xlu0 %2806
    %v2808 = vsel %vm292, %v2804, 0.0
    %2809 = vadd.xlane.f32.xlu0 %v2808
    %v2810 = vpop.xlane.xlu0 %2809
    %v2811 = vrcp.pop %v2807
    %v2812 = vrcp.pop %v2810
    %v2813 = vmul.f32 %v2802, %v2811
    %v2814 = vmul.f32 %v2804, %v2812
    %2815 = vrot.lane.b32.xlu0 %v2300, 56
    %v2816 = vpop.permute.xlu0 %2815
    %v2819 = vsel %vm292, %v2813, 0
    %2821 = vmatprep.subr.mxu0 0.0
    %2822 = vmatpush1.msra.mxu0 %v2816
    %2823 = vmatprep.subr.mxu0 0.0
    %2824 = vmatpush1.msra.mxu0 0.0
    %2825 = vmatprep.subr.mxu0 0.0
    %2826 = vmatpush1.msra.mxu0 0.0
    %2827 = vmatprep.subr.mxu0 0.0
    %2828 = vmatpush1.msra.mxu0 0.0
    %2829 = vmatprep.subr.mxu0 0.0
    %2830 = vmatpush1.msra.mxu0 0.0
    %2831 = vmatprep.subr.mxu0 0.0
    %2832 = vmatpush1.msra.mxu0 0.0
    %2833 = vmatprep.subr.mxu0 0.0
    %2834 = vmatpush1.msra.mxu0 0.0
    %2835 = vmatprep.subr.mxu0 0.0
    %2836 = vmatpush1.msra.mxu0 0.0
    %2837 = vmatprep.subr.mxu0 0.0
    %2838 = vmatpush1.msra.mxu0 0.0
    %2839 = vmatprep.subr.mxu0 0.0
    %2840 = vmatpush1.msra.mxu0 0.0
    %2841 = vmatprep.subr.mxu0 0.0
    %2842 = vmatpush1.msra.mxu0 0.0
    %2843 = vmatprep.subr.mxu0 0.0
    %2844 = vmatpush1.msra.mxu0 0.0
    %2845 = vmatprep.subr.mxu0 0.0
    %2846 = vmatpush1.msra.mxu0 0.0
    %2847 = vmatprep.subr.mxu0 0.0
    %2848 = vmatpush1.msra.mxu0 0.0
    %2849 = vmatprep.subr.mxu0 0.0
    %2850 = vmatpush1.msra.mxu0 0.0
    %2851 = vmatprep.subr.mxu0 0.0
    %2852 = vmatpush1.msra.mxu0 0.0
    %2853 = vmatprep.subr.mxu0 0.0
    %2854 = vmatpush1.msra.mxu0 0.0
    %2855 = vmatprep.subr.mxu0 0.0
    %2856 = vmatpush1.msra.mxu0 0.0
    %2857 = vmatprep.subr.mxu0 0.0
    %2858 = vmatpush1.msra.mxu0 0.0
    %2859 = vmatprep.subr.mxu0 0.0
    %2860 = vmatpush1.msra.mxu0 0.0
    %2861 = vmatprep.subr.mxu0 0.0
    %2862 = vmatpush1.msra.mxu0 0.0
    %2863 = vmatprep.subr.mxu0 0.0
    %2864 = vmatpush1.msra.mxu0 0.0
    %2865 = vmatprep.subr.mxu0 0.0
    %2866 = vmatpush1.msra.mxu0 0.0
    %2867 = vmatprep.subr.mxu0 0.0
    %2868 = vmatpush1.msra.mxu0 0.0
    %2869 = vmatprep.subr.mxu0 0.0
    %2870 = vmatpush1.msra.mxu0 0.0
    %2871 = vmatprep.subr.mxu0 0.0
    %2872 = vmatpush1.msra.mxu0 0.0
    %2873 = vmatprep.subr.mxu0 0.0
    %2874 = vmatpush1.msra.mxu0 0.0
    %2875 = vmatprep.subr.mxu0 0.0
    %2876 = vmatpush1.msra.mxu0 0.0
    %2877 = vmatprep.subr.mxu0 0.0
    %2878 = vmatpush1.msra.mxu0 0.0
    %2879 = vmatprep.subr.mxu0 0.0
    %2880 = vmatpush1.msra.mxu0 0.0
    %2881 = vmatprep.subr.mxu0 0.0
    %2882 = vmatpush1.msra.mxu0 0.0
    %2883 = vmatprep.subr.mxu0 0.0
    %2884 = vmatpush1.msra.mxu0 0.0
    %2885 = vmatprep.mubr.f32.mxu0 0.0
    %2886 = vmatmul.mubr.f32.gmra.mrb[0].mxu0 %v2819
    %v2887 = vpop.f32.mrb[0].mxu0
    %v2888 = vadd.f32 0.0, %v2887
    %v2889 = vpop.f32.mrb[0].mxu0
    %2890 = vdwg.mxu0
    %2891 = vrot.lane.b32.xlu0 %v2305, 56
    %v2892 = vpop.permute.xlu0 %2891
    %v2895 = vsel %vm292, %v2814, 0
    %2897 = vmatprep.subr.mxu0 0.0
    %2898 = vmatpush1.msra.mxu0 %v2892
    %2899 = vmatprep.subr.mxu0 0.0
    %2900 = vmatpush1.msra.mxu0 0.0
    %2901 = vmatprep.subr.mxu0 0.0
    %2902 = vmatpush1.msra.mxu0 0.0
    %2903 = vmatprep.subr.mxu0 0.0
    %2904 = vmatpush1.msra.mxu0 0.0
    %2905 = vmatprep.subr.mxu0 0.0
    %2906 = vmatpush1.msra.mxu0 0.0
    %2907 = vmatprep.subr.mxu0 0.0
    %2908 = vmatpush1.msra.mxu0 0.0
    %2909 = vmatprep.subr.mxu0 0.0
    %2910 = vmatpush1.msra.mxu0 0.0
    %2911 = vmatprep.subr.mxu0 0.0
    %2912 = vmatpush1.msra.mxu0 0.0
    %2913 = vmatprep.subr.mxu0 0.0
    %2914 = vmatpush1.msra.mxu0 0.0
    %2915 = vmatprep.subr.mxu0 0.0
    %2916 = vmatpush1.msra.mxu0 0.0
    %2917 = vmatprep.subr.mxu0 0.0
    %2918 = vmatpush1.msra.mxu0 0.0
    %2919 = vmatprep.subr.mxu0 0.0
    %2920 = vmatpush1.msra.mxu0 0.0
    %2921 = vmatprep.subr.mxu0 0.0
    %2922 = vmatpush1.msra.mxu0 0.0
    %2923 = vmatprep.subr.mxu0 0.0
    %2924 = vmatpush1.msra.mxu0 0.0
    %2925 = vmatprep.subr.mxu0 0.0
    %2926 = vmatpush1.msra.mxu0 0.0
    %2927 = vmatprep.subr.mxu0 0.0
    %2928 = vmatpush1.msra.mxu0 0.0
    %2929 = vmatprep.subr.mxu0 0.0
    %2930 = vmatpush1.msra.mxu0 0.0
    %2931 = vmatprep.subr.mxu0 0.0
    %2932 = vmatpush1.msra.mxu0 0.0
    %2933 = vmatprep.subr.mxu0 0.0
    %2934 = vmatpush1.msra.mxu0 0.0
    %2935 = vmatprep.subr.mxu0 0.0
    %2936 = vmatpush1.msra.mxu0 0.0
    %2937 = vmatprep.subr.mxu0 0.0
    %2938 = vmatpush1.msra.mxu0 0.0
    %2939 = vmatprep.subr.mxu0 0.0
    %2940 = vmatpush1.msra.mxu0 0.0
    %2941 = vmatprep.subr.mxu0 0.0
    %2942 = vmatpush1.msra.mxu0 0.0
    %2943 = vmatprep.subr.mxu0 0.0
    %2944 = vmatpush1.msra.mxu0 0.0
    %2945 = vmatprep.subr.mxu0 0.0
    %2946 = vmatpush1.msra.mxu0 0.0
    %2947 = vmatprep.subr.mxu0 0.0
    %2948 = vmatpush1.msra.mxu0 0.0
    %2949 = vmatprep.subr.mxu0 0.0
    %2950 = vmatpush1.msra.mxu0 0.0
    %2951 = vmatprep.subr.mxu0 0.0
    %2952 = vmatpush1.msra.mxu0 0.0
    %2953 = vmatprep.subr.mxu0 0.0
    %2954 = vmatpush1.msra.mxu0 0.0
    %2955 = vmatprep.subr.mxu0 0.0
    %2956 = vmatpush1.msra.mxu0 0.0
    %2957 = vmatprep.subr.mxu0 0.0
    %2958 = vmatpush1.msra.mxu0 0.0
    %2959 = vmatprep.subr.mxu0 0.0
    %2960 = vmatpush1.msra.mxu0 0.0
    %2961 = vmatprep.mubr.f32.mxu0 0.0
    %2962 = vmatmul.mubr.f32.gmra.mrb[0].mxu0 %v2895
    %v2963 = vpop.f32.mrb[0].mxu0
    %v2964 = vadd.f32 0.0, %v2963
    %v2965 = vpop.f32.mrb[0].mxu0
    %2966 = vdwg.mxu0
    %v2967 = vld [vmem:[#allocation2 + $0x188] sm:$0xff]
    %v2969 = vsel %vm292, %v2888, 0
    %v2972 = vsel %vm292, %v2964, 0
    %2974 = vmatprep.subr.mxu0 0.0
    %2975 = vmatpush1.msra.mxu0 %v2967
    %2976 = vmatprep.subr.mxu0 0.0
    %2977 = vmatpush1.msra.mxu0 0.0
    %2978 = vmatprep.subr.mxu0 0.0
    %2979 = vmatpush1.msra.mxu0 0.0
    %2980 = vmatprep.subr.mxu0 0.0
    %2981 = vmatpush1.msra.mxu0 0.0
    %2982 = vmatprep.subr.mxu0 0.0
    %2983 = vmatpush1.msra.mxu0 0.0
    %2984 = vmatprep.subr.mxu0 0.0
    %2985 = vmatpush1.msra.mxu0 0.0
    %2986 = vmatprep.subr.mxu0 0.0
    %2987 = vmatpush1.msra.mxu0 0.0
    %2988 = vmatprep.subr.mxu0 0.0
    %2989 = vmatpush1.msra.mxu0 0.0
    %2990 = vmatprep.subr.mxu0 0.0
    %2991 = vmatpush1.msra.mxu0 0.0
    %2992 = vmatprep.subr.mxu0 0.0
    %2993 = vmatpush1.msra.mxu0 0.0
    %2994 = vmatprep.subr.mxu0 0.0
    %2995 = vmatpush1.msra.mxu0 0.0
    %2996 = vmatprep.subr.mxu0 0.0
    %2997 = vmatpush1.msra.mxu0 0.0
    %2998 = vmatprep.subr.mxu0 0.0
    %2999 = vmatpush1.msra.mxu0 0.0
    %3000 = vmatprep.subr.mxu0 0.0
    %3001 = vmatpush1.msra.mxu0 0.0
    %3002 = vmatprep.subr.mxu0 0.0
    %3003 = vmatpush1.msra.mxu0 0.0
    %3004 = vmatprep.subr.mxu0 0.0
    %3005 = vmatpush1.msra.mxu0 0.0
    %3006 = vmatprep.subr.mxu0 0.0
    %3007 = vmatpush1.msra.mxu0 0.0
    %3008 = vmatprep.subr.mxu0 0.0
    %3009 = vmatpush1.msra.mxu0 0.0
    %3010 = vmatprep.subr.mxu0 0.0
    %3011 = vmatpush1.msra.mxu0 0.0
    %3012 = vmatprep.subr.mxu0 0.0
    %3013 = vmatpush1.msra.mxu0 0.0
    %3014 = vmatprep.subr.mxu0 0.0
    %3015 = vmatpush1.msra.mxu0 0.0
    %3016 = vmatprep.subr.mxu0 0.0
    %3017 = vmatpush1.msra.mxu0 0.0
    %3018 = vmatprep.subr.mxu0 0.0
    %3019 = vmatpush1.msra.mxu0 0.0
    %3020 = vmatprep.subr.mxu0 0.0
    %3021 = vmatpush1.msra.mxu0 0.0
    %3022 = vmatprep.subr.mxu0 0.0
    %3023 = vmatpush1.msra.mxu0 0.0
    %3024 = vmatprep.subr.mxu0 0.0
    %3025 = vmatpush1.msra.mxu0 0.0
    %3026 = vmatprep.subr.mxu0 0.0
    %3027 = vmatpush1.msra.mxu0 0.0
    %3028 = vmatprep.subr.mxu0 0.0
    %3029 = vmatpush1.msra.mxu0 0.0
    %3030 = vmatprep.subr.mxu0 0.0
    %3031 = vmatpush1.msra.mxu0 0.0
    %3032 = vmatprep.subr.mxu0 0.0
    %3033 = vmatpush1.msra.mxu0 0.0
    %3034 = vmatprep.subr.mxu0 0.0
    %3035 = vmatpush1.msra.mxu0 0.0
    %3036 = vmatprep.subr.mxu0 0.0
    %3037 = vmatpush1.msra.mxu0 0.0
    %3038 = vmatprep.mubr.f32.mxu0 0.0
    %3039 = vmatmul.mubr.f32.gmra.mrb[0].mxu0 %v2969
    %v3040 = vpop.f32.mrb[0].mxu0
    %v3041 = vadd.f32 0.0, %v3040
    %v3042 = vpop.f32.mrb[0].mxu0
    %3043 = vmatprep.mubr.f32.mxu0 0.0
    %3044 = vmatmul.mubr.f32.gmra.mrb[0].mxu0 %v2972
    %v3045 = vpop.f32.mrb[0].mxu0
    %v3046 = vadd.f32 0.0, %v3045
    %v3047 = vpop.f32.mrb[0].mxu0
    %3048 = vdwg.mxu0
    %v3050 = vsel %vm292, %v2557, 0
    %v3053 = vsel %vm292, %v2633, 0
    %3055 = vmatprep.subr.mxu0 0.0
    %3056 = vmatpush1.msra.mxu0 %v2636
    %3057 = vmatprep.subr.mxu0 0.0
    %3058 = vmatpush1.msra.mxu0 0.0
    %3059 = vmatprep.subr.mxu0 0.0
    %3060 = vmatpush1.msra.mxu0 0.0
    %3061 = vmatprep.subr.mxu0 0.0
    %3062 = vmatpush1.msra.mxu0 0.0
    %3063 = vmatprep.subr.mxu0 0.0
    %3064 = vmatpush1.msra.mxu0 0.0
    %3065 = vmatprep.subr.mxu0 0.0
    %3066 = vmatpush1.msra.mxu0 0.0
    %3067 = vmatprep.subr.mxu0 0.0
    %3068 = vmatpush1.msra.mxu0 0.0
    %3069 = vmatprep.subr.mxu0 0.0
    %3070 = vmatpush1.msra.mxu0 0.0
    %3071 = vmatprep.subr.mxu0 0.0
    %3072 = vmatpush1.msra.mxu0 0.0
    %3073 = vmatprep.subr.mxu0 0.0
    %3074 = vmatpush1.msra.mxu0 0.0
    %3075 = vmatprep.subr.mxu0 0.0
    %3076 = vmatpush1.msra.mxu0 0.0
    %3077 = vmatprep.subr.mxu0 0.0
    %3078 = vmatpush1.msra.mxu0 0.0
    %3079 = vmatprep.subr.mxu0 0.0
    %3080 = vmatpush1.msra.mxu0 0.0
    %3081 = vmatprep.subr.mxu0 0.0
    %3082 = vmatpush1.msra.mxu0 0.0
    %3083 = vmatprep.subr.mxu0 0.0
    %3084 = vmatpush1.msra.mxu0 0.0
    %3085 = vmatprep.subr.mxu0 0.0
    %3086 = vmatpush1.msra.mxu0 0.0
    %3087 = vmatprep.subr.mxu0 0.0
    %3088 = vmatpush1.msra.mxu0 0.0
    %3089 = vmatprep.subr.mxu0 0.0
    %3090 = vmatpush1.msra.mxu0 0.0
    %3091 = vmatprep.subr.mxu0 0.0
    %3092 = vmatpush1.msra.mxu0 0.0
    %3093 = vmatprep.subr.mxu0 0.0
    %3094 = vmatpush1.msra.mxu0 0.0
    %3095 = vmatprep.subr.mxu0 0.0
    %3096 = vmatpush1.msra.mxu0 0.0
    %3097 = vmatprep.subr.mxu0 0.0
    %3098 = vmatpush1.msra.mxu0 0.0
    %3099 = vmatprep.subr.mxu0 0.0
    %3100 = vmatpush1.msra.mxu0 0.0
    %3101 = vmatprep.subr.mxu0 0.0
    %3102 = vmatpush1.msra.mxu0 0.0
    %3103 = vmatprep.subr.mxu0 0.0
    %3104 = vmatpush1.msra.mxu0 0.0
    %3105 = vmatprep.subr.mxu0 0.0
    %3106 = vmatpush1.msra.mxu0 0.0
    %3107 = vmatprep.subr.mxu0 0.0
    %3108 = vmatpush1.msra.mxu0 0.0
    %3109 = vmatprep.subr.mxu0 0.0
    %3110 = vmatpush1.msra.mxu0 0.0
    %3111 = vmatprep.subr.mxu0 0.0
    %3112 = vmatpush1.msra.mxu0 0.0
    %3113 = vmatprep.subr.mxu0 0.0
    %3114 = vmatpush1.msra.mxu0 0.0
    %3115 = vmatprep.subr.mxu0 0.0
    %3116 = vmatpush1.msra.mxu0 0.0
    %3117 = vmatprep.subr.mxu0 0.0
    %3118 = vmatpush1.msra.mxu0 0.0
    %3119 = vmatprep.mubr.f32.mxu0 0.0
    %3120 = vmatmul.mubr.f32.gmra.mrb[0].mxu0 %v3050
    %v3121 = vpop.f32.mrb[0].mxu0
    %v3122 = vadd.f32 %v3041, %v3121
    %v3123 = vpop.f32.mrb[0].mxu0
    %3124 = vmatprep.mubr.f32.mxu0 0.0
    %3125 = vmatmul.mubr.f32.gmra.mrb[0].mxu0 %v3053
    %v3126 = vpop.f32.mrb[0].mxu0
    %v3127 = vadd.f32 %v3046, %v3126
    %v3128 = vpop.f32.mrb[0].mxu0
    %3129 = vdwg.mxu0
    %3130 = vrot.lane.b32.xlu0 %v2300, 112
    %v3131 = vpop.permute.xlu0 %3130
    %3132 = vrot.lane.b32.xlu0 %v2300, 80
    %v3133 = vpop.permute.xlu0 %3132
    %v3134 = vsel %vm292, %v3131, 0
    %v3136 = vsel %vm292, %v3133, 0
    %3138 = vmatprep.subr.mxu0 0.0
    %3139 = vmatpush1.xpose.msra.mxu0 %v3136
    %3140 = vmatprep.subr.mxu0 0.0
    %3141 = vmatpush1.xpose.msra.mxu0 0.0
    %3142 = vmatprep.subr.mxu0 0.0
    %3143 = vmatpush1.xpose.msra.mxu0 0.0
    %3144 = vmatprep.subr.mxu0 0.0
    %3145 = vmatpush1.xpose.msra.mxu0 0.0
    %3146 = vmatprep.subr.mxu0 0.0
    %3147 = vmatpush1.xpose.msra.mxu0 0.0
    %3148 = vmatprep.subr.mxu0 0.0
    %3149 = vmatpush1.xpose.msra.mxu0 0.0
    %3150 = vmatprep.subr.mxu0 0.0
    %3151 = vmatpush1.xpose.msra.mxu0 0.0
    %3152 = vmatprep.subr.mxu0 0.0
    %3153 = vmatpush1.xpose.msra.mxu0 0.0
    %3154 = vmatprep.subr.mxu0 0.0
    %3155 = vmatpush1.xpose.msra.mxu0 0.0
    %3156 = vmatprep.subr.mxu0 0.0
    %3157 = vmatpush1.xpose.msra.mxu0 0.0
    %3158 = vmatprep.subr.mxu0 0.0
    %3159 = vmatpush1.xpose.msra.mxu0 0.0
    %3160 = vmatprep.subr.mxu0 0.0
    %3161 = vmatpush1.xpose.msra.mxu0 0.0
    %3162 = vmatprep.subr.mxu0 0.0
    %3163 = vmatpush1.xpose.msra.mxu0 0.0
    %3164 = vmatprep.subr.mxu0 0.0
    %3165 = vmatpush1.xpose.msra.mxu0 0.0
    %3166 = vmatprep.subr.mxu0 0.0
    %3167 = vmatpush1.xpose.msra.mxu0 0.0
    %3168 = vmatprep.subr.mxu0 0.0
    %3169 = vmatpush1.xpose.msra.mxu0 0.0
    %3170 = vmatprep.subr.mxu0 0.0
    %3171 = vmatpush1.xpose.msra.mxu0 0.0
    %3172 = vmatprep.subr.mxu0 0.0
    %3173 = vmatpush1.xpose.msra.mxu0 0.0
    %3174 = vmatprep.subr.mxu0 0.0
    %3175 = vmatpush1.xpose.msra.mxu0 0.0
    %3176 = vmatprep.subr.mxu0 0.0
    %3177 = vmatpush1.xpose.msra.mxu0 0.0
    %3178 = vmatprep.subr.mxu0 0.0
    %3179 = vmatpush1.xpose.msra.mxu0 0.0
    %3180 = vmatprep.subr.mxu0 0.0
    %3181 = vmatpush1.xpose.msra.mxu0 0.0
    %3182 = vmatprep.subr.mxu0 0.0
    %3183 = vmatpush1.xpose.msra.mxu0 0.0
    %3184 = vmatprep.subr.mxu0 0.0
    %3185 = vmatpush1.xpose.msra.mxu0 0.0
    %3186 = vmatprep.subr.mxu0 0.0
    %3187 = vmatpush1.xpose.msra.mxu0 0.0
    %3188 = vmatprep.subr.mxu0 0.0
    %3189 = vmatpush1.xpose.msra.mxu0 0.0
    %3190 = vmatprep.subr.mxu0 0.0
    %3191 = vmatpush1.xpose.msra.mxu0 0.0
    %3192 = vmatprep.subr.mxu0 0.0
    %3193 = vmatpush1.xpose.msra.mxu0 0.0
    %3194 = vmatprep.subr.mxu0 0.0
    %3195 = vmatpush1.xpose.msra.mxu0 0.0
    %3196 = vmatprep.subr.mxu0 0.0
    %3197 = vmatpush1.xpose.msra.mxu0 0.0
    %3198 = vmatprep.subr.mxu0 0.0
    %3199 = vmatpush1.xpose.msra.mxu0 0.0
    %3200 = vmatprep.subr.mxu0 0.0
    %3201 = vmatpush1.xpose.msra.mxu0 0.0
    %3202 = vmatprep.mubr.f32.mxu0 0.0
    %3203 = vmatmul.mubr.f32.gmra.mrb[0].mxu0 %v3134
    %v3204 = vpop.f32.mrb[0].mxu0
    %v3205 = vadd.f32 %v137, %v3204
    %v3206 = vpop.f32.mrb[0].mxu0
    %3207 = vdwg.mxu0
    %3208 = vrot.lane.b32.xlu0 %v2305, 112
    %v3209 = vpop.permute.xlu0 %3208
    %3210 = vrot.lane.b32.xlu0 %v2305, 80
    %v3211 = vpop.permute.xlu0 %3210
    %v3212 = vsel %vm292, %v3209, 0
    %v3214 = vsel %vm292, %v3211, 0
    %3216 = vmatprep.subr.mxu0 0.0
    %3217 = vmatpush1.xpose.msra.mxu0 %v3214
    %3218 = vmatprep.subr.mxu0 0.0
    %3219 = vmatpush1.xpose.msra.mxu0 0.0
    %3220 = vmatprep.subr.mxu0 0.0
    %3221 = vmatpush1.xpose.msra.mxu0 0.0
    %3222 = vmatprep.subr.mxu0 0.0
    %3223 = vmatpush1.xpose.msra.mxu0 0.0
    %3224 = vmatprep.subr.mxu0 0.0
    %3225 = vmatpush1.xpose.msra.mxu0 0.0
    %3226 = vmatprep.subr.mxu0 0.0
    %3227 = vmatpush1.xpose.msra.mxu0 0.0
    %3228 = vmatprep.subr.mxu0 0.0
    %3229 = vmatpush1.xpose.msra.mxu0 0.0
    %3230 = vmatprep.subr.mxu0 0.0
    %3231 = vmatpush1.xpose.msra.mxu0 0.0
    %3232 = vmatprep.subr.mxu0 0.0
    %3233 = vmatpush1.xpose.msra.mxu0 0.0
    %3234 = vmatprep.subr.mxu0 0.0
    %3235 = vmatpush1.xpose.msra.mxu0 0.0
    %3236 = vmatprep.subr.mxu0 0.0
    %3237 = vmatpush1.xpose.msra.mxu0 0.0
    %3238 = vmatprep.subr.mxu0 0.0
    %3239 = vmatpush1.xpose.msra.mxu0 0.0
    %3240 = vmatprep.subr.mxu0 0.0
    %3241 = vmatpush1.xpose.msra.mxu0 0.0
    %3242 = vmatprep.subr.mxu0 0.0
    %3243 = vmatpush1.xpose.msra.mxu0 0.0
    %3244 = vmatprep.subr.mxu0 0.0
    %3245 = vmatpush1.xpose.msra.mxu0 0.0
    %3246 = vmatprep.subr.mxu0 0.0
    %3247 = vmatpush1.xpose.msra.mxu0 0.0
    %3248 = vmatprep.subr.mxu0 0.0
    %3249 = vmatpush1.xpose.msra.mxu0 0.0
    %3250 = vmatprep.subr.mxu0 0.0
    %3251 = vmatpush1.xpose.msra.mxu0 0.0
    %3252 = vmatprep.subr.mxu0 0.0
    %3253 = vmatpush1.xpose.msra.mxu0 0.0
    %3254 = vmatprep.subr.mxu0 0.0
    %3255 = vmatpush1.xpose.msra.mxu0 0.0
    %3256 = vmatprep.subr.mxu0 0.0
    %3257 = vmatpush1.xpose.msra.mxu0 0.0
    %3258 = vmatprep.subr.mxu0 0.0
    %3259 = vmatpush1.xpose.msra.mxu0 0.0
    %3260 = vmatprep.subr.mxu0 0.0
    %3261 = vmatpush1.xpose.msra.mxu0 0.0
    %3262 = vmatprep.subr.mxu0 0.0
    %3263 = vmatpush1.xpose.msra.mxu0 0.0
    %3264 = vmatprep.subr.mxu0 0.0
    %3265 = vmatpush1.xpose.msra.mxu0 0.0
    %3266 = vmatprep.subr.mxu0 0.0
    %3267 = vmatpush1.xpose.msra.mxu0 0.0
    %3268 = vmatprep.subr.mxu0 0.0
    %3269 = vmatpush1.xpose.msra.mxu0 0.0
    %3270 = vmatprep.subr.mxu0 0.0
    %3271 = vmatpush1.xpose.msra.mxu0 0.0
    %3272 = vmatprep.subr.mxu0 0.0
    %3273 = vmatpush1.xpose.msra.mxu0 0.0
    %3274 = vmatprep.subr.mxu0 0.0
    %3275 = vmatpush1.xpose.msra.mxu0 0.0
    %3276 = vmatprep.subr.mxu0 0.0
    %3277 = vmatpush1.xpose.msra.mxu0 0.0
    %3278 = vmatprep.subr.mxu0 0.0
    %3279 = vmatpush1.xpose.msra.mxu0 0.0
    %3280 = vmatprep.mubr.f32.mxu0 0.0
    %3281 = vmatmul.mubr.f32.gmra.mrb[0].mxu0 %v3212
    %v3282 = vpop.f32.mrb[0].mxu0
    %v3283 = vadd.f32 %v138, %v3282
    %v3284 = vpop.f32.mrb[0].mxu0
    %3285 = vdwg.mxu0
    %v3286 = vsel %vm292, %v3205, -inf
    %3287 = vmax.xlane.f32.xlu0 %v3286
    %v3288 = vpop.xlane.xlu0 %3287
    %v3289 = vsel %vm292, %v3283, -inf
    %3290 = vmax.xlane.f32.xlu0 %v3289
    %v3291 = vpop.xlane.xlu0 %3290
    %v3292 = vsub.f32 %v3205, %v3288
    %v3293 = vsub.f32 %v3283, %v3291
    %v3294 = vmul.f32 %v3292, 1.442695
    %v3295 = vpow.pop %v3294
    %v3296 = vmul.f32 %v3293, 1.442695
    %v3297 = vpow.pop %v3296
    %v3298 = vsel %vm292, %v3295, 0.0
    %3299 = vadd.xlane.f32.xlu0 %v3298
    %v3300 = vpop.xlane.xlu0 %3299
    %v3301 = vsel %vm292, %v3297, 0.0
    %3302 = vadd.xlane.f32.xlu0 %v3301
    %v3303 = vpop.xlane.xlu0 %3302
    %v3304 = vrcp.pop %v3300
    %v3305 = vrcp.pop %v3303
    %v3306 = vmul.f32 %v3295, %v3304
    %v3307 = vmul.f32 %v3297, %v3305
    %3308 = vrot.lane.b32.xlu0 %v2300, 48
    %v3309 = vpop.permute.xlu0 %3308
    %v3312 = vsel %vm292, %v3306, 0
    %3314 = vmatprep.subr.mxu0 0.0
    %3315 = vmatpush1.msra.mxu0 %v3309
    %3316 = vmatprep.subr.mxu0 0.0
    %3317 = vmatpush1.msra.mxu0 0.0
    %3318 = vmatprep.subr.mxu0 0.0
    %3319 = vmatpush1.msra.mxu0 0.0
    %3320 = vmatprep.subr.mxu0 0.0
    %3321 = vmatpush1.msra.mxu0 0.0
    %3322 = vmatprep.subr.mxu0 0.0
    %3323 = vmatpush1.msra.mxu0 0.0
    %3324 = vmatprep.subr.mxu0 0.0
    %3325 = vmatpush1.msra.mxu0 0.0
    %3326 = vmatprep.subr.mxu0 0.0
    %3327 = vmatpush1.msra.mxu0 0.0
    %3328 = vmatprep.subr.mxu0 0.0
    %3329 = vmatpush1.msra.mxu0 0.0
    %3330 = vmatprep.subr.mxu0 0.0
    %3331 = vmatpush1.msra.mxu0 0.0
    %3332 = vmatprep.subr.mxu0 0.0
    %3333 = vmatpush1.msra.mxu0 0.0
    %3334 = vmatprep.subr.mxu0 0.0
    %3335 = vmatpush1.msra.mxu0 0.0
    %3336 = vmatprep.subr.mxu0 0.0
    %3337 = vmatpush1.msra.mxu0 0.0
    %3338 = vmatprep.subr.mxu0 0.0
    %3339 = vmatpush1.msra.mxu0 0.0
    %3340 = vmatprep.subr.mxu0 0.0
    %3341 = vmatpush1.msra.mxu0 0.0
    %3342 = vmatprep.subr.mxu0 0.0
    %3343 = vmatpush1.msra.mxu0 0.0
    %3344 = vmatprep.subr.mxu0 0.0
    %3345 = vmatpush1.msra.mxu0 0.0
    %3346 = vmatprep.subr.mxu0 0.0
    %3347 = vmatpush1.msra.mxu0 0.0
    %3348 = vmatprep.subr.mxu0 0.0
    %3349 = vmatpush1.msra.mxu0 0.0
    %3350 = vmatprep.subr.mxu0 0.0
    %3351 = vmatpush1.msra.mxu0 0.0
    %3352 = vmatprep.subr.mxu0 0.0
    %3353 = vmatpush1.msra.mxu0 0.0
    %3354 = vmatprep.subr.mxu0 0.0
    %3355 = vmatpush1.msra.mxu0 0.0
    %3356 = vmatprep.subr.mxu0 0.0
    %3357 = vmatpush1.msra.mxu0 0.0
    %3358 = vmatprep.subr.mxu0 0.0
    %3359 = vmatpush1.msra.mxu0 0.0
    %3360 = vmatprep.subr.mxu0 0.0
    %3361 = vmatpush1.msra.mxu0 0.0
    %3362 = vmatprep.subr.mxu0 0.0
    %3363 = vmatpush1.msra.mxu0 0.0
    %3364 = vmatprep.subr.mxu0 0.0
    %3365 = vmatpush1.msra.mxu0 0.0
    %3366 = vmatprep.subr.mxu0 0.0
    %3367 = vmatpush1.msra.mxu0 0.0
    %3368 = vmatprep.subr.mxu0 0.0
    %3369 = vmatpush1.msra.mxu0 0.0
    %3370 = vmatprep.subr.mxu0 0.0
    %3371 = vmatpush1.msra.mxu0 0.0
    %3372 = vmatprep.subr.mxu0 0.0
    %3373 = vmatpush1.msra.mxu0 0.0
    %3374 = vmatprep.subr.mxu0 0.0
    %3375 = vmatpush1.msra.mxu0 0.0
    %3376 = vmatprep.subr.mxu0 0.0
    %3377 = vmatpush1.msra.mxu0 0.0
    %3378 = vmatprep.mubr.f32.mxu0 0.0
    %3379 = vmatmul.mubr.f32.gmra.mrb[0].mxu0 %v3312
    %v3380 = vpop.f32.mrb[0].mxu0
    %v3381 = vadd.f32 0.0, %v3380
    %v3382 = vpop.f32.mrb[0].mxu0
    %3383 = vdwg.mxu0
    %3384 = vrot.lane.b32.xlu0 %v2305, 48
    %v3385 = vpop.permute.xlu0 %3384
    %v3388 = vsel %vm292, %v3307, 0
    %3390 = vmatprep.subr.mxu0 0.0
    %3391 = vmatpush1.msra.mxu0 %v3385
    %3392 = vmatprep.subr.mxu0 0.0
    %3393 = vmatpush1.msra.mxu0 0.0
    %3394 = vmatprep.subr.mxu0 0.0
    %3395 = vmatpush1.msra.mxu0 0.0
    %3396 = vmatprep.subr.mxu0 0.0
    %3397 = vmatpush1.msra.mxu0 0.0
    %3398 = vmatprep.subr.mxu0 0.0
    %3399 = vmatpush1.msra.mxu0 0.0
    %3400 = vmatprep.subr.mxu0 0.0
    %3401 = vmatpush1.msra.mxu0 0.0
    %3402 = vmatprep.subr.mxu0 0.0
    %3403 = vmatpush1.msra.mxu0 0.0
    %3404 = vmatprep.subr.mxu0 0.0
    %3405 = vmatpush1.msra.mxu0 0.0
    %3406 = vmatprep.subr.mxu0 0.0
    %3407 = vmatpush1.msra.mxu0 0.0
    %3408 = vmatprep.subr.mxu0 0.0
    %3409 = vmatpush1.msra.mxu0 0.0
    %3410 = vmatprep.subr.mxu0 0.0
    %3411 = vmatpush1.msra.mxu0 0.0
    %3412 = vmatprep.subr.mxu0 0.0
    %3413 = vmatpush1.msra.mxu0 0.0
    %3414 = vmatprep.subr.mxu0 0.0
    %3415 = vmatpush1.msra.mxu0 0.0
    %3416 = vmatprep.subr.mxu0 0.0
    %3417 = vmatpush1.msra.mxu0 0.0
    %3418 = vmatprep.subr.mxu0 0.0
    %3419 = vmatpush1.msra.mxu0 0.0
    %3420 = vmatprep.subr.mxu0 0.0
    %3421 = vmatpush1.msra.mxu0 0.0
    %3422 = vmatprep.subr.mxu0 0.0
    %3423 = vmatpush1.msra.mxu0 0.0
    %3424 = vmatprep.subr.mxu0 0.0
    %3425 = vmatpush1.msra.mxu0 0.0
    %3426 = vmatprep.subr.mxu0 0.0
    %3427 = vmatpush1.msra.mxu0 0.0
    %3428 = vmatprep.subr.mxu0 0.0
    %3429 = vmatpush1.msra.mxu0 0.0
    %3430 = vmatprep.subr.mxu0 0.0
    %3431 = vmatpush1.msra.mxu0 0.0
    %3432 = vmatprep.subr.mxu0 0.0
    %3433 = vmatpush1.msra.mxu0 0.0
    %3434 = vmatprep.subr.mxu0 0.0
    %3435 = vmatpush1.msra.mxu0 0.0
    %3436 = vmatprep.subr.mxu0 0.0
    %3437 = vmatpush1.msra.mxu0 0.0
    %3438 = vmatprep.subr.mxu0 0.0
    %3439 = vmatpush1.msra.mxu0 0.0
    %3440 = vmatprep.subr.mxu0 0.0
    %3441 = vmatpush1.msra.mxu0 0.0
    %3442 = vmatprep.subr.mxu0 0.0
    %3443 = vmatpush1.msra.mxu0 0.0
    %3444 = vmatprep.subr.mxu0 0.0
    %3445 = vmatpush1.msra.mxu0 0.0
    %3446 = vmatprep.subr.mxu0 0.0
    %3447 = vmatpush1.msra.mxu0 0.0
    %3448 = vmatprep.subr.mxu0 0.0
    %3449 = vmatpush1.msra.mxu0 0.0
    %3450 = vmatprep.subr.mxu0 0.0
    %3451 = vmatpush1.msra.mxu0 0.0
    %3452 = vmatprep.subr.mxu0 0.0
    %3453 = vmatpush1.msra.mxu0 0.0
    %3454 = vmatprep.mubr.f32.mxu0 0.0
    %3455 = vmatmul.mubr.f32.gmra.mrb[0].mxu0 %v3388
    %v3456 = vpop.f32.mrb[0].mxu0
    %v3457 = vadd.f32 0.0, %v3456
    %v3458 = vpop.f32.mrb[0].mxu0
    %3459 = vdwg.mxu0
    %v3460 = vld [vmem:[#allocation2 + $0x190] sm:$0xff]
    %v3462 = vsel %vm292, %v3381, 0
    %v3465 = vsel %vm292, %v3457, 0
    %3467 = vmatprep.subr.mxu0 0.0
    %3468 = vmatpush1.msra.mxu0 %v3460
    %3469 = vmatprep.subr.mxu0 0.0
    %3470 = vmatpush1.msra.mxu0 0.0
    %3471 = vmatprep.subr.mxu0 0.0
    %3472 = vmatpush1.msra.mxu0 0.0
    %3473 = vmatprep.subr.mxu0 0.0
    %3474 = vmatpush1.msra.mxu0 0.0
    %3475 = vmatprep.subr.mxu0 0.0
    %3476 = vmatpush1.msra.mxu0 0.0
    %3477 = vmatprep.subr.mxu0 0.0
    %3478 = vmatpush1.msra.mxu0 0.0
    %3479 = vmatprep.subr.mxu0 0.0
    %3480 = vmatpush1.msra.mxu0 0.0
    %3481 = vmatprep.subr.mxu0 0.0
    %3482 = vmatpush1.msra.mxu0 0.0
    %3483 = vmatprep.subr.mxu0 0.0
    %3484 = vmatpush1.msra.mxu0 0.0
    %3485 = vmatprep.subr.mxu0 0.0
    %3486 = vmatpush1.msra.mxu0 0.0
    %3487 = vmatprep.subr.mxu0 0.0
    %3488 = vmatpush1.msra.mxu0 0.0
    %3489 = vmatprep.subr.mxu0 0.0
    %3490 = vmatpush1.msra.mxu0 0.0
    %3491 = vmatprep.subr.mxu0 0.0
    %3492 = vmatpush1.msra.mxu0 0.0
    %3493 = vmatprep.subr.mxu0 0.0
    %3494 = vmatpush1.msra.mxu0 0.0
    %3495 = vmatprep.subr.mxu0 0.0
    %3496 = vmatpush1.msra.mxu0 0.0
    %3497 = vmatprep.subr.mxu0 0.0
    %3498 = vmatpush1.msra.mxu0 0.0
    %3499 = vmatprep.subr.mxu0 0.0
    %3500 = vmatpush1.msra.mxu0 0.0
    %3501 = vmatprep.subr.mxu0 0.0
    %3502 = vmatpush1.msra.mxu0 0.0
    %3503 = vmatprep.subr.mxu0 0.0
    %3504 = vmatpush1.msra.mxu0 0.0
    %3505 = vmatprep.subr.mxu0 0.0
    %3506 = vmatpush1.msra.mxu0 0.0
    %3507 = vmatprep.subr.mxu0 0.0
    %3508 = vmatpush1.msra.mxu0 0.0
    %3509 = vmatprep.subr.mxu0 0.0
    %3510 = vmatpush1.msra.mxu0 0.0
    %3511 = vmatprep.subr.mxu0 0.0
    %3512 = vmatpush1.msra.mxu0 0.0
    %3513 = vmatprep.subr.mxu0 0.0
    %3514 = vmatpush1.msra.mxu0 0.0
    %3515 = vmatprep.subr.mxu0 0.0
    %3516 = vmatpush1.msra.mxu0 0.0
    %3517 = vmatprep.subr.mxu0 0.0
    %3518 = vmatpush1.msra.mxu0 0.0
    %3519 = vmatprep.subr.mxu0 0.0
    %3520 = vmatpush1.msra.mxu0 0.0
    %3521 = vmatprep.subr.mxu0 0.0
    %3522 = vmatpush1.msra.mxu0 0.0
    %3523 = vmatprep.subr.mxu0 0.0
    %3524 = vmatpush1.msra.mxu0 0.0
    %3525 = vmatprep.subr.mxu0 0.0
    %3526 = vmatpush1.msra.mxu0 0.0
    %3527 = vmatprep.subr.mxu0 0.0
    %3528 = vmatpush1.msra.mxu0 0.0
    %3529 = vmatprep.subr.mxu0 0.0
    %3530 = vmatpush1.msra.mxu0 0.0
    %3531 = vmatprep.mubr.f32.mxu0 0.0
    %3532 = vmatmul.mubr.f32.gmra.mrb[0].mxu0 %v3462
    %v3533 = vpop.f32.mrb[0].mxu0
    %v3534 = vadd.f32 0.0, %v3533
    %v3535 = vpop.f32.mrb[0].mxu0
    %3536 = vmatprep.mubr.f32.mxu0 0.0
    %3537 = vmatmul.mubr.f32.gmra.mrb[0].mxu0 %v3465
    %v3538 = vpop.f32.mrb[0].mxu0
    %v3539 = vadd.f32 0.0, %v3538
    %v3540 = vpop.f32.mrb[0].mxu0
    %3541 = vdwg.mxu0
    %v3542 = vadd.f32 %v3122, %v3534
    %v3543 = vadd.f32 %v3127, %v3539
    %3544 = vrot.lane.b32.xlu0 %v2300, 104
    %v3545 = vpop.permute.xlu0 %3544
    %3546 = vrot.lane.b32.xlu0 %v2300, 72
    %v3547 = vpop.permute.xlu0 %3546
    %v3548 = vsel %vm292, %v3545, 0
    %v3550 = vsel %vm292, %v3547, 0
    %3552 = vmatprep.subr.mxu0 0.0
    %3553 = vmatpush1.xpose.msra.mxu0 %v3550
    %3554 = vmatprep.subr.mxu0 0.0
    %3555 = vmatpush1.xpose.msra.mxu0 0.0
    %3556 = vmatprep.subr.mxu0 0.0
    %3557 = vmatpush1.xpose.msra.mxu0 0.0
    %3558 = vmatprep.subr.mxu0 0.0
    %3559 = vmatpush1.xpose.msra.mxu0 0.0
    %3560 = vmatprep.subr.mxu0 0.0
    %3561 = vmatpush1.xpose.msra.mxu0 0.0
    %3562 = vmatprep.subr.mxu0 0.0
    %3563 = vmatpush1.xpose.msra.mxu0 0.0
    %3564 = vmatprep.subr.mxu0 0.0
    %3565 = vmatpush1.xpose.msra.mxu0 0.0
    %3566 = vmatprep.subr.mxu0 0.0
    %3567 = vmatpush1.xpose.msra.mxu0 0.0
    %3568 = vmatprep.subr.mxu0 0.0
    %3569 = vmatpush1.xpose.msra.mxu0 0.0
    %3570 = vmatprep.subr.mxu0 0.0
    %3571 = vmatpush1.xpose.msra.mxu0 0.0
    %3572 = vmatprep.subr.mxu0 0.0
    %3573 = vmatpush1.xpose.msra.mxu0 0.0
    %3574 = vmatprep.subr.mxu0 0.0
    %3575 = vmatpush1.xpose.msra.mxu0 0.0
    %3576 = vmatprep.subr.mxu0 0.0
    %3577 = vmatpush1.xpose.msra.mxu0 0.0
    %3578 = vmatprep.subr.mxu0 0.0
    %3579 = vmatpush1.xpose.msra.mxu0 0.0
    %3580 = vmatprep.subr.mxu0 0.0
    %3581 = vmatpush1.xpose.msra.mxu0 0.0
    %3582 = vmatprep.subr.mxu0 0.0
    %3583 = vmatpush1.xpose.msra.mxu0 0.0
    %3584 = vmatprep.subr.mxu0 0.0
    %3585 = vmatpush1.xpose.msra.mxu0 0.0
    %3586 = vmatprep.subr.mxu0 0.0
    %3587 = vmatpush1.xpose.msra.mxu0 0.0
    %3588 = vmatprep.subr.mxu0 0.0
    %3589 = vmatpush1.xpose.msra.mxu0 0.0
    %3590 = vmatprep.subr.mxu0 0.0
    %3591 = vmatpush1.xpose.msra.mxu0 0.0
    %3592 = vmatprep.subr.mxu0 0.0
    %3593 = vmatpush1.xpose.msra.mxu0 0.0
    %3594 = vmatprep.subr.mxu0 0.0
    %3595 = vmatpush1.xpose.msra.mxu0 0.0
    %3596 = vmatprep.subr.mxu0 0.0
    %3597 = vmatpush1.xpose.msra.mxu0 0.0
    %3598 = vmatprep.subr.mxu0 0.0
    %3599 = vmatpush1.xpose.msra.mxu0 0.0
    %3600 = vmatprep.subr.mxu0 0.0
    %3601 = vmatpush1.xpose.msra.mxu0 0.0
    %3602 = vmatprep.subr.mxu0 0.0
    %3603 = vmatpush1.xpose.msra.mxu0 0.0
    %3604 = vmatprep.subr.mxu0 0.0
    %3605 = vmatpush1.xpose.msra.mxu0 0.0
    %3606 = vmatprep.subr.mxu0 0.0
    %3607 = vmatpush1.xpose.msra.mxu0 0.0
    %3608 = vmatprep.subr.mxu0 0.0
    %3609 = vmatpush1.xpose.msra.mxu0 0.0
    %3610 = vmatprep.subr.mxu0 0.0
    %3611 = vmatpush1.xpose.msra.mxu0 0.0
    %3612 = vmatprep.subr.mxu0 0.0
    %3613 = vmatpush1.xpose.msra.mxu0 0.0
    %3614 = vmatprep.subr.mxu0 0.0
    %3615 = vmatpush1.xpose.msra.mxu0 0.0
    %3616 = vmatprep.mubr.f32.mxu0 0.0
    %3617 = vmatmul.mubr.f32.gmra.mrb[0].mxu0 %v3548
    %v3618 = vpop.f32.mrb[0].mxu0
    %v3619 = vadd.f32 %v137, %v3618
    %v3620 = vpop.f32.mrb[0].mxu0
    %3621 = vdwg.mxu0
    %3622 = vrot.lane.b32.xlu0 %v2305, 104
    %v3623 = vpop.permute.xlu0 %3622
    %3624 = vrot.lane.b32.xlu0 %v2305, 72
    %v3625 = vpop.permute.xlu0 %3624
    %v3626 = vsel %vm292, %v3623, 0
    %v3628 = vsel %vm292, %v3625, 0
    %3630 = vmatprep.subr.mxu0 0.0
    %3631 = vmatpush1.xpose.msra.mxu0 %v3628
    %3632 = vmatprep.subr.mxu0 0.0
    %3633 = vmatpush1.xpose.msra.mxu0 0.0
    %3634 = vmatprep.subr.mxu0 0.0
    %3635 = vmatpush1.xpose.msra.mxu0 0.0
    %3636 = vmatprep.subr.mxu0 0.0
    %3637 = vmatpush1.xpose.msra.mxu0 0.0
    %3638 = vmatprep.subr.mxu0 0.0
    %3639 = vmatpush1.xpose.msra.mxu0 0.0
    %3640 = vmatprep.subr.mxu0 0.0
    %3641 = vmatpush1.xpose.msra.mxu0 0.0
    %3642 = vmatprep.subr.mxu0 0.0
    %3643 = vmatpush1.xpose.msra.mxu0 0.0
    %3644 = vmatprep.subr.mxu0 0.0
    %3645 = vmatpush1.xpose.msra.mxu0 0.0
    %3646 = vmatprep.subr.mxu0 0.0
    %3647 = vmatpush1.xpose.msra.mxu0 0.0
    %3648 = vmatprep.subr.mxu0 0.0
    %3649 = vmatpush1.xpose.msra.mxu0 0.0
    %3650 = vmatprep.subr.mxu0 0.0
    %3651 = vmatpush1.xpose.msra.mxu0 0.0
    %3652 = vmatprep.subr.mxu0 0.0
    %3653 = vmatpush1.xpose.msra.mxu0 0.0
    %3654 = vmatprep.subr.mxu0 0.0
    %3655 = vmatpush1.xpose.msra.mxu0 0.0
    %3656 = vmatprep.subr.mxu0 0.0
    %3657 = vmatpush1.xpose.msra.mxu0 0.0
    %3658 = vmatprep.subr.mxu0 0.0
    %3659 = vmatpush1.xpose.msra.mxu0 0.0
    %3660 = vmatprep.subr.mxu0 0.0
    %3661 = vmatpush1.xpose.msra.mxu0 0.0
    %3662 = vmatprep.subr.mxu0 0.0
    %3663 = vmatpush1.xpose.msra.mxu0 0.0
    %3664 = vmatprep.subr.mxu0 0.0
    %3665 = vmatpush1.xpose.msra.mxu0 0.0
    %3666 = vmatprep.subr.mxu0 0.0
    %3667 = vmatpush1.xpose.msra.mxu0 0.0
    %3668 = vmatprep.subr.mxu0 0.0
    %3669 = vmatpush1.xpose.msra.mxu0 0.0
    %3670 = vmatprep.subr.mxu0 0.0
    %3671 = vmatpush1.xpose.msra.mxu0 0.0
    %3672 = vmatprep.subr.mxu0 0.0
    %3673 = vmatpush1.xpose.msra.mxu0 0.0
    %3674 = vmatprep.subr.mxu0 0.0
    %3675 = vmatpush1.xpose.msra.mxu0 0.0
    %3676 = vmatprep.subr.mxu0 0.0
    %3677 = vmatpush1.xpose.msra.mxu0 0.0
    %3678 = vmatprep.subr.mxu0 0.0
    %3679 = vmatpush1.xpose.msra.mxu0 0.0
    %3680 = vmatprep.subr.mxu0 0.0
    %3681 = vmatpush1.xpose.msra.mxu0 0.0
    %3682 = vmatprep.subr.mxu0 0.0
    %3683 = vmatpush1.xpose.msra.mxu0 0.0
    %3684 = vmatprep.subr.mxu0 0.0
    %3685 = vmatpush1.xpose.msra.mxu0 0.0
    %3686 = vmatprep.subr.mxu0 0.0
    %3687 = vmatpush1.xpose.msra.mxu0 0.0
    %3688 = vmatprep.subr.mxu0 0.0
    %3689 = vmatpush1.xpose.msra.mxu0 0.0
    %3690 = vmatprep.subr.mxu0 0.0
    %3691 = vmatpush1.xpose.msra.mxu0 0.0
    %3692 = vmatprep.subr.mxu0 0.0
    %3693 = vmatpush1.xpose.msra.mxu0 0.0
    %3694 = vmatprep.mubr.f32.mxu0 0.0
    %3695 = vmatmul.mubr.f32.gmra.mrb[0].mxu0 %v3626
    %v3696 = vpop.f32.mrb[0].mxu0
    %v3697 = vadd.f32 %v138, %v3696
    %v3698 = vpop.f32.mrb[0].mxu0
    %3699 = vdwg.mxu0
    %v3700 = vsel %vm292, %v3619, -inf
    %3701 = vmax.xlane.f32.xlu0 %v3700
    %v3702 = vpop.xlane.xlu0 %3701
    %v3703 = vsel %vm292, %v3697, -inf
    %3704 = vmax.xlane.f32.xlu0 %v3703
    %v3705 = vpop.xlane.xlu0 %3704
    %v3706 = vsub.f32 %v3619, %v3702
    %v3707 = vsub.f32 %v3697, %v3705
    %v3708 = vmul.f32 %v3706, 1.442695
    %v3709 = vpow.pop %v3708
    %v3710 = vmul.f32 %v3707, 1.442695
    %v3711 = vpow.pop %v3710
    %v3712 = vsel %vm292, %v3709, 0.0
    %3713 = vadd.xlane.f32.xlu0 %v3712
    %v3714 = vpop.xlane.xlu0 %3713
    %v3715 = vsel %vm292, %v3711, 0.0
    %3716 = vadd.xlane.f32.xlu0 %v3715
    %v3717 = vpop.xlane.xlu0 %3716
    %v3718 = vrcp.pop %v3714
    %v3719 = vrcp.pop %v3717
    %v3720 = vmul.f32 %v3709, %v3718
    %v3721 = vmul.f32 %v3711, %v3719
    %3722 = vrot.lane.b32.xlu0 %v2300, 40
    %v3723 = vpop.permute.xlu0 %3722
    %v3726 = vsel %vm292, %v3720, 0
    %3728 = vmatprep.subr.mxu0 0.0
    %3729 = vmatpush1.msra.mxu0 %v3723
    %3730 = vmatprep.subr.mxu0 0.0
    %3731 = vmatpush1.msra.mxu0 0.0
    %3732 = vmatprep.subr.mxu0 0.0
    %3733 = vmatpush1.msra.mxu0 0.0
    %3734 = vmatprep.subr.mxu0 0.0
    %3735 = vmatpush1.msra.mxu0 0.0
    %3736 = vmatprep.subr.mxu0 0.0
    %3737 = vmatpush1.msra.mxu0 0.0
    %3738 = vmatprep.subr.mxu0 0.0
    %3739 = vmatpush1.msra.mxu0 0.0
    %3740 = vmatprep.subr.mxu0 0.0
    %3741 = vmatpush1.msra.mxu0 0.0
    %3742 = vmatprep.subr.mxu0 0.0
    %3743 = vmatpush1.msra.mxu0 0.0
    %3744 = vmatprep.subr.mxu0 0.0
    %3745 = vmatpush1.msra.mxu0 0.0
    %3746 = vmatprep.subr.mxu0 0.0
    %3747 = vmatpush1.msra.mxu0 0.0
    %3748 = vmatprep.subr.mxu0 0.0
    %3749 = vmatpush1.msra.mxu0 0.0
    %3750 = vmatprep.subr.mxu0 0.0
    %3751 = vmatpush1.msra.mxu0 0.0
    %3752 = vmatprep.subr.mxu0 0.0
    %3753 = vmatpush1.msra.mxu0 0.0
    %3754 = vmatprep.subr.mxu0 0.0
    %3755 = vmatpush1.msra.mxu0 0.0
    %3756 = vmatprep.subr.mxu0 0.0
    %3757 = vmatpush1.msra.mxu0 0.0
    %3758 = vmatprep.subr.mxu0 0.0
    %3759 = vmatpush1.msra.mxu0 0.0
    %3760 = vmatprep.subr.mxu0 0.0
    %3761 = vmatpush1.msra.mxu0 0.0
    %3762 = vmatprep.subr.mxu0 0.0
    %3763 = vmatpush1.msra.mxu0 0.0
    %3764 = vmatprep.subr.mxu0 0.0
    %3765 = vmatpush1.msra.mxu0 0.0
    %3766 = vmatprep.subr.mxu0 0.0
    %3767 = vmatpush1.msra.mxu0 0.0
    %3768 = vmatprep.subr.mxu0 0.0
    %3769 = vmatpush1.msra.mxu0 0.0
    %3770 = vmatprep.subr.mxu0 0.0
    %3771 = vmatpush1.msra.mxu0 0.0
    %3772 = vmatprep.subr.mxu0 0.0
    %3773 = vmatpush1.msra.mxu0 0.0
    %3774 = vmatprep.subr.mxu0 0.0
    %3775 = vmatpush1.msra.mxu0 0.0
    %3776 = vmatprep.subr.mxu0 0.0
    %3777 = vmatpush1.msra.mxu0 0.0
    %3778 = vmatprep.subr.mxu0 0.0
    %3779 = vmatpush1.msra.mxu0 0.0
    %3780 = vmatprep.subr.mxu0 0.0
    %3781 = vmatpush1.msra.mxu0 0.0
    %3782 = vmatprep.subr.mxu0 0.0
    %3783 = vmatpush1.msra.mxu0 0.0
    %3784 = vmatprep.subr.mxu0 0.0
    %3785 = vmatpush1.msra.mxu0 0.0
    %3786 = vmatprep.subr.mxu0 0.0
    %3787 = vmatpush1.msra.mxu0 0.0
    %3788 = vmatprep.subr.mxu0 0.0
    %3789 = vmatpush1.msra.mxu0 0.0
    %3790 = vmatprep.subr.mxu0 0.0
    %3791 = vmatpush1.msra.mxu0 0.0
    %3792 = vmatprep.mubr.f32.mxu0 0.0
    %3793 = vmatmul.mubr.f32.gmra.mrb[0].mxu0 %v3726
    %v3794 = vpop.f32.mrb[0].mxu0
    %v3795 = vadd.f32 0.0, %v3794
    %v3796 = vpop.f32.mrb[0].mxu0
    %3797 = vdwg.mxu0
    %3798 = vrot.lane.b32.xlu0 %v2305, 40
    %v3799 = vpop.permute.xlu0 %3798
    %v3802 = vsel %vm292, %v3721, 0
    %3804 = vmatprep.subr.mxu0 0.0
    %3805 = vmatpush1.msra.mxu0 %v3799
    %3806 = vmatprep.subr.mxu0 0.0
    %3807 = vmatpush1.msra.mxu0 0.0
    %3808 = vmatprep.subr.mxu0 0.0
    %3809 = vmatpush1.msra.mxu0 0.0
    %3810 = vmatprep.subr.mxu0 0.0
    %3811 = vmatpush1.msra.mxu0 0.0
    %3812 = vmatprep.subr.mxu0 0.0
    %3813 = vmatpush1.msra.mxu0 0.0
    %3814 = vmatprep.subr.mxu0 0.0
    %3815 = vmatpush1.msra.mxu0 0.0
    %3816 = vmatprep.subr.mxu0 0.0
    %3817 = vmatpush1.msra.mxu0 0.0
    %3818 = vmatprep.subr.mxu0 0.0
    %3819 = vmatpush1.msra.mxu0 0.0
    %3820 = vmatprep.subr.mxu0 0.0
    %3821 = vmatpush1.msra.mxu0 0.0
    %3822 = vmatprep.subr.mxu0 0.0
    %3823 = vmatpush1.msra.mxu0 0.0
    %3824 = vmatprep.subr.mxu0 0.0
    %3825 = vmatpush1.msra.mxu0 0.0
    %3826 = vmatprep.subr.mxu0 0.0
    %3827 = vmatpush1.msra.mxu0 0.0
    %3828 = vmatprep.subr.mxu0 0.0
    %3829 = vmatpush1.msra.mxu0 0.0
    %3830 = vmatprep.subr.mxu0 0.0
    %3831 = vmatpush1.msra.mxu0 0.0
    %3832 = vmatprep.subr.mxu0 0.0
    %3833 = vmatpush1.msra.mxu0 0.0
    %3834 = vmatprep.subr.mxu0 0.0
    %3835 = vmatpush1.msra.mxu0 0.0
    %3836 = vmatprep.subr.mxu0 0.0
    %3837 = vmatpush1.msra.mxu0 0.0
    %3838 = vmatprep.subr.mxu0 0.0
    %3839 = vmatpush1.msra.mxu0 0.0
    %3840 = vmatprep.subr.mxu0 0.0
    %3841 = vmatpush1.msra.mxu0 0.0
    %3842 = vmatprep.subr.mxu0 0.0
    %3843 = vmatpush1.msra.mxu0 0.0
    %3844 = vmatprep.subr.mxu0 0.0
    %3845 = vmatpush1.msra.mxu0 0.0
    %3846 = vmatprep.subr.mxu0 0.0
    %3847 = vmatpush1.msra.mxu0 0.0
    %3848 = vmatprep.subr.mxu0 0.0
    %3849 = vmatpush1.msra.mxu0 0.0
    %3850 = vmatprep.subr.mxu0 0.0
    %3851 = vmatpush1.msra.mxu0 0.0
    %3852 = vmatprep.subr.mxu0 0.0
    %3853 = vmatpush1.msra.mxu0 0.0
    %3854 = vmatprep.subr.mxu0 0.0
    %3855 = vmatpush1.msra.mxu0 0.0
    %3856 = vmatprep.subr.mxu0 0.0
    %3857 = vmatpush1.msra.mxu0 0.0
    %3858 = vmatprep.subr.mxu0 0.0
    %3859 = vmatpush1.msra.mxu0 0.0
    %3860 = vmatprep.subr.mxu0 0.0
    %3861 = vmatpush1.msra.mxu0 0.0
    %3862 = vmatprep.subr.mxu0 0.0
    %3863 = vmatpush1.msra.mxu0 0.0
    %3864 = vmatprep.subr.mxu0 0.0
    %3865 = vmatpush1.msra.mxu0 0.0
    %3866 = vmatprep.subr.mxu0 0.0
    %3867 = vmatpush1.msra.mxu0 0.0
    %3868 = vmatprep.mubr.f32.mxu0 0.0
    %3869 = vmatmul.mubr.f32.gmra.mrb[0].mxu0 %v3802
    %v3870 = vpop.f32.mrb[0].mxu0
    %v3871 = vadd.f32 0.0, %v3870
    %v3872 = vpop.f32.mrb[0].mxu0
    %3873 = vdwg.mxu0
    %v3874 = vld [vmem:[#allocation2 + $0x198] sm:$0xff]
    %v3876 = vsel %vm292, %v3795, 0
    %v3879 = vsel %vm292, %v3871, 0
    %3881 = vmatprep.subr.mxu0 0.0
    %3882 = vmatpush1.msra.mxu0 %v3874
    %3883 = vmatprep.subr.mxu0 0.0
    %3884 = vmatpush1.msra.mxu0 0.0
    %3885 = vmatprep.subr.mxu0 0.0
    %3886 = vmatpush1.msra.mxu0 0.0
    %3887 = vmatprep.subr.mxu0 0.0
    %3888 = vmatpush1.msra.mxu0 0.0
    %3889 = vmatprep.subr.mxu0 0.0
    %3890 = vmatpush1.msra.mxu0 0.0
    %3891 = vmatprep.subr.mxu0 0.0
    %3892 = vmatpush1.msra.mxu0 0.0
    %3893 = vmatprep.subr.mxu0 0.0
    %3894 = vmatpush1.msra.mxu0 0.0
    %3895 = vmatprep.subr.mxu0 0.0
    %3896 = vmatpush1.msra.mxu0 0.0
    %3897 = vmatprep.subr.mxu0 0.0
    %3898 = vmatpush1.msra.mxu0 0.0
    %3899 = vmatprep.subr.mxu0 0.0
    %3900 = vmatpush1.msra.mxu0 0.0
    %3901 = vmatprep.subr.mxu0 0.0
    %3902 = vmatpush1.msra.mxu0 0.0
    %3903 = vmatprep.subr.mxu0 0.0
    %3904 = vmatpush1.msra.mxu0 0.0
    %3905 = vmatprep.subr.mxu0 0.0
    %3906 = vmatpush1.msra.mxu0 0.0
    %3907 = vmatprep.subr.mxu0 0.0
    %3908 = vmatpush1.msra.mxu0 0.0
    %3909 = vmatprep.subr.mxu0 0.0
    %3910 = vmatpush1.msra.mxu0 0.0
    %3911 = vmatprep.subr.mxu0 0.0
    %3912 = vmatpush1.msra.mxu0 0.0
    %3913 = vmatprep.subr.mxu0 0.0
    %3914 = vmatpush1.msra.mxu0 0.0
    %3915 = vmatprep.subr.mxu0 0.0
    %3916 = vmatpush1.msra.mxu0 0.0
    %3917 = vmatprep.subr.mxu0 0.0
    %3918 = vmatpush1.msra.mxu0 0.0
    %3919 = vmatprep.subr.mxu0 0.0
    %3920 = vmatpush1.msra.mxu0 0.0
    %3921 = vmatprep.subr.mxu0 0.0
    %3922 = vmatpush1.msra.mxu0 0.0
    %3923 = vmatprep.subr.mxu0 0.0
    %3924 = vmatpush1.msra.mxu0 0.0
    %3925 = vmatprep.subr.mxu0 0.0
    %3926 = vmatpush1.msra.mxu0 0.0
    %3927 = vmatprep.subr.mxu0 0.0
    %3928 = vmatpush1.msra.mxu0 0.0
    %3929 = vmatprep.subr.mxu0 0.0
    %3930 = vmatpush1.msra.mxu0 0.0
    %3931 = vmatprep.subr.mxu0 0.0
    %3932 = vmatpush1.msra.mxu0 0.0
    %3933 = vmatprep.subr.mxu0 0.0
    %3934 = vmatpush1.msra.mxu0 0.0
    %3935 = vmatprep.subr.mxu0 0.0
    %3936 = vmatpush1.msra.mxu0 0.0
    %3937 = vmatprep.subr.mxu0 0.0
    %3938 = vmatpush1.msra.mxu0 0.0
    %3939 = vmatprep.subr.mxu0 0.0
    %3940 = vmatpush1.msra.mxu0 0.0
    %3941 = vmatprep.subr.mxu0 0.0
    %3942 = vmatpush1.msra.mxu0 0.0
    %3943 = vmatprep.subr.mxu0 0.0
    %3944 = vmatpush1.msra.mxu0 0.0
    %3945 = vmatprep.mubr.f32.mxu0 0.0
    %3946 = vmatmul.mubr.f32.gmra.mrb[0].mxu0 %v3876
    %v3947 = vpop.f32.mrb[0].mxu0
    %v3948 = vadd.f32 0.0, %v3947
    %v3949 = vpop.f32.mrb[0].mxu0
    %3950 = vmatprep.mubr.f32.mxu0 0.0
    %3951 = vmatmul.mubr.f32.gmra.mrb[0].mxu0 %v3879
    %v3952 = vpop.f32.mrb[0].mxu0
    %v3953 = vadd.f32 0.0, %v3952
    %v3954 = vpop.f32.mrb[0].mxu0
    %3955 = vdwg.mxu0
    %v3956 = vadd.f32 %v3542, %v3948
    %v3957 = vadd.f32 %v3543, %v3953
    %v3958 = vadd.f32 %v2158, %v3956
    %v3959 = vadd.f32 %v2159, %v3957
    %v3960 = vlaneseq
    %v3961 = vshrl.u32 %v3960, 7
    %v3962 = vsub.s32 2, %v3961
    %v3963 = vrot.slane %v2184, %v3962
    %v3964 = vadd.f32 %v3958, %v3963
    %v3965 = vadd.f32 %v3959, %v3963
    %v3966 = vsel %vm164, %v3964, 0.0
    %3967 = vadd.xlane.f32.xlu0 %v3966
    %v3968 = vpop.xlane.xlu0 %3967
    %v3969 = vsel %vm164, %v3965, 0.0
    %3970 = vadd.xlane.f32.xlu0 %v3969
    %v3971 = vpop.xlane.xlu0 %3970
    %v3972 = vmul.f32 %v3968, %v171
    %v3973 = vmul.f32 %v3971, %v171
    %v3974 = vsub.f32 %v3964, %v3972
    %v3975 = vsub.f32 %v3965, %v3973
    %v3976 = vmul.f32 %v3974, %v3974
    %v3977 = vmul.f32 %v3975, %v3975
    %v3978 = vsel %vm164, %v3976, 0.0
    %3979 = vadd.xlane.f32.xlu0 %v3978
    %v3980 = vpop.xlane.xlu0 %3979
    %v3981 = vsel %vm164, %v3977, 0.0
    %3982 = vadd.xlane.f32.xlu0 %v3981
    %v3983 = vpop.xlane.xlu0 %3982
    %v3984 = vmul.f32 %v3980, %v171
    %v3985 = vmul.f32 %v3983, %v171
    %3988 = vrot.lane.b32.xlu0 %v3974, 64
    %v3989 = vpop.permute.xlu0 %3988
    %3990 = vrot.lane.b32.xlu0 %v3975, 64
    %v3991 = vpop.permute.xlu0 %3990
    %v3994 = vmul.f32 %v2208, %v3989
    %v3995 = vmul.f32 %v2208, %v3991
    %v3996 = vadd.f32 %v3984, 1e-05
    %v3997 = vadd.f32 %v3985, 1e-05
    %v3998 = vrsqrt.pop %v3996
    %v3999 = vrsqrt.pop %v3997
    %v4000 = vmul.f32 %v3994, %v3998
    %v4001 = vmul.f32 %v3995, %v3999
    %v4002 = vadd.f32 %v4000, %v2219
    %v4003 = vadd.f32 %v4001, %v2219
    %v4004 = vlaneseq
    %v4005 = vshrl.u32 %v4004, 7
    %v4006 = vsub.s32 1, %v4005
    %v4007 = vrot.slane %v2184, %v4006
    %4010 = vrot.lane.b32.xlu0 %v4002, 64
    %v4011 = vpop.permute.xlu0 %4010
    %4012 = vrot.lane.b32.xlu0 %v4003, 64
    %v4013 = vpop.permute.xlu0 %4012
    %v4014 = vsel %vm164, %v4011, 0
    %v4016 = vsel %vm164, %v4013, 0
    %4018 = vmatprep.subr.mxu0 0.0
    %4019 = vmatpush1.msra.mxu0 %v2164
    %4020 = vmatprep.subr.mxu0 0.0
    %4021 = vmatpush1.msra.mxu0 %v2165
    %4022 = vmatprep.subr.mxu0 0.0
    %4023 = vmatpush1.msra.mxu0 %v2166
    %4024 = vmatprep.subr.mxu0 0.0
    %4025 = vmatpush1.msra.mxu0 %v2167
    %4026 = vmatprep.subr.mxu0 0.0
    %4027 = vmatpush1.msra.mxu0 0.0
    %4028 = vmatprep.subr.mxu0 0.0
    %4029 = vmatpush1.msra.mxu0 0.0
    %4030 = vmatprep.subr.mxu0 0.0
    %4031 = vmatpush1.msra.mxu0 0.0
    %4032 = vmatprep.subr.mxu0 0.0
    %4033 = vmatpush1.msra.mxu0 0.0
    %4034 = vmatprep.subr.mxu0 0.0
    %4035 = vmatpush1.msra.mxu0 0.0
    %4036 = vmatprep.subr.mxu0 0.0
    %4037 = vmatpush1.msra.mxu0 0.0
    %4038 = vmatprep.subr.mxu0 0.0
    %4039 = vmatpush1.msra.mxu0 0.0
    %4040 = vmatprep.subr.mxu0 0.0
    %4041 = vmatpush1.msra.mxu0 0.0
    %4042 = vmatprep.subr.mxu0 0.0
    %4043 = vmatpush1.msra.mxu0 0.0
    %4044 = vmatprep.subr.mxu0 0.0
    %4045 = vmatpush1.msra.mxu0 0.0
    %4046 = vmatprep.subr.mxu0 0.0
    %4047 = vmatpush1.msra.mxu0 0.0
    %4048 = vmatprep.subr.mxu0 0.0
    %4049 = vmatpush1.msra.mxu0 0.0
    %4050 = vmatprep.subr.mxu0 0.0
    %4051 = vmatpush1.msra.mxu0 0.0
    %4052 = vmatprep.subr.mxu0 0.0
    %4053 = vmatpush1.msra.mxu0 0.0
    %4054 = vmatprep.subr.mxu0 0.0
    %4055 = vmatpush1.msra.mxu0 0.0
    %4056 = vmatprep.subr.mxu0 0.0
    %4057 = vmatpush1.msra.mxu0 0.0
    %4058 = vmatprep.subr.mxu0 0.0
    %4059 = vmatpush1.msra.mxu0 0.0
    %4060 = vmatprep.subr.mxu0 0.0
    %4061 = vmatpush1.msra.mxu0 0.0
    %4062 = vmatprep.subr.mxu0 0.0
    %4063 = vmatpush1.msra.mxu0 0.0
    %4064 = vmatprep.subr.mxu0 0.0
    %4065 = vmatpush1.msra.mxu0 0.0
    %4066 = vmatprep.subr.mxu0 0.0
    %4067 = vmatpush1.msra.mxu0 0.0
    %4068 = vmatprep.subr.mxu0 0.0
    %4069 = vmatpush1.msra.mxu0 0.0
    %4070 = vmatprep.subr.mxu0 0.0
    %4071 = vmatpush1.msra.mxu0 0.0
    %4072 = vmatprep.subr.mxu0 0.0
    %4073 = vmatpush1.msra.mxu0 0.0
    %4074 = vmatprep.subr.mxu0 0.0
    %4075 = vmatpush1.msra.mxu0 0.0
    %4076 = vmatprep.subr.mxu0 0.0
    %4077 = vmatpush1.msra.mxu0 0.0
    %4078 = vmatprep.subr.mxu0 0.0
    %4079 = vmatpush1.msra.mxu0 0.0
    %4080 = vmatprep.subr.mxu0 0.0
    %4081 = vmatpush1.msra.mxu0 0.0
    %4082 = vmatprep.mubr.f32.mxu0 0.0
    %4083 = vmatmul.mubr.f32.gmra.mrb[0].mxu0 %v4014
    %v4084 = vpop.f32.mrb[0].mxu0
    %v4085 = vadd.f32 %v4007, %v4084
    %v4086 = vpop.f32.mrb[0].mxu0
    %4087 = vmatprep.mubr.f32.mxu0 0.0
    %4088 = vmatmul.mubr.f32.gmra.mrb[0].mxu0 %v4016
    %v4089 = vpop.f32.mrb[0].mxu0
    %v4090 = vadd.f32 %v4007, %v4089
    %v4091 = vpop.f32.mrb[0].mxu0
    %4092 = vdwg.mxu0
    %v4093 = vmax.f32 %v4085, 0.0
    %v4094 = vmax.f32 %v4090, 0.0
    %4095 = vmatprep.subr.mxu0 0.0
    %4096 = vmatpush1.msra.mxu0 %v2168
    %4097 = vmatprep.subr.mxu0 0.0
    %4098 = vmatpush1.msra.mxu0 %v2169
    %4099 = vmatprep.subr.mxu0 0.0
    %4100 = vmatpush1.msra.mxu0 %v2170
    %4101 = vmatprep.subr.mxu0 0.0
    %4102 = vmatpush1.msra.mxu0 %v2171
    %4103 = vmatprep.subr.mxu0 0.0
    %4104 = vmatpush1.msra.mxu0 %v2172
    %4105 = vmatprep.subr.mxu0 0.0
    %4106 = vmatpush1.msra.mxu0 %v2173
    %4107 = vmatprep.subr.mxu0 0.0
    %4108 = vmatpush1.msra.mxu0 %v2174
    %4109 = vmatprep.subr.mxu0 0.0
    %4110 = vmatpush1.msra.mxu0 %v2175
    %4111 = vmatprep.subr.mxu0 0.0
    %4112 = vmatpush1.msra.mxu0 %v2176
    %4113 = vmatprep.subr.mxu0 0.0
    %4114 = vmatpush1.msra.mxu0 %v2177
    %4115 = vmatprep.subr.mxu0 0.0
    %4116 = vmatpush1.msra.mxu0 %v2178
    %4117 = vmatprep.subr.mxu0 0.0
    %4118 = vmatpush1.msra.mxu0 %v2179
    %4119 = vmatprep.subr.mxu0 0.0
    %4120 = vmatpush1.msra.mxu0 %v2180
    %4121 = vmatprep.subr.mxu0 0.0
    %4122 = vmatpush1.msra.mxu0 %v2181
    %4123 = vmatprep.subr.mxu0 0.0
    %4124 = vmatpush1.msra.mxu0 %v2182
    %4125 = vmatprep.subr.mxu0 0.0
    %4126 = vmatpush1.msra.mxu0 %v2183
    %4127 = vmatprep.subr.mxu0 0.0
    %4128 = vmatpush1.msra.mxu0 0.0
    %4129 = vmatprep.subr.mxu0 0.0
    %4130 = vmatpush1.msra.mxu0 0.0
    %4131 = vmatprep.subr.mxu0 0.0
    %4132 = vmatpush1.msra.mxu0 0.0
    %4133 = vmatprep.subr.mxu0 0.0
    %4134 = vmatpush1.msra.mxu0 0.0
    %4135 = vmatprep.subr.mxu0 0.0
    %4136 = vmatpush1.msra.mxu0 0.0
    %4137 = vmatprep.subr.mxu0 0.0
    %4138 = vmatpush1.msra.mxu0 0.0
    %4139 = vmatprep.subr.mxu0 0.0
    %4140 = vmatpush1.msra.mxu0 0.0
    %4141 = vmatprep.subr.mxu0 0.0
    %4142 = vmatpush1.msra.mxu0 0.0
    %4143 = vmatprep.subr.mxu0 0.0
    %4144 = vmatpush1.msra.mxu0 0.0
    %4145 = vmatprep.subr.mxu0 0.0
    %4146 = vmatpush1.msra.mxu0 0.0
    %4147 = vmatprep.subr.mxu0 0.0
    %4148 = vmatpush1.msra.mxu0 0.0
    %4149 = vmatprep.subr.mxu0 0.0
    %4150 = vmatpush1.msra.mxu0 0.0
    %4151 = vmatprep.subr.mxu0 0.0
    %4152 = vmatpush1.msra.mxu0 0.0
    %4153 = vmatprep.subr.mxu0 0.0
    %4154 = vmatpush1.msra.mxu0 0.0
    %4155 = vmatprep.subr.mxu0 0.0
    %4156 = vmatpush1.msra.mxu0 0.0
    %4157 = vmatprep.subr.mxu0 0.0
    %4158 = vmatpush1.msra.mxu0 0.0
    %4159 = vmatprep.mubr.f32.mxu0 0.0
    %4160 = vmatmul.mubr.f32.gmra.mrb[0].mxu0 %v4093
    %v4161 = vpop.f32.mrb[0].mxu0
    %v4162 = vadd.f32 0.0, %v4161
    %v4163 = vpop.f32.mrb[0].mxu0
    %4164 = vmatprep.mubr.f32.mxu0 0.0
    %4165 = vmatmul.mubr.f32.gmra.mrb[0].mxu0 %v4094
    %v4166 = vpop.f32.mrb[0].mxu0
    %v4167 = vadd.f32 0.0, %v4166
    %v4168 = vpop.f32.mrb[0].mxu0
    %4169 = vdwg.mxu0
    %v4170 = vadd.f32 %v3964, %v4162
    %v4171 = vadd.f32 %v3965, %v4167
    %4173 = vrot.lane.b32.xlu0 %v3963, 96
    %v4174 = vpop.permute.xlu0 %4173
    %v4176 = vadd.f32 %v4170, %v4174
    %v4177 = vadd.f32 %v4171, %v4174
    %v4178 = vld [vmem:[#allocation2 + $0x71] sm:$0x1]
    %v4179 = vsel %vm164, %v4176, 0.0
    %4180 = vadd.xlane.f32.xlu0 %v4179
    %v4181 = vpop.xlane.xlu0 %4180
    %v4182 = vsel %vm164, %v4177, 0.0
    %4183 = vadd.xlane.f32.xlu0 %v4182
    %v4184 = vpop.xlane.xlu0 %4183
    %v4185 = vmul.f32 %v4181, %v171
    %v4186 = vmul.f32 %v4184, %v171
    %v4187 = vsub.f32 %v4176, %v4185
    %v4188 = vsub.f32 %v4177, %v4186
    %v4189 = vmul.f32 %v4187, %v4187
    %v4190 = vmul.f32 %v4188, %v4188
    %v4191 = vsel %vm164, %v4189, 0.0
    %4192 = vadd.xlane.f32.xlu0 %v4191
    %v4193 = vpop.xlane.xlu0 %4192
    %v4194 = vsel %vm164, %v4190, 0.0
    %4195 = vadd.xlane.f32.xlu0 %v4194
    %v4196 = vpop.xlane.xlu0 %4195
    %v4197 = vmul.f32 %v4193, %v171
    %v4198 = vmul.f32 %v4196, %v171
    %v4199 = vlaneseq
    %v4200 = vshrl.u32 %v4199, 7
    %v4201 = vsub.s32 0, %v4200
    %v4202 = vrot.slane %v4178, %v4201
    %v4203 = vmul.f32 %v4202, %v4187
    %v4204 = vmul.f32 %v4202, %v4188
    %v4205 = vadd.f32 %v4197, 1e-05
    %v4206 = vadd.f32 %v4198, 1e-05
    %v4207 = vrsqrt.pop %v4205
    %v4208 = vrsqrt.pop %v4206
    %v4209 = vmul.f32 %v4203, %v4207
    %v4210 = vmul.f32 %v4204, %v4208
    %4212 = vrot.lane.b32.xlu0 %v4202, 96
    %v4213 = vpop.permute.xlu0 %4212
    %v4215 = vadd.f32 %v4209, %v4213
    %v4216 = vadd.f32 %v4210, %v4213
    %v4217 = vld [vmem:[#allocation2 + $0x50] sm:$0xff]
    %v4218 = vld [vmem:[#allocation2 + $0x58] sm:$0xff]
    %v4219 = vld [vmem:[#allocation2 + $0x60] sm:$0xff]
    %v4220 = vld [vmem:[#allocation2 + $0x68] sm:$0xff]
    %v4221 = vld [vmem:[#allocation2 + $0x70] sm:$0x1]
    %v4222 = vlaneseq
    %v4223 = vshrl.u32 %v4222, 7
    %v4224 = vsub.s32 0, %v4223
    %v4225 = vrot.slane %v4221, %v4224
    %v4227 = vsel %vm164, %v4215, 0
    %v4230 = vsel %vm164, %v4216, 0
    %4232 = vmatprep.subr.mxu0 0.0
    %4233 = vmatpush1.msra.mxu0 %v4217
    %4234 = vmatprep.subr.mxu0 0.0
    %4235 = vmatpush1.msra.mxu0 %v4218
    %4236 = vmatprep.subr.mxu0 0.0
    %4237 = vmatpush1.msra.mxu0 %v4219
    %4238 = vmatprep.subr.mxu0 0.0
    %4239 = vmatpush1.msra.mxu0 %v4220
    %4240 = vmatprep.subr.mxu0 0.0
    %4241 = vmatpush1.msra.mxu0 0.0
    %4242 = vmatprep.subr.mxu0 0.0
    %4243 = vmatpush1.msra.mxu0 0.0
    %4244 = vmatprep.subr.mxu0 0.0
    %4245 = vmatpush1.msra.mxu0 0.0
    %4246 = vmatprep.subr.mxu0 0.0
    %4247 = vmatpush1.msra.mxu0 0.0
    %4248 = vmatprep.subr.mxu0 0.0
    %4249 = vmatpush1.msra.mxu0 0.0
    %4250 = vmatprep.subr.mxu0 0.0
    %4251 = vmatpush1.msra.mxu0 0.0
    %4252 = vmatprep.subr.mxu0 0.0
    %4253 = vmatpush1.msra.mxu0 0.0
    %4254 = vmatprep.subr.mxu0 0.0
    %4255 = vmatpush1.msra.mxu0 0.0
    %4256 = vmatprep.subr.mxu0 0.0
    %4257 = vmatpush1.msra.mxu0 0.0
    %4258 = vmatprep.subr.mxu0 0.0
    %4259 = vmatpush1.msra.mxu0 0.0
    %4260 = vmatprep.subr.mxu0 0.0
    %4261 = vmatpush1.msra.mxu0 0.0
    %4262 = vmatprep.subr.mxu0 0.0
    %4263 = vmatpush1.msra.mxu0 0.0
    %4264 = vmatprep.subr.mxu0 0.0
    %4265 = vmatpush1.msra.mxu0 0.0
    %4266 = vmatprep.subr.mxu0 0.0
    %4267 = vmatpush1.msra.mxu0 0.0
    %4268 = vmatprep.subr.mxu0 0.0
    %4269 = vmatpush1.msra.mxu0 0.0
    %4270 = vmatprep.subr.mxu0 0.0
    %4271 = vmatpush1.msra.mxu0 0.0
    %4272 = vmatprep.subr.mxu0 0.0
    %4273 = vmatpush1.msra.mxu0 0.0
    %4274 = vmatprep.subr.mxu0 0.0
    %4275 = vmatpush1.msra.mxu0 0.0
    %4276 = vmatprep.subr.mxu0 0.0
    %4277 = vmatpush1.msra.mxu0 0.0
    %4278 = vmatprep.subr.mxu0 0.0
    %4279 = vmatpush1.msra.mxu0 0.0
    %4280 = vmatprep.subr.mxu0 0.0
    %4281 = vmatpush1.msra.mxu0 0.0
    %4282 = vmatprep.subr.mxu0 0.0
    %4283 = vmatpush1.msra.mxu0 0.0
    %4284 = vmatprep.subr.mxu0 0.0
    %4285 = vmatpush1.msra.mxu0 0.0
    %4286 = vmatprep.subr.mxu0 0.0
    %4287 = vmatpush1.msra.mxu0 0.0
    %4288 = vmatprep.subr.mxu0 0.0
    %4289 = vmatpush1.msra.mxu0 0.0
    %4290 = vmatprep.subr.mxu0 0.0
    %4291 = vmatpush1.msra.mxu0 0.0
    %4292 = vmatprep.subr.mxu0 0.0
    %4293 = vmatpush1.msra.mxu0 0.0
    %4294 = vmatprep.subr.mxu0 0.0
    %4295 = vmatpush1.msra.mxu0 0.0
    %4296 = vmatprep.mubr.f32.mxu0 0.0
    %4297 = vmatmul.mubr.f32.gmra.mrb[0].mxu0 %v4227
    %v4298 = vpop.f32.mrb[0].mxu0
    %v4299 = vadd.f32 %v4225, %v4298
    %v4300 = vpop.f32.mrb[0].mxu0
    %4301 = vmatprep.mubr.f32.mxu0 0.0
    %4302 = vmatmul.mubr.f32.gmra.mrb[0].mxu0 %v4230
    %v4303 = vpop.f32.mrb[0].mxu0
    %v4304 = vadd.f32 %v4225, %v4303
    %v4305 = vpop.f32.mrb[0].mxu0
    %4306 = vdwg.mxu0
    %vm4307 = vcmp.lt.s32.totalorder %v32, 64
    %v4308 = vsel %vm4307, %v4299, -1e+30
    %v4309 = vsel %vm4307, %v4304, -1e+30
    %4310 = vmax.xlane.f32.xlu0 %v4308
    %v4311 = vpop.xlane.xlu0 %4310
    %4312 = vmax.xlane.f32.xlu0 %v4309
    %v4313 = vpop.xlane.xlu0 %4312
    %v4314 = vsub.f32 %v4308, %v4311
    %v4315 = vsub.f32 %v4309, %v4313
    %v4316 = vmul.f32 %v4314, 1.442695
    %v4317 = vpow.pop %v4316
    %v4318 = vmul.f32 %v4315, 1.442695
    %v4319 = vpow.pop %v4318
    %4320 = vadd.xlane.f32.xlu0 %v4317
    %v4321 = vpop.xlane.xlu0 %4320
    %4322 = vadd.xlane.f32.xlu0 %v4319
    %v4323 = vpop.xlane.xlu0 %4322
    %v4324 = vlog2.pop %v4321
    %v4325 = vmul.f32 %v4324, 0.6931472
    %v4326 = vlog2.pop %v4323
    %v4327 = vmul.f32 %v4326, 0.6931472
    %v4328 = vsub.f32 %v4314, %v4325
    %v4329 = vsub.f32 %v4315, %v4327
    %4330 = vst [vmem:[#allocation5] sm:$0xff] %v4328
    %4331 = vst [vmem:[#allocation5 + $0x8] sm:$0xff] %v4329
    // Predicated region
    $region18: #{tpu_custom_call.1} parent=1 // pred_check
      _
    $region19: #{tpu_custom_call.1} parent=1 // pred_check_branch
      %4333 = sbr.rel (0) target = $region21
    $region20: #{tpu_custom_call.1} parent=1 // pred_region
      %s4335 = ssub.s32 256, 256
      %4336 = vsyncadd [#allocation4], %s4335
      %s4337 = sshll.u32 [#allocation5], 4
      %s4338 = int_to_ptr.vmem [resolvable:$true] %s4337
      %4343 = dma.vmem_to_hbm [thread:$0]  %s4338, 256, %s3, [#allocation4], 128, 128, 8
    $region21: #{tpu_custom_call.1} parent=1 // pred_fallthru
      _
    // Predicated region
    $region22: #{tpu_custom_call.1} parent=1 // pred_check
      _
    $region23: #{tpu_custom_call.1} parent=1 // pred_check_branch
      %4345 = sbr.rel (0) target = $region25
    $region24: #{tpu_custom_call.1} parent=1 // pred_region
      %4346 = dma.done [#allocation4], 256
    $region25: #{tpu_custom_call.1} parent=1 // pred_fallthru
      _
    %4347 = vsyncpa [#allocation3], 1
    %4348 = vsyncpa [#allocation4], 1

</llo_original>
